<compile_context>
chip_gen: v5e
topology: v5e:2x2
jax: 0.10.0
libtpu: 0.0.40
codegen_flags: <defaults>
</compile_context>

<pallas_src>
import functools
import math

import jax
import jax.numpy as jnp
from jax import lax
from jax.experimental import pallas as pl
from jax.experimental.pallas import tpu as pltpu

ACT_DTYPE = jnp.bfloat16          # HBM storage dtype for activations
ACT_BYTES = 2
LAYER_TILE_CAP = 16384            # spatial lane tile cap for fc0 / fused layers
TAIL_TILE_CAP = 4096              # tail holds a (128, TS) f32 intermediate
MODE_TILE_CAP = 2048              # mode-axis tile cap for the spectral kernel
_VMEM_LIMIT_BYTES = 32 * 1024 * 1024


def _cparams(*sem):
    return pltpu.CompilerParams(dimension_semantics=tuple(sem),
                                vmem_limit_bytes=_VMEM_LIMIT_BYTES)


# ----------------------------------------------------------------------------
# In-kernel math helpers
# ----------------------------------------------------------------------------
def _gelu_erf(x):
    # Matches PyTorch F.gelu default (erf form); used in the HBM-bound layers.
    return 0.5 * x * (1.0 + lax.erf(x * 0.7071067811865476))


def _gelu_tanh(x):
    # tanh approximation (routes to EUP) for the compute-bound tail kernel.
    return 0.5 * x * (1.0 + jnp.tanh(0.7978845608028654 * (x + 0.044715 * x * x * x)))


# ----------------------------------------------------------------------------
# Pallas kernels
# ----------------------------------------------------------------------------
def _fc0_kernel(x_ref, g_ref, wt_ref, wg_ref, b_ref, o_ref):
    # Lifting layer: y = W_t @ x + W_g @ grid + b, channels-first, lane-dense.
    x = x_ref[0]                                                       # (Cin, TS) f32
    g = g_ref[...]                                                     # (2, TS)  f32
    y = jnp.dot(wt_ref[...], x, preferred_element_type=jnp.float32)    # (width, TS)
    y = y + wg_ref[:, 0:1] * g[0:1, :] + wg_ref[:, 1:2] * g[1:2, :] + b_ref[...]
    o_ref[0] = y.astype(o_ref.dtype)


def _fused_layer_kernel(spec_ref, h_ref, w_ref, b_ref, o_ref):
    # out = gelu( spectral_branch + W_pointwise @ h + b ), channels-first.
    h = h_ref[0].astype(jnp.float32)                                   # (Cin, TS)
    y = jnp.dot(w_ref[...], h, preferred_element_type=jnp.float32)     # (Cout, TS)
    y = y + b_ref[...] + spec_ref[0]
    o_ref[0] = _gelu_erf(y).astype(o_ref.dtype)


def _tail_kernel(spec_ref, h_ref, w3_ref, b3_ref, w1_ref, b1_ref, w2_ref, b2_ref,
                 o_ref):
    # Last FNO layer (no gelu) fused with fc1 -> gelu -> fc2; (1, TS) output slab.
    h = h_ref[0].astype(jnp.float32)                                   # (width, TS)
    y = jnp.dot(w3_ref[...], h, preferred_element_type=jnp.float32)
    y = y + b3_ref[...] + spec_ref[0]                                  # (width, TS)
    z = jnp.dot(w1_ref[...], y, preferred_element_type=jnp.float32)    # (128, TS)
    z = _gelu_tanh(z + b1_ref[...])
    out = jnp.dot(w2_ref[...], z, preferred_element_type=jnp.float32)  # (1, TS)
    o_ref[0] = (out + b2_ref[...]).astype(o_ref.dtype)


def _spectral_cmul_kernel(ar_ref, ai_ref, wr_ref, wi_ref, or_ref, oi_ref):
    # Complex 'bim,iom->bom' with the mode axis on lanes and the Cin contraction
    # done as an unrolled VPU FMA loop (static slices only, no MXU micro-matmuls).
    bsz, cin, tm = ar_ref.shape
    cout = wr_ref.shape[1]
    acc_r = jnp.zeros((bsz, cout, tm), jnp.float32)
    acc_i = jnp.zeros((bsz, cout, tm), jnp.float32)
    for i in range(cin):
        a_r = ar_ref[:, i:i + 1, :]           # (B, 1, TM)
        a_i = ai_ref[:, i:i + 1, :]
        w_r = wr_ref[i:i + 1]                 # (1, Cout, TM)
        w_i = wi_ref[i:i + 1]
        acc_r = acc_r + (a_r * w_r - a_i * w_i)
        acc_i = acc_i + (a_r * w_i + a_i * w_r)
    or_ref[...] = acc_r.astype(or_ref.dtype)
    oi_ref[...] = acc_i.astype(oi_ref.dtype)


# ----------------------------------------------------------------------------
# Tiling helpers
# ----------------------------------------------------------------------------
def _pick_spatial_tile(s, cap, min_blocks=1):
    """Lane tile over the flattened spatial dim: multiple of 128 (or the full s).
    Optionally forces >= min_blocks blocks so both v7x TensorCores get work."""
    limit = min(cap, s)
    if min_blocks > 1 and s >= min_blocks * 128:
        per = -(-s // min_blocks)            # ceil(s / min_blocks)
        per = -(-per // 128) * 128           # round up to a lane multiple
        limit = min(limit, per)
    if s <= limit:
        return s
    limit -= limit % 128
    for ts in range(limit, 127, -128):
        if s % ts == 0:
            return ts
    return limit                              # ragged overhang: masked writeback


def _pick_mode_tile(m, cap=MODE_TILE_CAP):
    if m <= cap:
        return m
    limit = cap - cap % 128
    for tm in range(limit, 127, -128):
        if m % tm == 0:
            return tm
    return limit


# ----------------------------------------------------------------------------
# Pallas wrappers
# ----------------------------------------------------------------------------
def fc0_pallas(x_cf, grid_cf, wt, wg, bc):
    # x_cf: (B, 10, S) f32; grid_cf: (2, S) f32; wt: (width, 10); wg: (width, 2).
    bsz, cin, s = x_cf.shape
    width = wt.shape[0]
    ts = _pick_spatial_tile(s, LAYER_TILE_CAP, min_blocks=2 if bsz == 1 else 1)
    grid = (bsz, pl.cdiv(s, ts))
    return pl.pallas_call(
        _fc0_kernel,
        out_shape=jax.ShapeDtypeStruct((bsz, width, s), ACT_DTYPE),
        grid=grid,
        in_specs=[
            pl.BlockSpec((1, cin, ts), lambda b, j: (b, 0, j)),
            pl.BlockSpec((2, ts), lambda b, j: (0, j)),
            pl.BlockSpec((width, cin), lambda b, j: (0, 0)),
            pl.BlockSpec((width, 2), lambda b, j: (0, 0)),
            pl.BlockSpec((width, 1), lambda b, j: (0, 0)),
        ],
        out_specs=pl.BlockSpec((1, width, ts), lambda b, j: (b, 0, j)),
        compiler_params=_cparams("parallel", "parallel"),
        cost_estimate=pl.CostEstimate(
            flops=2 * bsz * s * cin * width + 4 * bsz * s * width,
            transcendentals=0,
            bytes_accessed=4 * bsz * cin * s + 8 * s
                           + ACT_BYTES * bsz * width * s + 4 * width * (cin + 3)),
    )(x_cf, grid_cf, wt, wg, bc)


def fused_layer_pallas(spec, h, w_t, b_col):
    # spec: (B, C, S) f32; h: (B, C, S) bf16; w_t: (Cout, Cin); b_col: (Cout, 1).
    bsz, c, s = h.shape
    cout = w_t.shape[0]
    ts = _pick_spatial_tile(s, LAYER_TILE_CAP, min_blocks=2 if bsz == 1 else 1)
    grid = (bsz, pl.cdiv(s, ts))
    return pl.pallas_call(
        _fused_layer_kernel,
        out_shape=jax.ShapeDtypeStruct((bsz, cout, s), h.dtype),
        grid=grid,
        in_specs=[
            pl.BlockSpec((1, cout, ts), lambda b, j: (b, 0, j)),
            pl.BlockSpec((1, c, ts), lambda b, j: (b, 0, j)),
            pl.BlockSpec((cout, c), lambda b, j: (0, 0)),
            pl.BlockSpec((cout, 1), lambda b, j: (0, 0)),
        ],
        out_specs=pl.BlockSpec((1, cout, ts), lambda b, j: (b, 0, j)),
        input_output_aliases={1: 0},          # reuse h's HBM buffer for the output
        compiler_params=_cparams("parallel", "parallel"),
        cost_estimate=pl.CostEstimate(
            flops=2 * bsz * s * c * cout,
            transcendentals=bsz * s * cout,
            bytes_accessed=4 * bsz * c * s + 2 * ACT_BYTES * bsz * cout * s
                           + 4 * (c * cout + cout)),
    )(spec, h, w_t, b_col)


def tail_pallas(spec, h, w3_t, b3_col, w1_t, b1_col, w2_t, b2_col):
    # Fused (layer-3 pointwise + spectral add) -> fc1 -> gelu -> fc2.
    bsz, c, s = h.shape
    hid = w1_t.shape[0]
    ts = _pick_spatial_tile(s, TAIL_TILE_CAP, min_blocks=2 if bsz == 1 else 1)
    grid = (bsz, pl.cdiv(s, ts))
    return pl.pallas_call(
        _tail_kernel,
        out_shape=jax.ShapeDtypeStruct((bsz, 1, s), jnp.float32),
        grid=grid,
        in_specs=[
            pl.BlockSpec((1, c, ts), lambda b, j: (b, 0, j)),
            pl.BlockSpec((1, c, ts), lambda b, j: (b, 0, j)),
            pl.BlockSpec((c, c), lambda b, j: (0, 0)),
            pl.BlockSpec((c, 1), lambda b, j: (0, 0)),
            pl.BlockSpec((hid, c), lambda b, j: (0, 0)),
            pl.BlockSpec((hid, 1), lambda b, j: (0, 0)),
            pl.BlockSpec((1, hid), lambda b, j: (0, 0)),
            pl.BlockSpec((1, 1), lambda b, j: (0, 0)),
        ],
        out_specs=pl.BlockSpec((1, 1, ts), lambda b, j: (b, 0, j)),
        compiler_params=_cparams("parallel", "parallel"),
        cost_estimate=pl.CostEstimate(
            flops=2 * bsz * s * (c * c + c * hid + hid),
            transcendentals=bsz * s * hid,
            bytes_accessed=4 * bsz * c * s + ACT_BYTES * bsz * c * s + 4 * bsz * s
                           + 4 * (c * c + c * hid + hid + c + hid + 1)),
    )(spec, h, w3_t, b3_col, w1_t, b1_col, w2_t, b2_col)


def spectral_cmul_pallas(ar, ai, wr, wi):
    # ar, ai: (B, Cin, M) f32; wr, wi: (Cin, Cout, M) f32 -> (B, Cout, M) re/im f32.
    bsz, cin, m = ar.shape
    cout = wr.shape[1]
    tm = _pick_mode_tile(m)
    grid = (pl.cdiv(m, tm),)
    a_spec = pl.BlockSpec((bsz, cin, tm), lambda i: (0, 0, i))
    w_spec = pl.BlockSpec((cin, cout, tm), lambda i: (0, 0, i))
    o_spec = pl.BlockSpec((bsz, cout, tm), lambda i: (0, 0, i))
    return pl.pallas_call(
        _spectral_cmul_kernel,
        out_shape=(jax.ShapeDtypeStruct((bsz, cout, m), jnp.float32),
                   jax.ShapeDtypeStruct((bsz, cout, m), jnp.float32)),
        grid=grid,
        in_specs=[a_spec, a_spec, w_spec, w_spec],
        out_specs=(o_spec, o_spec),
        compiler_params=_cparams("parallel"),
        cost_estimate=pl.CostEstimate(
            flops=8 * m * bsz * cin * cout,
            transcendentals=0,
            bytes_accessed=4 * (2 * m * bsz * cin + 2 * m * cin * cout
                                + 2 * m * bsz * cout)),
    )(ar, ai, wr, wi)


# ----------------------------------------------------------------------------
# Model glue (plain JAX only for the FFTs and corner slicing)
# ----------------------------------------------------------------------------
def spectral_conv2d(h_bchw, wr_packed, wi_packed, m1, m2):
    # h_bchw: (B, C, H, W) f32.  Returns the spectral branch (B, Cout, H, W) f32.
    bsz, c, hh, ww = h_bchw.shape
    cout = wr_packed.shape[1]
    mm = m1 * m2
    x_ft = jnp.fft.rfft2(h_bchw)                                       # complex64
    a = jnp.concatenate(
        [x_ft[:, :, :m1, :m2].reshape(bsz, c, mm),
         x_ft[:, :, hh - m1:, :m2].reshape(bsz, c, mm)], axis=-1)      # (B, C, 2mm)
    o_r, o_i = spectral_cmul_pallas(jnp.real(a), jnp.imag(a), wr_packed, wi_packed)
    out = lax.complex(o_r, o_i)                                        # (B, Cout, 2mm)
    wh = ww // 2 + 1
    out_ft = jnp.zeros((bsz, cout, hh, wh), dtype=jnp.complex64)
    out_ft = out_ft.at[:, :, :m1, :m2].set(out[:, :, :mm].reshape(bsz, cout, m1, m2))
    out_ft = out_ft.at[:, :, hh - m1:, :m2].set(
        out[:, :, mm:].reshape(bsz, cout, m1, m2))
    return jnp.fft.irfft2(out_ft, s=(hh, ww))                          # f32


def fno2d_forward(x, kp, m1, m2):
    bsz, sx, sy, _ = x.shape
    s = sx * sy
    width = kp["fc0_wt"].shape[0]

    # Exact coordinate slab (no in-kernel float index arithmetic).
    gx = jnp.linspace(0.0, 1.0, sx, dtype=jnp.float32)
    gy = jnp.linspace(0.0, 1.0, sy, dtype=jnp.float32)
    grid_cf = jnp.stack([jnp.repeat(gx, sy), jnp.tile(gy, sx)], axis=0)   # (2, S)

    # One small input transpose into channels-first; the layer loop stays flat.
    x_cf = x.transpose(0, 3, 1, 2).reshape(bsz, -1, s)                    # (B, 10, S)
    h = fc0_pallas(x_cf, grid_cf, kp["fc0_wt"], kp["fc0_wg"], kp["fc0_bc"])

    out = None
    for layer in range(4):
        spec = spectral_conv2d(
            h.reshape(bsz, width, sx, sy).astype(jnp.float32),
            kp[f"swr_{layer}"], kp[f"swi_{layer}"], m1, m2).reshape(bsz, width, s)
        if layer < 3:
            h = fused_layer_pallas(spec, h, kp[f"pw_wt_{layer}"], kp[f"pw_bc_{layer}"])
        else:
            out = tail_pallas(spec, h,
                              kp[f"pw_wt_{layer}"], kp[f"pw_bc_{layer}"],
                              kp["fc1_wt"], kp["fc1_bc"],
                              kp["fc2_wt"], kp["fc2_bc"])                 # (B, 1, S)
    return out.reshape(bsz, sx, sy, 1)


# ----------------------------------------------------------------------------
# One-time parameter packing into kernel-facing layouts
# ----------------------------------------------------------------------------
def pack_params(p, width, m1, m2):
    mm = m1 * m2
    kp = {
        "fc0_wt": p["fc0_w"][:-2].T,                  # (width, 10)
        "fc0_wg": p["fc0_w"][-2:].T,                  # (width, 2) -> grid channels
        "fc0_bc": p["fc0_b"].reshape(width, 1),
        "fc1_wt": p["fc1_w"].T,                       # (128, width)
        "fc1_bc": p["fc1_b"].reshape(-1, 1),
        "fc2_wt": p["fc2_w"].T,                       # (1, 128)
        "fc2_bc": p["fc2_b"].reshape(1, 1),
    }
    for l in range(4):
        kp[f"pw_wt_{l}"] = p[f"pw_w_{l}"].T           # (width, width)
        kp[f"pw_bc_{l}"] = p[f"pw_b_{l}"].reshape(width, 1)
        # Lane-dense spectral weights: (Cin, Cout, M), both corners concatenated
        # along the trailing mode axis (matches the rfft corner slabs directly).
        kp[f"swr_{l}"] = jnp.concatenate(
            [p[f"w1r_{l}"].reshape(width, width, mm),
             p[f"w2r_{l}"].reshape(width, width, mm)], axis=-1)
        kp[f"swi_{l}"] = jnp.concatenate(
            [p[f"w1i_{l}"].reshape(width, width, mm),
             p[f"w2i_{l}"].reshape(width, width, mm)], axis=-1)
    return kp


# ----------------------------------------------------------------------------
# Pure-JAX f32 reference for validation
# ----------------------------------------------------------------------------
def make_grid(bsz, sx, sy):
    gx = jnp.linspace(0.0, 1.0, sx, dtype=jnp.float32).reshape(1, sx, 1, 1)
    gx = jnp.broadcast_to(gx, (bsz, sx, sy, 1))
    gy = jnp.linspace(0.0, 1.0, sy, dtype=jnp.float32).reshape(1, 1, sy, 1)
    gy = jnp.broadcast_to(gy, (bsz, sx, sy, 1))
    return jnp.concatenate([gx, gy], axis=-1)


def fno2d_reference(x, params, m1, m2):
    bsz, sx, sy, _ = x.shape
    width = params["fc0_w"].shape[1]

    def gelu(v):
        return 0.5 * v * (1.0 + lax.erf(v * 0.7071067811865476))

    h = jnp.concatenate([x, make_grid(bsz, sx, sy)], axis=-1)
    h = h @ params["fc0_w"] + params["fc0_b"]

    for layer in range(4):
        h_nchw = h.transpose(0, 3, 1, 2)
        x_ft = jnp.fft.rfft2(h_nchw)
        w1 = lax.complex(params[f"w1r_{layer}"], params[f"w1i_{layer}"])
        w2 = lax.complex(params[f"w2r_{layer}"], params[f"w2i_{layer}"])
        wh = sy // 2 + 1
        out_ft = jnp.zeros((bsz, width, sx, wh), dtype=jnp.complex64)
        out_ft = out_ft.at[:, :, :m1, :m2].set(
            jnp.einsum("bixy,ioxy->boxy", x_ft[:, :, :m1, :m2], w1))
        out_ft = out_ft.at[:, :, sx - m1:, :m2].set(
            jnp.einsum("bixy,ioxy->boxy", x_ft[:, :, sx - m1:, :m2], w2))
        spec = jnp.fft.irfft2(out_ft, s=(sx, sy)).transpose(0, 2, 3, 1)
        h = spec + h @ params[f"pw_w_{layer}"] + params[f"pw_b_{layer}"]
        if layer < 3:
            h = gelu(h)

    h = gelu(h @ params["fc1_w"] + params["fc1_b"])
    h = h @ params["fc2_w"] + params["fc2_b"]
    return h


# ----------------------------------------------------------------------------
# Deterministic parameter init (shapes follow FNO2d.__init__ / torch layout)
# ----------------------------------------------------------------------------
def init_params(key, width, m1, m2):
    keys = iter(jax.random.split(key, 40))
    p = {}

    def lin(cin, cout):
        bound = 1.0 / math.sqrt(cin)
        w = jax.random.uniform(next(keys), (cin, cout), jnp.float32, -bound, bound)
        b = jax.random.uniform(next(keys), (cout,), jnp.float32, -bound, bound)
        return w, b

    p["fc0_w"], p["fc0_b"] = lin(12, width)
    scale = 1.0 / (width * width)
    for layer in range(4):
        for nm in ("w1r", "w1i", "w2r", "w2i"):
            p[f"{nm}_{layer}"] = scale * jax.random.uniform(
                next(keys), (width, width, m1, m2), jnp.float32)
        p[f"pw_w_{layer}"], p[f"pw_b_{layer}"] = lin(width, width)
    p["fc1_w"], p["fc1_b"] = lin(width, 128)
    p["fc2_w"], p["fc2_b"] = lin(128, 1)
    return p


if __name__ == "__main__":
    B, SX, SY = 2, 16, 16
    T_IN = 10                     # 10 previous timesteps; +2 grid channels = 12
    WIDTH, MODES1, MODES2 = 20, 6, 6

    key = jax.random.PRNGKey(0)
    k_x, k_p = jax.random.split(key)
    x = jax.random.normal(k_x, (B, SX, SY, T_IN), dtype=jnp.float32)
    params = init_params(k_p, WIDTH, MODES1, MODES2)
    kparams = pack_params(params, WIDTH, MODES1, MODES2)   # one-time weight repack

    fwd = jax.jit(functools.partial(fno2d_forward, m1=MODES1, m2=MODES2))
    out = jax.block_until_ready(fwd(x, kparams))
    assert out.shape == (B, SX, SY, 1), out.shape
    assert bool(jnp.all(jnp.isfinite(out)))

    ref = jax.block_until_ready(fno2d_reference(x, params, MODES1, MODES2))
    # Tolerance accounts for bf16 activation storage + tanh-GELU in the tail.
    assert bool(jnp.allclose(out, ref, rtol=2e-2, atol=2e-2)), (
        float(jnp.max(jnp.abs(out - ref))))

    print("KERNEL_OK")
</pallas_src>

<mosaic_0001>
module attributes {stable_mosaic.version = 11 : i64} {
  func.func @_fc0_kernel(%arg0: i32, %arg1: i32, %arg2: memref<1x10x256xf32, #tpu.memory_space<vmem>>, %arg3: memref<2x256xf32, #tpu.memory_space<vmem>>, %arg4: memref<20x10xf32, #tpu.memory_space<vmem>>, %arg5: memref<20x2xf32, #tpu.memory_space<vmem>>, %arg6: memref<20x1xf32, #tpu.memory_space<vmem>>, %arg7: memref<1x20x256xbf16, #tpu.memory_space<vmem>>) attributes {dimension_semantics = [#tpu.dimension_semantics<parallel>, #tpu.dimension_semantics<parallel>], iteration_bounds = array<i64: 2, 1>, scalar_prefetch = 0 : i64, scratch_operands = 0 : i64, tpu.core_type = #tpu.core_type<tc>, window_params = [{transform_indices = @transform_0, window_bounds = array<i64: 1, 10, 256>}, {transform_indices = @transform_1, window_bounds = array<i64: 2, 256>}, {pipeline_mode = #tpu.pipeline_mode<synchronous>, transform_indices = @transform_2, window_bounds = array<i64: 20, 10>}, {pipeline_mode = #tpu.pipeline_mode<synchronous>, transform_indices = @transform_3, window_bounds = array<i64: 20, 2>}, {pipeline_mode = #tpu.pipeline_mode<synchronous>, transform_indices = @transform_4, window_bounds = array<i64: 20, 1>}, {transform_indices = @transform_5, window_bounds = array<i64: 1, 20, 256>}]} {
    %c0 = arith.constant 0 : index
    %c0_0 = arith.constant 0 : index
    %c0_1 = arith.constant 0 : index
    %0 = vector.load %arg2[%c0, %c0_0, %c0_1] : memref<1x10x256xf32, #tpu.memory_space<vmem>>, vector<1x10x256xf32>
    %1 = vector.shape_cast %0 : vector<1x10x256xf32> to vector<10x256xf32>
    %c0_2 = arith.constant 0 : index
    %c0_3 = arith.constant 0 : index
    %2 = vector.load %arg3[%c0_2, %c0_3] : memref<2x256xf32, #tpu.memory_space<vmem>>, vector<2x256xf32>
    %c0_4 = arith.constant 0 : index
    %c0_5 = arith.constant 0 : index
    %3 = vector.load %arg4[%c0_4, %c0_5] : memref<20x10xf32, #tpu.memory_space<vmem>>, vector<20x10xf32>
    %cst = arith.constant dense<0.000000e+00> : vector<20x256xf32>
    %4 = tpu.matmul %3, %1, %cst {dimension_numbers = #tpu.dot_dimension_numbers<[1], [0], [0], [1], [0, 0, 1, 1], [], []>} : vector<20x10xf32>, vector<10x256xf32>, vector<20x256xf32> -> vector<20x256xf32>
    %c0_6 = arith.constant 0 : index
    %c0_7 = arith.constant 0 : index
    %5 = vector.load %arg5[%c0_6, %c0_7] : memref<20x2xf32, #tpu.memory_space<vmem>>, vector<20x1xf32>
    %6 = vector.extract_strided_slice %2 {offsets = [0, 0], sizes = [1, 256], strides = [1, 1]} : vector<2x256xf32> to vector<1x256xf32>
    %7 = vector.broadcast %5 : vector<20x1xf32> to vector<20x256xf32>
    %8 = vector.broadcast %6 : vector<1x256xf32> to vector<20x256xf32>
    %9 = arith.mulf %7, %8 : vector<20x256xf32>
    %10 = arith.addf %4, %9 : vector<20x256xf32>
    %c0_8 = arith.constant 0 : index
    %c1 = arith.constant 1 : index
    %11 = vector.load %arg5[%c0_8, %c1] : memref<20x2xf32, #tpu.memory_space<vmem>>, vector<20x1xf32>
    %12 = vector.extract_strided_slice %2 {offsets = [1, 0], sizes = [1, 256], strides = [1, 1]} : vector<2x256xf32> to vector<1x256xf32>
    %13 = vector.broadcast %11 : vector<20x1xf32> to vector<20x256xf32>
    %14 = vector.broadcast %12 : vector<1x256xf32> to vector<20x256xf32>
    %15 = arith.mulf %13, %14 : vector<20x256xf32>
    %16 = arith.addf %10, %15 : vector<20x256xf32>
    %c0_9 = arith.constant 0 : index
    %c0_10 = arith.constant 0 : index
    %17 = vector.load %arg6[%c0_9, %c0_10] : memref<20x1xf32, #tpu.memory_space<vmem>>, vector<20x1xf32>
    %18 = vector.broadcast %17 : vector<20x1xf32> to vector<20x256xf32>
    %19 = arith.addf %16, %18 : vector<20x256xf32>
    %20 = arith.truncf %19 : vector<20x256xf32> to vector<20x256xbf16>
    %c0_11 = arith.constant 0 : index
    %c0_12 = arith.constant 0 : index
    %c0_13 = arith.constant 0 : index
    %21 = vector.load %arg7[%c0_11, %c0_12, %c0_13] : memref<1x20x256xbf16, #tpu.memory_space<vmem>>, vector<1x20x256xbf16>
    %22 = vector.shape_cast %21 : vector<1x20x256xbf16> to vector<20x256xbf16>
    %23 = vector.shape_cast %20 : vector<20x256xbf16> to vector<1x20x256xbf16>
    tpu.vector_store %arg7[%c0_11, %c0_12, %c0_13], %23 {strides = array<i32>} : memref<1x20x256xbf16, #tpu.memory_space<vmem>>, vector<1x20x256xbf16>,
    return
  }
  func.func @transform_0(%arg0: i32, %arg1: i32) -> (i32, i32, i32) {
    %c0_i32 = arith.constant 0 : i32
    %c0_i32_0 = arith.constant 0 : i32
    return %arg0, %c0_i32, %arg1 : i32, i32, i32
  }
  func.func @transform_1(%arg0: i32, %arg1: i32) -> (i32, i32) {
    %c0_i32 = arith.constant 0 : i32
    %c0_i32_0 = arith.constant 0 : i32
    return %c0_i32, %arg1 : i32, i32
  }
  func.func @transform_2(%arg0: i32, %arg1: i32) -> (i32, i32) {
    %c0_i32 = arith.constant 0 : i32
    %c0_i32_0 = arith.constant 0 : i32
    %c0_i32_1 = arith.constant 0 : i32
    return %c0_i32, %c0_i32_0 : i32, i32
  }
  func.func @transform_3(%arg0: i32, %arg1: i32) -> (i32, i32) {
    %c0_i32 = arith.constant 0 : i32
    %c0_i32_0 = arith.constant 0 : i32
    %c0_i32_1 = arith.constant 0 : i32
    return %c0_i32, %c0_i32_0 : i32, i32
  }
  func.func @transform_4(%arg0: i32, %arg1: i32) -> (i32, i32) {
    %c0_i32 = arith.constant 0 : i32
    %c0_i32_0 = arith.constant 0 : i32
    %c0_i32_1 = arith.constant 0 : i32
    return %c0_i32, %c0_i32_0 : i32, i32
  }
  func.func @transform_5(%arg0: i32, %arg1: i32) -> (i32, i32, i32) {
    %c0_i32 = arith.constant 0 : i32
    %c0_i32_0 = arith.constant 0 : i32
    return %arg0, %c0_i32, %arg1 : i32, i32, i32
  }
}

module attributes {stable_mosaic.version = 11 : i64} {
  func.func @_spectral_cmul_kernel(%arg0: i32, %arg1: memref<2x20x72xf32, #tpu.memory_space<vmem>>, %arg2: memref<2x20x72xf32, #tpu.memory_space<vmem>>, %arg3: memref<20x20x72xf32, #tpu.memory_space<vmem>>, %arg4: memref<20x20x72xf32, #tpu.memory_space<vmem>>, %arg5: memref<2x20x72xf32, #tpu.memory_space<vmem>>, %arg6: memref<2x20x72xf32, #tpu.memory_space<vmem>>) attributes {dimension_semantics = [#tpu.dimension_semantics<parallel>], iteration_bounds = array<i64: 1>, scalar_prefetch = 0 : i64, scratch_operands = 0 : i64, tpu.core_type = #tpu.core_type<tc>, window_params = [{transform_indices = @transform_0, window_bounds = array<i64: 2, 20, 72>}, {transform_indices = @transform_1, window_bounds = array<i64: 2, 20, 72>}, {transform_indices = @transform_2, window_bounds = array<i64: 20, 20, 72>}, {transform_indices = @transform_3, window_bounds = array<i64: 20, 20, 72>}, {transform_indices = @transform_4, window_bounds = array<i64: 2, 20, 72>}, {transform_indices = @transform_5, window_bounds = array<i64: 2, 20, 72>}]} {
    %cst = arith.constant 0.000000e+00 : f32
    %0 = vector.broadcast %cst : f32 to vector<2x20x72xf32>
    %cst_0 = arith.constant 0.000000e+00 : f32
    %1 = vector.broadcast %cst_0 : f32 to vector<2x20x72xf32>
    %c0 = arith.constant 0 : index
    %c0_1 = arith.constant 0 : index
    %c0_2 = arith.constant 0 : index
    %2 = vector.load %arg1[%c0, %c0_1, %c0_2] : memref<2x20x72xf32, #tpu.memory_space<vmem>>, vector<2x1x72xf32>
    %c0_3 = arith.constant 0 : index
    %c0_4 = arith.constant 0 : index
    %c0_5 = arith.constant 0 : index
    %3 = vector.load %arg2[%c0_3, %c0_4, %c0_5] : memref<2x20x72xf32, #tpu.memory_space<vmem>>, vector<2x1x72xf32>
    %c0_6 = arith.constant 0 : index
    %c0_7 = arith.constant 0 : index
    %c0_8 = arith.constant 0 : index
    %4 = vector.load %arg3[%c0_6, %c0_7, %c0_8] : memref<20x20x72xf32, #tpu.memory_space<vmem>>, vector<1x20x72xf32>
    %c0_9 = arith.constant 0 : index
    %c0_10 = arith.constant 0 : index
    %c0_11 = arith.constant 0 : index
    %5 = vector.load %arg4[%c0_9, %c0_10, %c0_11] : memref<20x20x72xf32, #tpu.memory_space<vmem>>, vector<1x20x72xf32>
    %6 = vector.broadcast %2 : vector<2x1x72xf32> to vector<2x20x72xf32>
    %7 = vector.broadcast %4 : vector<1x20x72xf32> to vector<2x20x72xf32>
    %8 = arith.mulf %6, %7 : vector<2x20x72xf32>
    %9 = vector.broadcast %3 : vector<2x1x72xf32> to vector<2x20x72xf32>
    %10 = vector.broadcast %5 : vector<1x20x72xf32> to vector<2x20x72xf32>
    %11 = arith.mulf %9, %10 : vector<2x20x72xf32>
    %12 = arith.subf %8, %11 : vector<2x20x72xf32>
    %13 = arith.addf %0, %12 : vector<2x20x72xf32>
    %14 = vector.broadcast %2 : vector<2x1x72xf32> to vector<2x20x72xf32>
    %15 = vector.broadcast %5 : vector<1x20x72xf32> to vector<2x20x72xf32>
    %16 = arith.mulf %14, %15 : vector<2x20x72xf32>
    %17 = vector.broadcast %3 : vector<2x1x72xf32> to vector<2x20x72xf32>
    %18 = vector.broadcast %4 : vector<1x20x72xf32> to vector<2x20x72xf32>
    %19 = arith.mulf %17, %18 : vector<2x20x72xf32>
    %20 = arith.addf %16, %19 : vector<2x20x72xf32>
    %21 = arith.addf %1, %20 : vector<2x20x72xf32>
    %c0_12 = arith.constant 0 : index
    %c1 = arith.constant 1 : index
    %c0_13 = arith.constant 0 : index
    %22 = vector.load %arg1[%c0_12, %c1, %c0_13] : memref<2x20x72xf32, #tpu.memory_space<vmem>>, vector<2x1x72xf32>
    %c0_14 = arith.constant 0 : index
    %c1_15 = arith.constant 1 : index
    %c0_16 = arith.constant 0 : index
    %23 = vector.load %arg2[%c0_14, %c1_15, %c0_16] : memref<2x20x72xf32, #tpu.memory_space<vmem>>, vector<2x1x72xf32>
    %c1_17 = arith.constant 1 : index
    %c0_18 = arith.constant 0 : index
    %c0_19 = arith.constant 0 : index
    %24 = vector.load %arg3[%c1_17, %c0_18, %c0_19] : memref<20x20x72xf32, #tpu.memory_space<vmem>>, vector<1x20x72xf32>
    %c1_20 = arith.constant 1 : index
    %c0_21 = arith.constant 0 : index
    %c0_22 = arith.constant 0 : index
    %25 = vector.load %arg4[%c1_20, %c0_21, %c0_22] : memref<20x20x72xf32, #tpu.memory_space<vmem>>, vector<1x20x72xf32>
    %26 = vector.broadcast %22 : vector<2x1x72xf32> to vector<2x20x72xf32>
    %27 = vector.broadcast %24 : vector<1x20x72xf32> to vector<2x20x72xf32>
    %28 = arith.mulf %26, %27 : vector<2x20x72xf32>
    %29 = vector.broadcast %23 : vector<2x1x72xf32> to vector<2x20x72xf32>
    %30 = vector.broadcast %25 : vector<1x20x72xf32> to vector<2x20x72xf32>
    %31 = arith.mulf %29, %30 : vector<2x20x72xf32>
    %32 = arith.subf %28, %31 : vector<2x20x72xf32>
    %33 = arith.addf %13, %32 : vector<2x20x72xf32>
    %34 = vector.broadcast %22 : vector<2x1x72xf32> to vector<2x20x72xf32>
    %35 = vector.broadcast %25 : vector<1x20x72xf32> to vector<2x20x72xf32>
    %36 = arith.mulf %34, %35 : vector<2x20x72xf32>
    %37 = vector.broadcast %23 : vector<2x1x72xf32> to vector<2x20x72xf32>
    %38 = vector.broadcast %24 : vector<1x20x72xf32> to vector<2x20x72xf32>
    %39 = arith.mulf %37, %38 : vector<2x20x72xf32>
    %40 = arith.addf %36, %39 : vector<2x20x72xf32>
    %41 = arith.addf %21, %40 : vector<2x20x72xf32>
    %c0_23 = arith.constant 0 : index
    %c2 = arith.constant 2 : index
    %c0_24 = arith.constant 0 : index
    %42 = vector.load %arg1[%c0_23, %c2, %c0_24] : memref<2x20x72xf32, #tpu.memory_space<vmem>>, vector<2x1x72xf32>
    %c0_25 = arith.constant 0 : index
    %c2_26 = arith.constant 2 : index
    %c0_27 = arith.constant 0 : index
    %43 = vector.load %arg2[%c0_25, %c2_26, %c0_27] : memref<2x20x72xf32, #tpu.memory_space<vmem>>, vector<2x1x72xf32>
    %c2_28 = arith.constant 2 : index
    %c0_29 = arith.constant 0 : index
    %c0_30 = arith.constant 0 : index
    %44 = vector.load %arg3[%c2_28, %c0_29, %c0_30] : memref<20x20x72xf32, #tpu.memory_space<vmem>>, vector<1x20x72xf32>
    %c2_31 = arith.constant 2 : index
    %c0_32 = arith.constant 0 : index
    %c0_33 = arith.constant 0 : index
    %45 = vector.load %arg4[%c2_31, %c0_32, %c0_33] : memref<20x20x72xf32, #tpu.memory_space<vmem>>, vector<1x20x72xf32>
    %46 = vector.broadcast %42 : vector<2x1x72xf32> to vector<2x20x72xf32>
    %47 = vector.broadcast %44 : vector<1x20x72xf32> to vector<2x20x72xf32>
    %48 = arith.mulf %46, %47 : vector<2x20x72xf32>
    %49 = vector.broadcast %43 : vector<2x1x72xf32> to vector<2x20x72xf32>
    %50 = vector.broadcast %45 : vector<1x20x72xf32> to vector<2x20x72xf32>
    %51 = arith.mulf %49, %50 : vector<2x20x72xf32>
    %52 = arith.subf %48, %51 : vector<2x20x72xf32>
    %53 = arith.addf %33, %52 : vector<2x20x72xf32>
    %54 = vector.broadcast %42 : vector<2x1x72xf32> to vector<2x20x72xf32>
    %55 = vector.broadcast %45 : vector<1x20x72xf32> to vector<2x20x72xf32>
    %56 = arith.mulf %54, %55 : vector<2x20x72xf32>
    %57 = vector.broadcast %43 : vector<2x1x72xf32> to vector<2x20x72xf32>
    %58 = vector.broadcast %44 : vector<1x20x72xf32> to vector<2x20x72xf32>
    %59 = arith.mulf %57, %58 : vector<2x20x72xf32>
    %60 = arith.addf %56, %59 : vector<2x20x72xf32>
    %61 = arith.addf %41, %60 : vector<2x20x72xf32>
    %c0_34 = arith.constant 0 : index
    %c3 = arith.constant 3 : index
    %c0_35 = arith.constant 0 : index
    %62 = vector.load %arg1[%c0_34, %c3, %c0_35] : memref<2x20x72xf32, #tpu.memory_space<vmem>>, vector<2x1x72xf32>
    %c0_36 = arith.constant 0 : index
    %c3_37 = arith.constant 3 : index
    %c0_38 = arith.constant 0 : index
    %63 = vector.load %arg2[%c0_36, %c3_37, %c0_38] : memref<2x20x72xf32, #tpu.memory_space<vmem>>, vector<2x1x72xf32>
    %c3_39 = arith.constant 3 : index
    %c0_40 = arith.constant 0 : index
    %c0_41 = arith.constant 0 : index
    %64 = vector.load %arg3[%c3_39, %c0_40, %c0_41] : memref<20x20x72xf32, #tpu.memory_space<vmem>>, vector<1x20x72xf32>
    %c3_42 = arith.constant 3 : index
    %c0_43 = arith.constant 0 : index
    %c0_44 = arith.constant 0 : index
    %65 = vector.load %arg4[%c3_42, %c0_43, %c0_44] : memref<20x20x72xf32, #tpu.memory_space<vmem>>, vector<1x20x72xf32>
    %66 = vector.broadcast %62 : vector<2x1x72xf32> to vector<2x20x72xf32>
    %67 = vector.broadcast %64 : vector<1x20x72xf32> to vector<2x20x72xf32>
    %68 = arith.mulf %66, %67 : vector<2x20x72xf32>
    %69 = vector.broadcast %63 : vector<2x1x72xf32> to vector<2x20x72xf32>
    %70 = vector.broadcast %65 : vector<1x20x72xf32> to vector<2x20x72xf32>
    %71 = arith.mulf %69, %70 : vector<2x20x72xf32>
    %72 = arith.subf %68, %71 : vector<2x20x72xf32>
    %73 = arith.addf %53, %72 : vector<2x20x72xf32>
    %74 = vector.broadcast %62 : vector<2x1x72xf32> to vector<2x20x72xf32>
    %75 = vector.broadcast %65 : vector<1x20x72xf32> to vector<2x20x72xf32>
    %76 = arith.mulf %74, %75 : vector<2x20x72xf32>
    %77 = vector.broadcast %63 : vector<2x1x72xf32> to vector<2x20x72xf32>
    %78 = vector.broadcast %64 : vector<1x20x72xf32> to vector<2x20x72xf32>
    %79 = arith.mulf %77, %78 : vector<2x20x72xf32>
    %80 = arith.addf %76, %79 : vector<2x20x72xf32>
    %81 = arith.addf %61, %80 : vector<2x20x72xf32>
    %c0_45 = arith.constant 0 : index
    %c4 = arith.constant 4 : index
    %c0_46 = arith.constant 0 : index
    %82 = vector.load %arg1[%c0_45, %c4, %c0_46] : memref<2x20x72xf32, #tpu.memory_space<vmem>>, vector<2x1x72xf32>
    %c0_47 = arith.constant 0 : index
    %c4_48 = arith.constant 4 : index
    %c0_49 = arith.constant 0 : index
    %83 = vector.load %arg2[%c0_47, %c4_48, %c0_49] : memref<2x20x72xf32, #tpu.memory_space<vmem>>, vector<2x1x72xf32>
    %c4_50 = arith.constant 4 : index
    %c0_51 = arith.constant 0 : index
    %c0_52 = arith.constant 0 : index
    %84 = vector.load %arg3[%c4_50, %c0_51, %c0_52] : memref<20x20x72xf32, #tpu.memory_space<vmem>>, vector<1x20x72xf32>
    %c4_53 = arith.constant 4 : index
    %c0_54 = arith.constant 0 : index
    %c0_55 = arith.constant 0 : index
    %85 = vector.load %arg4[%c4_53, %c0_54, %c0_55] : memref<20x20x72xf32, #tpu.memory_space<vmem>>, vector<1x20x72xf32>
    %86 = vector.broadcast %82 : vector<2x1x72xf32> to vector<2x20x72xf32>
    %87 = vector.broadcast %84 : vector<1x20x72xf32> to vector<2x20x72xf32>
    %88 = arith.mulf %86, %87 : vector<2x20x72xf32>
    %89 = vector.broadcast %83 : vector<2x1x72xf32> to vector<2x20x72xf32>
    %90 = vector.broadcast %85 : vector<1x20x72xf32> to vector<2x20x72xf32>
    %91 = arith.mulf %89, %90 : vector<2x20x72xf32>
    %92 = arith.subf %88, %91 : vector<2x20x72xf32>
    %93 = arith.addf %73, %92 : vector<2x20x72xf32>
    %94 = vector.broadcast %82 : vector<2x1x72xf32> to vector<2x20x72xf32>
    %95 = vector.broadcast %85 : vector<1x20x72xf32> to vector<2x20x72xf32>
    %96 = arith.mulf %94, %95 : vector<2x20x72xf32>
    %97 = vector.broadcast %83 : vector<2x1x72xf32> to vector<2x20x72xf32>
    %98 = vector.broadcast %84 : vector<1x20x72xf32> to vector<2x20x72xf32>
    %99 = arith.mulf %97, %98 : vector<2x20x72xf32>
    %100 = arith.addf %96, %99 : vector<2x20x72xf32>
    %101 = arith.addf %81, %100 : vector<2x20x72xf32>
    %c0_56 = arith.constant 0 : index
    %c5 = arith.constant 5 : index
    %c0_57 = arith.constant 0 : index
    %102 = vector.load %arg1[%c0_56, %c5, %c0_57] : memref<2x20x72xf32, #tpu.memory_space<vmem>>, vector<2x1x72xf32>
    %c0_58 = arith.constant 0 : index
    %c5_59 = arith.constant 5 : index
    %c0_60 = arith.constant 0 : index
    %103 = vector.load %arg2[%c0_58, %c5_59, %c0_60] : memref<2x20x72xf32, #tpu.memory_space<vmem>>, vector<2x1x72xf32>
    %c5_61 = arith.constant 5 : index
    %c0_62 = arith.constant 0 : index
    %c0_63 = arith.constant 0 : index
    %104 = vector.load %arg3[%c5_61, %c0_62, %c0_63] : memref<20x20x72xf32, #tpu.memory_space<vmem>>, vector<1x20x72xf32>
    %c5_64 = arith.constant 5 : index
    %c0_65 = arith.constant 0 : index
    %c0_66 = arith.constant 0 : index
    %105 = vector.load %arg4[%c5_64, %c0_65, %c0_66] : memref<20x20x72xf32, #tpu.memory_space<vmem>>, vector<1x20x72xf32>
    %106 = vector.broadcast %102 : vector<2x1x72xf32> to vector<2x20x72xf32>
    %107 = vector.broadcast %104 : vector<1x20x72xf32> to vector<2x20x72xf32>
    %108 = arith.mulf %106, %107 : vector<2x20x72xf32>
    %109 = vector.broadcast %103 : vector<2x1x72xf32> to vector<2x20x72xf32>
    %110 = vector.broadcast %105 : vector<1x20x72xf32> to vector<2x20x72xf32>
    %111 = arith.mulf %109, %110 : vector<2x20x72xf32>
    %112 = arith.subf %108, %111 : vector<2x20x72xf32>
    %113 = arith.addf %93, %112 : vector<2x20x72xf32>
    %114 = vector.broadcast %102 : vector<2x1x72xf32> to vector<2x20x72xf32>
    %115 = vector.broadcast %105 : vector<1x20x72xf32> to vector<2x20x72xf32>
    %116 = arith.mulf %114, %115 : vector<2x20x72xf32>
    %117 = vector.broadcast %103 : vector<2x1x72xf32> to vector<2x20x72xf32>
    %118 = vector.broadcast %104 : vector<1x20x72xf32> to vector<2x20x72xf32>
    %119 = arith.mulf %117, %118 : vector<2x20x72xf32>
    %120 = arith.addf %116, %119 : vector<2x20x72xf32>
    %121 = arith.addf %101, %120 : vector<2x20x72xf32>
    %c0_67 = arith.constant 0 : index
    %c6 = arith.constant 6 : index
    %c0_68 = arith.constant 0 : index
    %122 = vector.load %arg1[%c0_67, %c6, %c0_68] : memref<2x20x72xf32, #tpu.memory_space<vmem>>, vector<2x1x72xf32>
    %c0_69 = arith.constant 0 : index
    %c6_70 = arith.constant 6 : index
    %c0_71 = arith.constant 0 : index
    %123 = vector.load %arg2[%c0_69, %c6_70, %c0_71] : memref<2x20x72xf32, #tpu.memory_space<vmem>>, vector<2x1x72xf32>
    %c6_72 = arith.constant 6 : index
    %c0_73 = arith.constant 0 : index
    %c0_74 = arith.constant 0 : index
    %124 = vector.load %arg3[%c6_72, %c0_73, %c0_74] : memref<20x20x72xf32, #tpu.memory_space<vmem>>, vector<1x20x72xf32>
    %c6_75 = arith.constant 6 : index
    %c0_76 = arith.constant 0 : index
    %c0_77 = arith.constant 0 : index
    %125 = vector.load %arg4[%c6_75, %c0_76, %c0_77] : memref<20x20x72xf32, #tpu.memory_space<vmem>>, vector<1x20x72xf32>
    %126 = vector.broadcast %122 : vector<2x1x72xf32> to vector<2x20x72xf32>
    %127 = vector.broadcast %124 : vector<1x20x72xf32> to vector<2x20x72xf32>
    %128 = arith.mulf %126, %127 : vector<2x20x72xf32>
    %129 = vector.broadcast %123 : vector<2x1x72xf32> to vector<2x20x72xf32>
    %130 = vector.broadcast %125 : vector<1x20x72xf32> to vector<2x20x72xf32>
    %131 = arith.mulf %129, %130 : vector<2x20x72xf32>
    %132 = arith.subf %128, %131 : vector<2x20x72xf32>
    %133 = arith.addf %113, %132 : vector<2x20x72xf32>
    %134 = vector.broadcast %122 : vector<2x1x72xf32> to vector<2x20x72xf32>
    %135 = vector.broadcast %125 : vector<1x20x72xf32> to vector<2x20x72xf32>
    %136 = arith.mulf %134, %135 : vector<2x20x72xf32>
    %137 = vector.broadcast %123 : vector<2x1x72xf32> to vector<2x20x72xf32>
    %138 = vector.broadcast %124 : vector<1x20x72xf32> to vector<2x20x72xf32>
    %139 = arith.mulf %137, %138 : vector<2x20x72xf32>
    %140 = arith.addf %136, %139 : vector<2x20x72xf32>
    %141 = arith.addf %121, %140 : vector<2x20x72xf32>
    %c0_78 = arith.constant 0 : index
    %c7 = arith.constant 7 : index
    %c0_79 = arith.constant 0 : index
    %142 = vector.load %arg1[%c0_78, %c7, %c0_79] : memref<2x20x72xf32, #tpu.memory_space<vmem>>, vector<2x1x72xf32>
    %c0_80 = arith.constant 0 : index
    %c7_81 = arith.constant 7 : index
    %c0_82 = arith.constant 0 : index
    %143 = vector.load %arg2[%c0_80, %c7_81, %c0_82] : memref<2x20x72xf32, #tpu.memory_space<vmem>>, vector<2x1x72xf32>
    %c7_83 = arith.constant 7 : index
    %c0_84 = arith.constant 0 : index
    %c0_85 = arith.constant 0 : index
    %144 = vector.load %arg3[%c7_83, %c0_84, %c0_85] : memref<20x20x72xf32, #tpu.memory_space<vmem>>, vector<1x20x72xf32>
    %c7_86 = arith.constant 7 : index
    %c0_87 = arith.constant 0 : index
    %c0_88 = arith.constant 0 : index
    %145 = vector.load %arg4[%c7_86, %c0_87, %c0_88] : memref<20x20x72xf32, #tpu.memory_space<vmem>>, vector<1x20x72xf32>
    %146 = vector.broadcast %142 : vector<2x1x72xf32> to vector<2x20x72xf32>
    %147 = vector.broadcast %144 : vector<1x20x72xf32> to vector<2x20x72xf32>
    %148 = arith.mulf %146, %147 : vector<2x20x72xf32>
    %149 = vector.broadcast %143 : vector<2x1x72xf32> to vector<2x20x72xf32>
    %150 = vector.broadcast %145 : vector<1x20x72xf32> to vector<2x20x72xf32>
    %151 = arith.mulf %149, %150 : vector<2x20x72xf32>
    %152 = arith.subf %148, %151 : vector<2x20x72xf32>
    %153 = arith.addf %133, %152 : vector<2x20x72xf32>
    %154 = vector.broadcast %142 : vector<2x1x72xf32> to vector<2x20x72xf32>
    %155 = vector.broadcast %145 : vector<1x20x72xf32> to vector<2x20x72xf32>
    %156 = arith.mulf %154, %155 : vector<2x20x72xf32>
    %157 = vector.broadcast %143 : vector<2x1x72xf32> to vector<2x20x72xf32>
    %158 = vector.broadcast %144 : vector<1x20x72xf32> to vector<2x20x72xf32>
    %159 = arith.mulf %157, %158 : vector<2x20x72xf32>
    %160 = arith.addf %156, %159 : vector<2x20x72xf32>
    %161 = arith.addf %141, %160 : vector<2x20x72xf32>
    %c0_89 = arith.constant 0 : index
    %c8 = arith.constant 8 : index
    %c0_90 = arith.constant 0 : index
    %162 = vector.load %arg1[%c0_89, %c8, %c0_90] : memref<2x20x72xf32, #tpu.memory_space<vmem>>, vector<2x1x72xf32>
    %c0_91 = arith.constant 0 : index
    %c8_92 = arith.constant 8 : index
    %c0_93 = arith.constant 0 : index
    %163 = vector.load %arg2[%c0_91, %c8_92, %c0_93] : memref<2x20x72xf32, #tpu.memory_space<vmem>>, vector<2x1x72xf32>
    %c8_94 = arith.constant 8 : index
    %c0_95 = arith.constant 0 : index
    %c0_96 = arith.constant 0 : index
    %164 = vector.load %arg3[%c8_94, %c0_95, %c0_96] : memref<20x20x72xf32, #tpu.memory_space<vmem>>, vector<1x20x72xf32>
    %c8_97 = arith.constant 8 : index
    %c0_98 = arith.constant 0 : index
    %c0_99 = arith.constant 0 : index
    %165 = vector.load %arg4[%c8_97, %c0_98, %c0_99] : memref<20x20x72xf32, #tpu.memory_space<vmem>>, vector<1x20x72xf32>
    %166 = vector.broadcast %162 : vector<2x1x72xf32> to vector<2x20x72xf32>
    %167 = vector.broadcast %164 : vector<1x20x72xf32> to vector<2x20x72xf32>
    %168 = arith.mulf %166, %167 : vector<2x20x72xf32>
    %169 = vector.broadcast %163 : vector<2x1x72xf32> to vector<2x20x72xf32>
    %170 = vector.broadcast %165 : vector<1x20x72xf32> to vector<2x20x72xf32>
    %171 = arith.mulf %169, %170 : vector<2x20x72xf32>
    %172 = arith.subf %168, %171 : vector<2x20x72xf32>
    %173 = arith.addf %153, %172 : vector<2x20x72xf32>
    %174 = vector.broadcast %162 : vector<2x1x72xf32> to vector<2x20x72xf32>
    %175 = vector.broadcast %165 : vector<1x20x72xf32> to vector<2x20x72xf32>
    %176 = arith.mulf %174, %175 : vector<2x20x72xf32>
    %177 = vector.broadcast %163 : vector<2x1x72xf32> to vector<2x20x72xf32>
    %178 = vector.broadcast %164 : vector<1x20x72xf32> to vector<2x20x72xf32>
    %179 = arith.mulf %177, %178 : vector<2x20x72xf32>
    %180 = arith.addf %176, %179 : vector<2x20x72xf32>
    %181 = arith.addf %161, %180 : vector<2x20x72xf32>
    %c0_100 = arith.constant 0 : index
    %c9 = arith.constant 9 : index
    %c0_101 = arith.constant 0 : index
    %182 = vector.load %arg1[%c0_100, %c9, %c0_101] : memref<2x20x72xf32, #tpu.memory_space<vmem>>, vector<2x1x72xf32>
    %c0_102 = arith.constant 0 : index
    %c9_103 = arith.constant 9 : index
    %c0_104 = arith.constant 0 : index
    %183 = vector.load %arg2[%c0_102, %c9_103, %c0_104] : memref<2x20x72xf32, #tpu.memory_space<vmem>>, vector<2x1x72xf32>
    %c9_105 = arith.constant 9 : index
    %c0_106 = arith.constant 0 : index
    %c0_107 = arith.constant 0 : index
    %184 = vector.load %arg3[%c9_105, %c0_106, %c0_107] : memref<20x20x72xf32, #tpu.memory_space<vmem>>, vector<1x20x72xf32>
    %c9_108 = arith.constant 9 : index
    %c0_109 = arith.constant 0 : index
    %c0_110 = arith.constant 0 : index
    %185 = vector.load %arg4[%c9_108, %c0_109, %c0_110] : memref<20x20x72xf32, #tpu.memory_space<vmem>>, vector<1x20x72xf32>
    %186 = vector.broadcast %182 : vector<2x1x72xf32> to vector<2x20x72xf32>
    %187 = vector.broadcast %184 : vector<1x20x72xf32> to vector<2x20x72xf32>
    %188 = arith.mulf %186, %187 : vector<2x20x72xf32>
    %189 = vector.broadcast %183 : vector<2x1x72xf32> to vector<2x20x72xf32>
    %190 = vector.broadcast %185 : vector<1x20x72xf32> to vector<2x20x72xf32>
    %191 = arith.mulf %189, %190 : vector<2x20x72xf32>
    %192 = arith.subf %188, %191 : vector<2x20x72xf32>
    %193 = arith.addf %173, %192 : vector<2x20x72xf32>
    %194 = vector.broadcast %182 : vector<2x1x72xf32> to vector<2x20x72xf32>
    %195 = vector.broadcast %185 : vector<1x20x72xf32> to vector<2x20x72xf32>
    %196 = arith.mulf %194, %195 : vector<2x20x72xf32>
    %197 = vector.broadcast %183 : vector<2x1x72xf32> to vector<2x20x72xf32>
    %198 = vector.broadcast %184 : vector<1x20x72xf32> to vector<2x20x72xf32>
    %199 = arith.mulf %197, %198 : vector<2x20x72xf32>
    %200 = arith.addf %196, %199 : vector<2x20x72xf32>
    %201 = arith.addf %181, %200 : vector<2x20x72xf32>
    %c0_111 = arith.constant 0 : index
    %c10 = arith.constant 10 : index
    %c0_112 = arith.constant 0 : index
    %202 = vector.load %arg1[%c0_111, %c10, %c0_112] : memref<2x20x72xf32, #tpu.memory_space<vmem>>, vector<2x1x72xf32>
    %c0_113 = arith.constant 0 : index
    %c10_114 = arith.constant 10 : index
    %c0_115 = arith.constant 0 : index
    %203 = vector.load %arg2[%c0_113, %c10_114, %c0_115] : memref<2x20x72xf32, #tpu.memory_space<vmem>>, vector<2x1x72xf32>
    %c10_116 = arith.constant 10 : index
    %c0_117 = arith.constant 0 : index
    %c0_118 = arith.constant 0 : index
    %204 = vector.load %arg3[%c10_116, %c0_117, %c0_118] : memref<20x20x72xf32, #tpu.memory_space<vmem>>, vector<1x20x72xf32>
    %c10_119 = arith.constant 10 : index
    %c0_120 = arith.constant 0 : index
    %c0_121 = arith.constant 0 : index
    %205 = vector.load %arg4[%c10_119, %c0_120, %c0_121] : memref<20x20x72xf32, #tpu.memory_space<vmem>>, vector<1x20x72xf32>
    %206 = vector.broadcast %202 : vector<2x1x72xf32> to vector<2x20x72xf32>
    %207 = vector.broadcast %204 : vector<1x20x72xf32> to vector<2x20x72xf32>
    %208 = arith.mulf %206, %207 : vector<2x20x72xf32>
    %209 = vector.broadcast %203 : vector<2x1x72xf32> to vector<2x20x72xf32>
    %210 = vector.broadcast %205 : vector<1x20x72xf32> to vector<2x20x72xf32>
    %211 = arith.mulf %209, %210 : vector<2x20x72xf32>
    %212 = arith.subf %208, %211 : vector<2x20x72xf32>
    %213 = arith.addf %193, %212 : vector<2x20x72xf32>
    %214 = vector.broadcast %202 : vector<2x1x72xf32> to vector<2x20x72xf32>
    %215 = vector.broadcast %205 : vector<1x20x72xf32> to vector<2x20x72xf32>
    %216 = arith.mulf %214, %215 : vector<2x20x72xf32>
    %217 = vector.broadcast %203 : vector<2x1x72xf32> to vector<2x20x72xf32>
    %218 = vector.broadcast %204 : vector<1x20x72xf32> to vector<2x20x72xf32>
    %219 = arith.mulf %217, %218 : vector<2x20x72xf32>
    %220 = arith.addf %216, %219 : vector<2x20x72xf32>
    %221 = arith.addf %201, %220 : vector<2x20x72xf32>
    %c0_122 = arith.constant 0 : index
    %c11 = arith.constant 11 : index
    %c0_123 = arith.constant 0 : index
    %222 = vector.load %arg1[%c0_122, %c11, %c0_123] : memref<2x20x72xf32, #tpu.memory_space<vmem>>, vector<2x1x72xf32>
    %c0_124 = arith.constant 0 : index
    %c11_125 = arith.constant 11 : index
    %c0_126 = arith.constant 0 : index
    %223 = vector.load %arg2[%c0_124, %c11_125, %c0_126] : memref<2x20x72xf32, #tpu.memory_space<vmem>>, vector<2x1x72xf32>
    %c11_127 = arith.constant 11 : index
    %c0_128 = arith.constant 0 : index
    %c0_129 = arith.constant 0 : index
    %224 = vector.load %arg3[%c11_127, %c0_128, %c0_129] : memref<20x20x72xf32, #tpu.memory_space<vmem>>, vector<1x20x72xf32>
    %c11_130 = arith.constant 11 : index
    %c0_131 = arith.constant 0 : index
    %c0_132 = arith.constant 0 : index
    %225 = vector.load %arg4[%c11_130, %c0_131, %c0_132] : memref<20x20x72xf32, #tpu.memory_space<vmem>>, vector<1x20x72xf32>
    %226 = vector.broadcast %222 : vector<2x1x72xf32> to vector<2x20x72xf32>
    %227 = vector.broadcast %224 : vector<1x20x72xf32> to vector<2x20x72xf32>
    %228 = arith.mulf %226, %227 : vector<2x20x72xf32>
    %229 = vector.broadcast %223 : vector<2x1x72xf32> to vector<2x20x72xf32>
    %230 = vector.broadcast %225 : vector<1x20x72xf32> to vector<2x20x72xf32>
    %231 = arith.mulf %229, %230 : vector<2x20x72xf32>
    %232 = arith.subf %228, %231 : vector<2x20x72xf32>
    %233 = arith.addf %213, %232 : vector<2x20x72xf32>
    %234 = vector.broadcast %222 : vector<2x1x72xf32> to vector<2x20x72xf32>
    %235 = vector.broadcast %225 : vector<1x20x72xf32> to vector<2x20x72xf32>
    %236 = arith.mulf %234, %235 : vector<2x20x72xf32>
    %237 = vector.broadcast %223 : vector<2x1x72xf32> to vector<2x20x72xf32>
    %238 = vector.broadcast %224 : vector<1x20x72xf32> to vector<2x20x72xf32>
    %239 = arith.mulf %237, %238 : vector<2x20x72xf32>
    %240 = arith.addf %236, %239 : vector<2x20x72xf32>
    %241 = arith.addf %221, %240 : vector<2x20x72xf32>
    %c0_133 = arith.constant 0 : index
    %c12 = arith.constant 12 : index
    %c0_134 = arith.constant 0 : index
    %242 = vector.load %arg1[%c0_133, %c12, %c0_134] : memref<2x20x72xf32, #tpu.memory_space<vmem>>, vector<2x1x72xf32>
    %c0_135 = arith.constant 0 : index
    %c12_136 = arith.constant 12 : index
    %c0_137 = arith.constant 0 : index
    %243 = vector.load %arg2[%c0_135, %c12_136, %c0_137] : memref<2x20x72xf32, #tpu.memory_space<vmem>>, vector<2x1x72xf32>
    %c12_138 = arith.constant 12 : index
    %c0_139 = arith.constant 0 : index
    %c0_140 = arith.constant 0 : index
    %244 = vector.load %arg3[%c12_138, %c0_139, %c0_140] : memref<20x20x72xf32, #tpu.memory_space<vmem>>, vector<1x20x72xf32>
    %c12_141 = arith.constant 12 : index
    %c0_142 = arith.constant 0 : index
    %c0_143 = arith.constant 0 : index
    %245 = vector.load %arg4[%c12_141, %c0_142, %c0_143] : memref<20x20x72xf32, #tpu.memory_space<vmem>>, vector<1x20x72xf32>
    %246 = vector.broadcast %242 : vector<2x1x72xf32> to vector<2x20x72xf32>
    %247 = vector.broadcast %244 : vector<1x20x72xf32> to vector<2x20x72xf32>
    %248 = arith.mulf %246, %247 : vector<2x20x72xf32>
    %249 = vector.broadcast %243 : vector<2x1x72xf32> to vector<2x20x72xf32>
    %250 = vector.broadcast %245 : vector<1x20x72xf32> to vector<2x20x72xf32>
    %251 = arith.mulf %249, %250 : vector<2x20x72xf32>
    %252 = arith.subf %248, %251 : vector<2x20x72xf32>
    %253 = arith.addf %233, %252 : vector<2x20x72xf32>
    %254 = vector.broadcast %242 : vector<2x1x72xf32> to vector<2x20x72xf32>
    %255 = vector.broadcast %245 : vector<1x20x72xf32> to vector<2x20x72xf32>
    %256 = arith.mulf %254, %255 : vector<2x20x72xf32>
    %257 = vector.broadcast %243 : vector<2x1x72xf32> to vector<2x20x72xf32>
    %258 = vector.broadcast %244 : vector<1x20x72xf32> to vector<2x20x72xf32>
    %259 = arith.mulf %257, %258 : vector<2x20x72xf32>
    %260 = arith.addf %256, %259 : vector<2x20x72xf32>
    %261 = arith.addf %241, %260 : vector<2x20x72xf32>
    %c0_144 = arith.constant 0 : index
    %c13 = arith.constant 13 : index
    %c0_145 = arith.constant 0 : index
    %262 = vector.load %arg1[%c0_144, %c13, %c0_145] : memref<2x20x72xf32, #tpu.memory_space<vmem>>, vector<2x1x72xf32>
    %c0_146 = arith.constant 0 : index
    %c13_147 = arith.constant 13 : index
    %c0_148 = arith.constant 0 : index
    %263 = vector.load %arg2[%c0_146, %c13_147, %c0_148] : memref<2x20x72xf32, #tpu.memory_space<vmem>>, vector<2x1x72xf32>
    %c13_149 = arith.constant 13 : index
    %c0_150 = arith.constant 0 : index
    %c0_151 = arith.constant 0 : index
    %264 = vector.load %arg3[%c13_149, %c0_150, %c0_151] : memref<20x20x72xf32, #tpu.memory_space<vmem>>, vector<1x20x72xf32>
    %c13_152 = arith.constant 13 : index
    %c0_153 = arith.constant 0 : index
    %c0_154 = arith.constant 0 : index
    %265 = vector.load %arg4[%c13_152, %c0_153, %c0_154] : memref<20x20x72xf32, #tpu.memory_space<vmem>>, vector<1x20x72xf32>
    %266 = vector.broadcast %262 : vector<2x1x72xf32> to vector<2x20x72xf32>
    %267 = vector.broadcast %264 : vector<1x20x72xf32> to vector<2x20x72xf32>
    %268 = arith.mulf %266, %267 : vector<2x20x72xf32>
    %269 = vector.broadcast %263 : vector<2x1x72xf32> to vector<2x20x72xf32>
    %270 = vector.broadcast %265 : vector<1x20x72xf32> to vector<2x20x72xf32>
    %271 = arith.mulf %269, %270 : vector<2x20x72xf32>
    %272 = arith.subf %268, %271 : vector<2x20x72xf32>
    %273 = arith.addf %253, %272 : vector<2x20x72xf32>
    %274 = vector.broadcast %262 : vector<2x1x72xf32> to vector<2x20x72xf32>
    %275 = vector.broadcast %265 : vector<1x20x72xf32> to vector<2x20x72xf32>
    %276 = arith.mulf %274, %275 : vector<2x20x72xf32>
    %277 = vector.broadcast %263 : vector<2x1x72xf32> to vector<2x20x72xf32>
    %278 = vector.broadcast %264 : vector<1x20x72xf32> to vector<2x20x72xf32>
    %279 = arith.mulf %277, %278 : vector<2x20x72xf32>
    %280 = arith.addf %276, %279 : vector<2x20x72xf32>
    %281 = arith.addf %261, %280 : vector<2x20x72xf32>
    %c0_155 = arith.constant 0 : index
    %c14 = arith.constant 14 : index
    %c0_156 = arith.constant 0 : index
    %282 = vector.load %arg1[%c0_155, %c14, %c0_156] : memref<2x20x72xf32, #tpu.memory_space<vmem>>, vector<2x1x72xf32>
    %c0_157 = arith.constant 0 : index
    %c14_158 = arith.constant 14 : index
    %c0_159 = arith.constant 0 : index
    %283 = vector.load %arg2[%c0_157, %c14_158, %c0_159] : memref<2x20x72xf32, #tpu.memory_space<vmem>>, vector<2x1x72xf32>
    %c14_160 = arith.constant 14 : index
    %c0_161 = arith.constant 0 : index
    %c0_162 = arith.constant 0 : index
    %284 = vector.load %arg3[%c14_160, %c0_161, %c0_162] : memref<20x20x72xf32, #tpu.memory_space<vmem>>, vector<1x20x72xf32>
    %c14_163 = arith.constant 14 : index
    %c0_164 = arith.constant 0 : index
    %c0_165 = arith.constant 0 : index
    %285 = vector.load %arg4[%c14_163, %c0_164, %c0_165] : memref<20x20x72xf32, #tpu.memory_space<vmem>>, vector<1x20x72xf32>
    %286 = vector.broadcast %282 : vector<2x1x72xf32> to vector<2x20x72xf32>
    %287 = vector.broadcast %284 : vector<1x20x72xf32> to vector<2x20x72xf32>
    %288 = arith.mulf %286, %287 : vector<2x20x72xf32>
    %289 = vector.broadcast %283 : vector<2x1x72xf32> to vector<2x20x72xf32>
    %290 = vector.broadcast %285 : vector<1x20x72xf32> to vector<2x20x72xf32>
    %291 = arith.mulf %289, %290 : vector<2x20x72xf32>
    %292 = arith.subf %288, %291 : vector<2x20x72xf32>
    %293 = arith.addf %273, %292 : vector<2x20x72xf32>
    %294 = vector.broadcast %282 : vector<2x1x72xf32> to vector<2x20x72xf32>
    %295 = vector.broadcast %285 : vector<1x20x72xf32> to vector<2x20x72xf32>
    %296 = arith.mulf %294, %295 : vector<2x20x72xf32>
    %297 = vector.broadcast %283 : vector<2x1x72xf32> to vector<2x20x72xf32>
    %298 = vector.broadcast %284 : vector<1x20x72xf32> to vector<2x20x72xf32>
    %299 = arith.mulf %297, %298 : vector<2x20x72xf32>
    %300 = arith.addf %296, %299 : vector<2x20x72xf32>
    %301 = arith.addf %281, %300 : vector<2x20x72xf32>
    %c0_166 = arith.constant 0 : index
    %c15 = arith.constant 15 : index
    %c0_167 = arith.constant 0 : index
    %302 = vector.load %arg1[%c0_166, %c15, %c0_167] : memref<2x20x72xf32, #tpu.memory_space<vmem>>, vector<2x1x72xf32>
    %c0_168 = arith.constant 0 : index
    %c15_169 = arith.constant 15 : index
    %c0_170 = arith.constant 0 : index
    %303 = vector.load %arg2[%c0_168, %c15_169, %c0_170] : memref<2x20x72xf32, #tpu.memory_space<vmem>>, vector<2x1x72xf32>
    %c15_171 = arith.constant 15 : index
    %c0_172 = arith.constant 0 : index
    %c0_173 = arith.constant 0 : index
    %304 = vector.load %arg3[%c15_171, %c0_172, %c0_173] : memref<20x20x72xf32, #tpu.memory_space<vmem>>, vector<1x20x72xf32>
    %c15_174 = arith.constant 15 : index
    %c0_175 = arith.constant 0 : index
    %c0_176 = arith.constant 0 : index
    %305 = vector.load %arg4[%c15_174, %c0_175, %c0_176] : memref<20x20x72xf32, #tpu.memory_space<vmem>>, vector<1x20x72xf32>
    %306 = vector.broadcast %302 : vector<2x1x72xf32> to vector<2x20x72xf32>
    %307 = vector.broadcast %304 : vector<1x20x72xf32> to vector<2x20x72xf32>
    %308 = arith.mulf %306, %307 : vector<2x20x72xf32>
    %309 = vector.broadcast %303 : vector<2x1x72xf32> to vector<2x20x72xf32>
    %310 = vector.broadcast %305 : vector<1x20x72xf32> to vector<2x20x72xf32>
    %311 = arith.mulf %309, %310 : vector<2x20x72xf32>
    %312 = arith.subf %308, %311 : vector<2x20x72xf32>
    %313 = arith.addf %293, %312 : vector<2x20x72xf32>
    %314 = vector.broadcast %302 : vector<2x1x72xf32> to vector<2x20x72xf32>
    %315 = vector.broadcast %305 : vector<1x20x72xf32> to vector<2x20x72xf32>
    %316 = arith.mulf %314, %315 : vector<2x20x72xf32>
    %317 = vector.broadcast %303 : vector<2x1x72xf32> to vector<2x20x72xf32>
    %318 = vector.broadcast %304 : vector<1x20x72xf32> to vector<2x20x72xf32>
    %319 = arith.mulf %317, %318 : vector<2x20x72xf32>
    %320 = arith.addf %316, %319 : vector<2x20x72xf32>
    %321 = arith.addf %301, %320 : vector<2x20x72xf32>
    %c0_177 = arith.constant 0 : index
    %c16 = arith.constant 16 : index
    %c0_178 = arith.constant 0 : index
    %322 = vector.load %arg1[%c0_177, %c16, %c0_178] : memref<2x20x72xf32, #tpu.memory_space<vmem>>, vector<2x1x72xf32>
    %c0_179 = arith.constant 0 : index
    %c16_180 = arith.constant 16 : index
    %c0_181 = arith.constant 0 : index
    %323 = vector.load %arg2[%c0_179, %c16_180, %c0_181] : memref<2x20x72xf32, #tpu.memory_space<vmem>>, vector<2x1x72xf32>
    %c16_182 = arith.constant 16 : index
    %c0_183 = arith.constant 0 : index
    %c0_184 = arith.constant 0 : index
    %324 = vector.load %arg3[%c16_182, %c0_183, %c0_184] : memref<20x20x72xf32, #tpu.memory_space<vmem>>, vector<1x20x72xf32>
    %c16_185 = arith.constant 16 : index
    %c0_186 = arith.constant 0 : index
    %c0_187 = arith.constant 0 : index
    %325 = vector.load %arg4[%c16_185, %c0_186, %c0_187] : memref<20x20x72xf32, #tpu.memory_space<vmem>>, vector<1x20x72xf32>
    %326 = vector.broadcast %322 : vector<2x1x72xf32> to vector<2x20x72xf32>
    %327 = vector.broadcast %324 : vector<1x20x72xf32> to vector<2x20x72xf32>
    %328 = arith.mulf %326, %327 : vector<2x20x72xf32>
    %329 = vector.broadcast %323 : vector<2x1x72xf32> to vector<2x20x72xf32>
    %330 = vector.broadcast %325 : vector<1x20x72xf32> to vector<2x20x72xf32>
    %331 = arith.mulf %329, %330 : vector<2x20x72xf32>
    %332 = arith.subf %328, %331 : vector<2x20x72xf32>
    %333 = arith.addf %313, %332 : vector<2x20x72xf32>
    %334 = vector.broadcast %322 : vector<2x1x72xf32> to vector<2x20x72xf32>
    %335 = vector.broadcast %325 : vector<1x20x72xf32> to vector<2x20x72xf32>
    %336 = arith.mulf %334, %335 : vector<2x20x72xf32>
    %337 = vector.broadcast %323 : vector<2x1x72xf32> to vector<2x20x72xf32>
    %338 = vector.broadcast %324 : vector<1x20x72xf32> to vector<2x20x72xf32>
    %339 = arith.mulf %337, %338 : vector<2x20x72xf32>
    %340 = arith.addf %336, %339 : vector<2x20x72xf32>
    %341 = arith.addf %321, %340 : vector<2x20x72xf32>
    %c0_188 = arith.constant 0 : index
    %c17 = arith.constant 17 : index
    %c0_189 = arith.constant 0 : index
    %342 = vector.load %arg1[%c0_188, %c17, %c0_189] : memref<2x20x72xf32, #tpu.memory_space<vmem>>, vector<2x1x72xf32>
    %c0_190 = arith.constant 0 : index
    %c17_191 = arith.constant 17 : index
    %c0_192 = arith.constant 0 : index
    %343 = vector.load %arg2[%c0_190, %c17_191, %c0_192] : memref<2x20x72xf32, #tpu.memory_space<vmem>>, vector<2x1x72xf32>
    %c17_193 = arith.constant 17 : index
    %c0_194 = arith.constant 0 : index
    %c0_195 = arith.constant 0 : index
    %344 = vector.load %arg3[%c17_193, %c0_194, %c0_195] : memref<20x20x72xf32, #tpu.memory_space<vmem>>, vector<1x20x72xf32>
    %c17_196 = arith.constant 17 : index
    %c0_197 = arith.constant 0 : index
    %c0_198 = arith.constant 0 : index
    %345 = vector.load %arg4[%c17_196, %c0_197, %c0_198] : memref<20x20x72xf32, #tpu.memory_space<vmem>>, vector<1x20x72xf32>
    %346 = vector.broadcast %342 : vector<2x1x72xf32> to vector<2x20x72xf32>
    %347 = vector.broadcast %344 : vector<1x20x72xf32> to vector<2x20x72xf32>
    %348 = arith.mulf %346, %347 : vector<2x20x72xf32>
    %349 = vector.broadcast %343 : vector<2x1x72xf32> to vector<2x20x72xf32>
    %350 = vector.broadcast %345 : vector<1x20x72xf32> to vector<2x20x72xf32>
    %351 = arith.mulf %349, %350 : vector<2x20x72xf32>
    %352 = arith.subf %348, %351 : vector<2x20x72xf32>
    %353 = arith.addf %333, %352 : vector<2x20x72xf32>
    %354 = vector.broadcast %342 : vector<2x1x72xf32> to vector<2x20x72xf32>
    %355 = vector.broadcast %345 : vector<1x20x72xf32> to vector<2x20x72xf32>
    %356 = arith.mulf %354, %355 : vector<2x20x72xf32>
    %357 = vector.broadcast %343 : vector<2x1x72xf32> to vector<2x20x72xf32>
    %358 = vector.broadcast %344 : vector<1x20x72xf32> to vector<2x20x72xf32>
    %359 = arith.mulf %357, %358 : vector<2x20x72xf32>
    %360 = arith.addf %356, %359 : vector<2x20x72xf32>
    %361 = arith.addf %341, %360 : vector<2x20x72xf32>
    %c0_199 = arith.constant 0 : index
    %c18 = arith.constant 18 : index
    %c0_200 = arith.constant 0 : index
    %362 = vector.load %arg1[%c0_199, %c18, %c0_200] : memref<2x20x72xf32, #tpu.memory_space<vmem>>, vector<2x1x72xf32>
    %c0_201 = arith.constant 0 : index
    %c18_202 = arith.constant 18 : index
    %c0_203 = arith.constant 0 : index
    %363 = vector.load %arg2[%c0_201, %c18_202, %c0_203] : memref<2x20x72xf32, #tpu.memory_space<vmem>>, vector<2x1x72xf32>
    %c18_204 = arith.constant 18 : index
    %c0_205 = arith.constant 0 : index
    %c0_206 = arith.constant 0 : index
    %364 = vector.load %arg3[%c18_204, %c0_205, %c0_206] : memref<20x20x72xf32, #tpu.memory_space<vmem>>, vector<1x20x72xf32>
    %c18_207 = arith.constant 18 : index
    %c0_208 = arith.constant 0 : index
    %c0_209 = arith.constant 0 : index
    %365 = vector.load %arg4[%c18_207, %c0_208, %c0_209] : memref<20x20x72xf32, #tpu.memory_space<vmem>>, vector<1x20x72xf32>
    %366 = vector.broadcast %362 : vector<2x1x72xf32> to vector<2x20x72xf32>
    %367 = vector.broadcast %364 : vector<1x20x72xf32> to vector<2x20x72xf32>
    %368 = arith.mulf %366, %367 : vector<2x20x72xf32>
    %369 = vector.broadcast %363 : vector<2x1x72xf32> to vector<2x20x72xf32>
    %370 = vector.broadcast %365 : vector<1x20x72xf32> to vector<2x20x72xf32>
    %371 = arith.mulf %369, %370 : vector<2x20x72xf32>
    %372 = arith.subf %368, %371 : vector<2x20x72xf32>
    %373 = arith.addf %353, %372 : vector<2x20x72xf32>
    %374 = vector.broadcast %362 : vector<2x1x72xf32> to vector<2x20x72xf32>
    %375 = vector.broadcast %365 : vector<1x20x72xf32> to vector<2x20x72xf32>
    %376 = arith.mulf %374, %375 : vector<2x20x72xf32>
    %377 = vector.broadcast %363 : vector<2x1x72xf32> to vector<2x20x72xf32>
    %378 = vector.broadcast %364 : vector<1x20x72xf32> to vector<2x20x72xf32>
    %379 = arith.mulf %377, %378 : vector<2x20x72xf32>
    %380 = arith.addf %376, %379 : vector<2x20x72xf32>
    %381 = arith.addf %361, %380 : vector<2x20x72xf32>
    %c0_210 = arith.constant 0 : index
    %c19 = arith.constant 19 : index
    %c0_211 = arith.constant 0 : index
    %382 = vector.load %arg1[%c0_210, %c19, %c0_211] : memref<2x20x72xf32, #tpu.memory_space<vmem>>, vector<2x1x72xf32>
    %c0_212 = arith.constant 0 : index
    %c19_213 = arith.constant 19 : index
    %c0_214 = arith.constant 0 : index
    %383 = vector.load %arg2[%c0_212, %c19_213, %c0_214] : memref<2x20x72xf32, #tpu.memory_space<vmem>>, vector<2x1x72xf32>
    %c19_215 = arith.constant 19 : index
    %c0_216 = arith.constant 0 : index
    %c0_217 = arith.constant 0 : index
    %384 = vector.load %arg3[%c19_215, %c0_216, %c0_217] : memref<20x20x72xf32, #tpu.memory_space<vmem>>, vector<1x20x72xf32>
    %c19_218 = arith.constant 19 : index
    %c0_219 = arith.constant 0 : index
    %c0_220 = arith.constant 0 : index
    %385 = vector.load %arg4[%c19_218, %c0_219, %c0_220] : memref<20x20x72xf32, #tpu.memory_space<vmem>>, vector<1x20x72xf32>
    %386 = vector.broadcast %382 : vector<2x1x72xf32> to vector<2x20x72xf32>
    %387 = vector.broadcast %384 : vector<1x20x72xf32> to vector<2x20x72xf32>
    %388 = arith.mulf %386, %387 : vector<2x20x72xf32>
    %389 = vector.broadcast %383 : vector<2x1x72xf32> to vector<2x20x72xf32>
    %390 = vector.broadcast %385 : vector<1x20x72xf32> to vector<2x20x72xf32>
    %391 = arith.mulf %389, %390 : vector<2x20x72xf32>
    %392 = arith.subf %388, %391 : vector<2x20x72xf32>
    %393 = arith.addf %373, %392 : vector<2x20x72xf32>
    %394 = vector.broadcast %382 : vector<2x1x72xf32> to vector<2x20x72xf32>
    %395 = vector.broadcast %385 : vector<1x20x72xf32> to vector<2x20x72xf32>
    %396 = arith.mulf %394, %395 : vector<2x20x72xf32>
    %397 = vector.broadcast %383 : vector<2x1x72xf32> to vector<2x20x72xf32>
    %398 = vector.broadcast %384 : vector<1x20x72xf32> to vector<2x20x72xf32>
    %399 = arith.mulf %397, %398 : vector<2x20x72xf32>
    %400 = arith.addf %396, %399 : vector<2x20x72xf32>
    %401 = arith.addf %381, %400 : vector<2x20x72xf32>
    %c0_221 = arith.constant 0 : index
    %c0_222 = arith.constant 0 : index
    %c0_223 = arith.constant 0 : index
    %402 = vector.load %arg5[%c0_221, %c0_222, %c0_223] : memref<2x20x72xf32, #tpu.memory_space<vmem>>, vector<2x20x72xf32>
    tpu.vector_store %arg5[%c0_221, %c0_222, %c0_223], %393 {strides = array<i32>} : memref<2x20x72xf32, #tpu.memory_space<vmem>>, vector<2x20x72xf32>,
    %c0_224 = arith.constant 0 : index
    %c0_225 = arith.constant 0 : index
    %c0_226 = arith.constant 0 : index
    %403 = vector.load %arg6[%c0_224, %c0_225, %c0_226] : memref<2x20x72xf32, #tpu.memory_space<vmem>>, vector<2x20x72xf32>
    tpu.vector_store %arg6[%c0_224, %c0_225, %c0_226], %401 {strides = array<i32>} : memref<2x20x72xf32, #tpu.memory_space<vmem>>, vector<2x20x72xf32>,
    return
  }
  func.func @transform_0(%arg0: i32) -> (i32, i32, i32) {
    %c0_i32 = arith.constant 0 : i32
    %c0_i32_0 = arith.constant 0 : i32
    %c0_i32_1 = arith.constant 0 : i32
    return %c0_i32, %c0_i32_0, %arg0 : i32, i32, i32
  }
  func.func @transform_1(%arg0: i32) -> (i32, i32, i32) {
    %c0_i32 = arith.constant 0 : i32
    %c0_i32_0 = arith.constant 0 : i32
    %c0_i32_1 = arith.constant 0 : i32
    return %c0_i32, %c0_i32_0, %arg0 : i32, i32, i32
  }
  func.func @transform_2(%arg0: i32) -> (i32, i32, i32) {
    %c0_i32 = arith.constant 0 : i32
    %c0_i32_0 = arith.constant 0 : i32
    %c0_i32_1 = arith.constant 0 : i32
    return %c0_i32, %c0_i32_0, %arg0 : i32, i32, i32
  }
  func.func @transform_3(%arg0: i32) -> (i32, i32, i32) {
    %c0_i32 = arith.constant 0 : i32
    %c0_i32_0 = arith.constant 0 : i32
    %c0_i32_1 = arith.constant 0 : i32
    return %c0_i32, %c0_i32_0, %arg0 : i32, i32, i32
  }
  func.func @transform_4(%arg0: i32) -> (i32, i32, i32) {
    %c0_i32 = arith.constant 0 : i32
    %c0_i32_0 = arith.constant 0 : i32
    %c0_i32_1 = arith.constant 0 : i32
    return %c0_i32, %c0_i32_0, %arg0 : i32, i32, i32
  }
  func.func @transform_5(%arg0: i32) -> (i32, i32, i32) {
    %c0_i32 = arith.constant 0 : i32
    %c0_i32_0 = arith.constant 0 : i32
    %c0_i32_1 = arith.constant 0 : i32
    return %c0_i32, %c0_i32_0, %arg0 : i32, i32, i32
  }
}

module attributes {stable_mosaic.version = 11 : i64} {
  func.func @_fused_layer_kernel(%arg0: i32, %arg1: i32, %arg2: memref<1x20x256xf32, #tpu.memory_space<vmem>>, %arg3: memref<1x20x256xbf16, #tpu.memory_space<vmem>>, %arg4: memref<20x20xf32, #tpu.memory_space<vmem>>, %arg5: memref<20x1xf32, #tpu.memory_space<vmem>>, %arg6: memref<1x20x256xbf16, #tpu.memory_space<vmem>>) attributes {dimension_semantics = [#tpu.dimension_semantics<parallel>, #tpu.dimension_semantics<parallel>], iteration_bounds = array<i64: 2, 1>, scalar_prefetch = 0 : i64, scratch_operands = 0 : i64, tpu.core_type = #tpu.core_type<tc>, window_params = [{transform_indices = @transform_0, window_bounds = array<i64: 1, 20, 256>}, {transform_indices = @transform_1, window_bounds = array<i64: 1, 20, 256>}, {pipeline_mode = #tpu.pipeline_mode<synchronous>, transform_indices = @transform_2, window_bounds = array<i64: 20, 20>}, {pipeline_mode = #tpu.pipeline_mode<synchronous>, transform_indices = @transform_3, window_bounds = array<i64: 20, 1>}, {transform_indices = @transform_4, window_bounds = array<i64: 1, 20, 256>}]} {
    %c0 = arith.constant 0 : index
    %c0_0 = arith.constant 0 : index
    %c0_1 = arith.constant 0 : index
    %0 = vector.load %arg3[%c0, %c0_0, %c0_1] : memref<1x20x256xbf16, #tpu.memory_space<vmem>>, vector<1x20x256xbf16>
    %1 = vector.shape_cast %0 : vector<1x20x256xbf16> to vector<20x256xbf16>
    %2 = arith.extf %1 : vector<20x256xbf16> to vector<20x256xf32>
    %c0_2 = arith.constant 0 : index
    %c0_3 = arith.constant 0 : index
    %3 = vector.load %arg4[%c0_2, %c0_3] : memref<20x20xf32, #tpu.memory_space<vmem>>, vector<20x20xf32>
    %cst = arith.constant dense<0.000000e+00> : vector<20x256xf32>
    %4 = tpu.matmul %3, %2, %cst {dimension_numbers = #tpu.dot_dimension_numbers<[1], [0], [0], [1], [0, 0, 1, 1], [], []>} : vector<20x20xf32>, vector<20x256xf32>, vector<20x256xf32> -> vector<20x256xf32>
    %c0_4 = arith.constant 0 : index
    %c0_5 = arith.constant 0 : index
    %5 = vector.load %arg5[%c0_4, %c0_5] : memref<20x1xf32, #tpu.memory_space<vmem>>, vector<20x1xf32>
    %6 = vector.broadcast %5 : vector<20x1xf32> to vector<20x256xf32>
    %7 = arith.addf %4, %6 : vector<20x256xf32>
    %c0_6 = arith.constant 0 : index
    %c0_7 = arith.constant 0 : index
    %c0_8 = arith.constant 0 : index
    %8 = vector.load %arg2[%c0_6, %c0_7, %c0_8] : memref<1x20x256xf32, #tpu.memory_space<vmem>>, vector<1x20x256xf32>
    %9 = vector.shape_cast %8 : vector<1x20x256xf32> to vector<20x256xf32>
    %10 = arith.addf %7, %9 : vector<20x256xf32>
    %cst_9 = arith.constant 5.000000e-01 : f32
    %11 = vector.broadcast %cst_9 : f32 to vector<20x256xf32>
    %12 = arith.mulf %11, %10 : vector<20x256xf32>
    %cst_10 = arith.constant 0.707106769 : f32
    %13 = vector.broadcast %cst_10 : f32 to vector<20x256xf32>
    %14 = arith.mulf %10, %13 : vector<20x256xf32>
    %15 = math.erf %14 : vector<20x256xf32>
    %cst_11 = arith.constant 1.000000e+00 : f32
    %16 = vector.broadcast %cst_11 : f32 to vector<20x256xf32>
    %17 = arith.addf %16, %15 : vector<20x256xf32>
    %18 = arith.mulf %12, %17 : vector<20x256xf32>
    %19 = arith.truncf %18 : vector<20x256xf32> to vector<20x256xbf16>
    %c0_12 = arith.constant 0 : index
    %c0_13 = arith.constant 0 : index
    %c0_14 = arith.constant 0 : index
    %20 = vector.load %arg6[%c0_12, %c0_13, %c0_14] : memref<1x20x256xbf16, #tpu.memory_space<vmem>>, vector<1x20x256xbf16>
    %21 = vector.shape_cast %20 : vector<1x20x256xbf16> to vector<20x256xbf16>
    %22 = vector.shape_cast %19 : vector<20x256xbf16> to vector<1x20x256xbf16>
    tpu.vector_store %arg6[%c0_12, %c0_13, %c0_14], %22 {strides = array<i32>} : memref<1x20x256xbf16, #tpu.memory_space<vmem>>, vector<1x20x256xbf16>,
    return
  }
  func.func @transform_0(%arg0: i32, %arg1: i32) -> (i32, i32, i32) {
    %c0_i32 = arith.constant 0 : i32
    %c0_i32_0 = arith.constant 0 : i32
    return %arg0, %c0_i32, %arg1 : i32, i32, i32
  }
  func.func @transform_1(%arg0: i32, %arg1: i32) -> (i32, i32, i32) {
    %c0_i32 = arith.constant 0 : i32
    %c0_i32_0 = arith.constant 0 : i32
    return %arg0, %c0_i32, %arg1 : i32, i32, i32
  }
  func.func @transform_2(%arg0: i32, %arg1: i32) -> (i32, i32) {
    %c0_i32 = arith.constant 0 : i32
    %c0_i32_0 = arith.constant 0 : i32
    %c0_i32_1 = arith.constant 0 : i32
    return %c0_i32, %c0_i32_0 : i32, i32
  }
  func.func @transform_3(%arg0: i32, %arg1: i32) -> (i32, i32) {
    %c0_i32 = arith.constant 0 : i32
    %c0_i32_0 = arith.constant 0 : i32
    %c0_i32_1 = arith.constant 0 : i32
    return %c0_i32, %c0_i32_0 : i32, i32
  }
  func.func @transform_4(%arg0: i32, %arg1: i32) -> (i32, i32, i32) {
    %c0_i32 = arith.constant 0 : i32
    %c0_i32_0 = arith.constant 0 : i32
    return %arg0, %c0_i32, %arg1 : i32, i32, i32
  }
}

module attributes {stable_mosaic.version = 11 : i64} {
  func.func @_tail_kernel(%arg0: i32, %arg1: i32, %arg2: memref<1x20x256xf32, #tpu.memory_space<vmem>>, %arg3: memref<1x20x256xbf16, #tpu.memory_space<vmem>>, %arg4: memref<20x20xf32, #tpu.memory_space<vmem>>, %arg5: memref<20x1xf32, #tpu.memory_space<vmem>>, %arg6: memref<128x20xf32, #tpu.memory_space<vmem>>, %arg7: memref<128x1xf32, #tpu.memory_space<vmem>>, %arg8: memref<1x128xf32, #tpu.memory_space<vmem>>, %arg9: memref<1x1xf32, #tpu.memory_space<vmem>>, %arg10: memref<1x1x256xf32, #tpu.memory_space<vmem>>) attributes {dimension_semantics = [#tpu.dimension_semantics<parallel>, #tpu.dimension_semantics<parallel>], iteration_bounds = array<i64: 2, 1>, scalar_prefetch = 0 : i64, scratch_operands = 0 : i64, tpu.core_type = #tpu.core_type<tc>, window_params = [{transform_indices = @transform_0, window_bounds = array<i64: 1, 20, 256>}, {transform_indices = @transform_1, window_bounds = array<i64: 1, 20, 256>}, {pipeline_mode = #tpu.pipeline_mode<synchronous>, transform_indices = @transform_2, window_bounds = array<i64: 20, 20>}, {pipeline_mode = #tpu.pipeline_mode<synchronous>, transform_indices = @transform_3, window_bounds = array<i64: 20, 1>}, {pipeline_mode = #tpu.pipeline_mode<synchronous>, transform_indices = @transform_4, window_bounds = array<i64: 128, 20>}, {pipeline_mode = #tpu.pipeline_mode<synchronous>, transform_indices = @transform_5, window_bounds = array<i64: 128, 1>}, {pipeline_mode = #tpu.pipeline_mode<synchronous>, transform_indices = @transform_6, window_bounds = array<i64: 1, 128>}, {pipeline_mode = #tpu.pipeline_mode<synchronous>, transform_indices = @transform_7, window_bounds = array<i64: 1, 1>}, {transform_indices = @transform_8, window_bounds = array<i64: 1, 1, 256>}]} {
    %c0 = arith.constant 0 : index
    %c0_0 = arith.constant 0 : index
    %c0_1 = arith.constant 0 : index
    %0 = vector.load %arg3[%c0, %c0_0, %c0_1] : memref<1x20x256xbf16, #tpu.memory_space<vmem>>, vector<1x20x256xbf16>
    %1 = vector.shape_cast %0 : vector<1x20x256xbf16> to vector<20x256xbf16>
    %2 = arith.extf %1 : vector<20x256xbf16> to vector<20x256xf32>
    %c0_2 = arith.constant 0 : index
    %c0_3 = arith.constant 0 : index
    %3 = vector.load %arg4[%c0_2, %c0_3] : memref<20x20xf32, #tpu.memory_space<vmem>>, vector<20x20xf32>
    %cst = arith.constant dense<0.000000e+00> : vector<20x256xf32>
    %4 = tpu.matmul %3, %2, %cst {dimension_numbers = #tpu.dot_dimension_numbers<[1], [0], [0], [1], [0, 0, 1, 1], [], []>} : vector<20x20xf32>, vector<20x256xf32>, vector<20x256xf32> -> vector<20x256xf32>
    %c0_4 = arith.constant 0 : index
    %c0_5 = arith.constant 0 : index
    %5 = vector.load %arg5[%c0_4, %c0_5] : memref<20x1xf32, #tpu.memory_space<vmem>>, vector<20x1xf32>
    %6 = vector.broadcast %5 : vector<20x1xf32> to vector<20x256xf32>
    %7 = arith.addf %4, %6 : vector<20x256xf32>
    %c0_6 = arith.constant 0 : index
    %c0_7 = arith.constant 0 : index
    %c0_8 = arith.constant 0 : index
    %8 = vector.load %arg2[%c0_6, %c0_7, %c0_8] : memref<1x20x256xf32, #tpu.memory_space<vmem>>, vector<1x20x256xf32>
    %9 = vector.shape_cast %8 : vector<1x20x256xf32> to vector<20x256xf32>
    %10 = arith.addf %7, %9 : vector<20x256xf32>
    %c0_9 = arith.constant 0 : index
    %c0_10 = arith.constant 0 : index
    %11 = vector.load %arg6[%c0_9, %c0_10] : memref<128x20xf32, #tpu.memory_space<vmem>>, vector<128x20xf32>
    %cst_11 = arith.constant dense<0.000000e+00> : vector<128x256xf32>
    %12 = tpu.matmul %11, %10, %cst_11 {dimension_numbers = #tpu.dot_dimension_numbers<[1], [0], [0], [1], [0, 0, 1, 1], [], []>} : vector<128x20xf32>, vector<20x256xf32>, vector<128x256xf32> -> vector<128x256xf32>
    %c0_12 = arith.constant 0 : index
    %c0_13 = arith.constant 0 : index
    %13 = vector.load %arg7[%c0_12, %c0_13] : memref<128x1xf32, #tpu.memory_space<vmem>>, vector<128x1xf32>
    %14 = vector.broadcast %13 : vector<128x1xf32> to vector<128x256xf32>
    %15 = arith.addf %12, %14 : vector<128x256xf32>
    %cst_14 = arith.constant 5.000000e-01 : f32
    %16 = vector.broadcast %cst_14 : f32 to vector<128x256xf32>
    %17 = arith.mulf %16, %15 : vector<128x256xf32>
    %cst_15 = arith.constant 4.471500e-02 : f32
    %18 = vector.broadcast %cst_15 : f32 to vector<128x256xf32>
    %19 = arith.mulf %18, %15 : vector<128x256xf32>
    %20 = arith.mulf %19, %15 : vector<128x256xf32>
    %21 = arith.mulf %20, %15 : vector<128x256xf32>
    %22 = arith.addf %15, %21 : vector<128x256xf32>
    %cst_16 = arith.constant 0.797884583 : f32
    %23 = vector.broadcast %cst_16 : f32 to vector<128x256xf32>
    %24 = arith.mulf %23, %22 : vector<128x256xf32>
    %25 = math.tanh %24 : vector<128x256xf32>
    %cst_17 = arith.constant 1.000000e+00 : f32
    %26 = vector.broadcast %cst_17 : f32 to vector<128x256xf32>
    %27 = arith.addf %26, %25 : vector<128x256xf32>
    %28 = arith.mulf %17, %27 : vector<128x256xf32>
    %c0_18 = arith.constant 0 : index
    %c0_19 = arith.constant 0 : index
    %29 = vector.load %arg8[%c0_18, %c0_19] : memref<1x128xf32, #tpu.memory_space<vmem>>, vector<1x128xf32>
    %cst_20 = arith.constant dense<0.000000e+00> : vector<1x256xf32>
    %30 = tpu.matmul %29, %28, %cst_20 {dimension_numbers = #tpu.dot_dimension_numbers<[1], [0], [0], [1], [0, 0, 1, 1], [], []>} : vector<1x128xf32>, vector<128x256xf32>, vector<1x256xf32> -> vector<1x256xf32>
    %c0_21 = arith.constant 0 : index
    %c0_22 = arith.constant 0 : index
    %31 = vector.load %arg9[%c0_21, %c0_22] : memref<1x1xf32, #tpu.memory_space<vmem>>, vector<1x1xf32>
    %32 = vector.broadcast %31 : vector<1x1xf32> to vector<1x256xf32>
    %33 = arith.addf %30, %32 : vector<1x256xf32>
    %c0_23 = arith.constant 0 : index
    %c0_24 = arith.constant 0 : index
    %c0_25 = arith.constant 0 : index
    %34 = vector.load %arg10[%c0_23, %c0_24, %c0_25] : memref<1x1x256xf32, #tpu.memory_space<vmem>>, vector<1x1x256xf32>
    %35 = vector.shape_cast %34 : vector<1x1x256xf32> to vector<1x256xf32>
    %36 = vector.shape_cast %33 : vector<1x256xf32> to vector<1x1x256xf32>
    tpu.vector_store %arg10[%c0_23, %c0_24, %c0_25], %36 {strides = array<i32>} : memref<1x1x256xf32, #tpu.memory_space<vmem>>, vector<1x1x256xf32>,
    return
  }
  func.func @transform_0(%arg0: i32, %arg1: i32) -> (i32, i32, i32) {
    %c0_i32 = arith.constant 0 : i32
    %c0_i32_0 = arith.constant 0 : i32
    return %arg0, %c0_i32, %arg1 : i32, i32, i32
  }
  func.func @transform_1(%arg0: i32, %arg1: i32) -> (i32, i32, i32) {
    %c0_i32 = arith.constant 0 : i32
    %c0_i32_0 = arith.constant 0 : i32
    return %arg0, %c0_i32, %arg1 : i32, i32, i32
  }
  func.func @transform_2(%arg0: i32, %arg1: i32) -> (i32, i32) {
    %c0_i32 = arith.constant 0 : i32
    %c0_i32_0 = arith.constant 0 : i32
    %c0_i32_1 = arith.constant 0 : i32
    return %c0_i32, %c0_i32_0 : i32, i32
  }
  func.func @transform_3(%arg0: i32, %arg1: i32) -> (i32, i32) {
    %c0_i32 = arith.constant 0 : i32
    %c0_i32_0 = arith.constant 0 : i32
    %c0_i32_1 = arith.constant 0 : i32
    return %c0_i32, %c0_i32_0 : i32, i32
  }
  func.func @transform_4(%arg0: i32, %arg1: i32) -> (i32, i32) {
    %c0_i32 = arith.constant 0 : i32
    %c0_i32_0 = arith.constant 0 : i32
    %c0_i32_1 = arith.constant 0 : i32
    return %c0_i32, %c0_i32_0 : i32, i32
  }
  func.func @transform_5(%arg0: i32, %arg1: i32) -> (i32, i32) {
    %c0_i32 = arith.constant 0 : i32
    %c0_i32_0 = arith.constant 0 : i32
    %c0_i32_1 = arith.constant 0 : i32
    return %c0_i32, %c0_i32_0 : i32, i32
  }
  func.func @transform_6(%arg0: i32, %arg1: i32) -> (i32, i32) {
    %c0_i32 = arith.constant 0 : i32
    %c0_i32_0 = arith.constant 0 : i32
    %c0_i32_1 = arith.constant 0 : i32
    return %c0_i32, %c0_i32_0 : i32, i32
  }
  func.func @transform_7(%arg0: i32, %arg1: i32) -> (i32, i32) {
    %c0_i32 = arith.constant 0 : i32
    %c0_i32_0 = arith.constant 0 : i32
    %c0_i32_1 = arith.constant 0 : i32
    return %c0_i32, %c0_i32_0 : i32, i32
  }
  func.func @transform_8(%arg0: i32, %arg1: i32) -> (i32, i32, i32) {
    %c0_i32 = arith.constant 0 : i32
    %c0_i32_0 = arith.constant 0 : i32
    return %arg0, %c0_i32, %arg1 : i32, i32, i32
  }
}

</mosaic_0001>

<llo_original>
// kernel: tile.8
$region0: #{tile.8}
  #allocation0 [shape = 's32[1]{0}', space=sflag, size = 0x4, scoped, tag = 'scoped memory for tile.8']
  %s0 = inlined_call_operand.vmem [shape: f32[16], index: 0, kind: input, shape index: {}]
  %s1 = inlined_call_operand.vmem [shape: f32[16,16], index: 1, kind: output, shape index: {}]
  // Predicated region
  $region2: #{tile.8} parent=0 // pred_check
    _
  $region3: #{tile.8} parent=0 // pred_check_branch
    %3 = sbr.rel (0) target = $region5
  $region4: #{tile.8} parent=0 // pred_region
    _
  $region5: #{tile.8} parent=0 // pred_fallthru
    _
  %v4 = vld [vmem:[%s0] ss:$0 sm:$0xff]
  %5 = vst [vmem:[%s1] sm:$0xff] %v4
  %s6 = scalar_lea.vmem %s1, 8
  %7 = vst [vmem:[%s6] sm:$0xff] %v4

// kernel: fno2d_forward.9
$region0: #{fno2d_forward.9}
  #allocation0 [shape = 'u32[]', space=smem, size = 0x4, offset = 0x4, fixed_abs, tag = 'smem constant byte address 0x4 - core index']
  #allocation1 [shape = 'u32[72,128]{1,0:T(1,128)}', space=vmem, size = 0x9000, scoped, tag = 'internal scratch']
  %s0 = inlined_call_operand.vmem [shape: f32[2,10,256], index: 0, kind: input, shape index: {}]
  %s1 = inlined_call_operand.vmem [shape: f32[2,256], index: 1, kind: input, shape index: {}]
  %s2 = inlined_call_operand.vmem [shape: f32[20,10], index: 2, kind: input, shape index: {}]
  %s3 = inlined_call_operand.vmem [shape: f32[20,2], index: 3, kind: input, shape index: {}]
  %s4 = inlined_call_operand.vmem [shape: f32[20,1], index: 4, kind: input, shape index: {}]
  %s5 = inlined_call_operand.vmem [shape: bf16[2,20,256], index: 5, kind: output, shape index: {}]
  %s6 = sld [smem:[#allocation0]]
  $region53: #{fno2d_forward.9} parent=0
    _
  %s8 = ssub.s32 1, %s6
  %s9 = scalar_select 0, %s8, %s6
  loop: start=0, step=1, limit=4
  $region2: #{fno2d_forward.9} parent=0 // loop_pre_header
    _
  $region3: #{fno2d_forward.9} parent=0 // loop_header
    %s11 = sphi 0, %s15
    %p12 = scmp.ge.s32.totalorder %s11, 4
    %s18 = sphi 0, %s30
    %s19 = sphi 0, %s26
    %s20 = sphi 0, %s18
    %s21 = sphi 0, %s19
    %s22 = sphi 0, %s20
    %s23 = sphi 0, %s21
    %s35 = sphi 0, %s37
    %s38 = sphi 0, %s35
    %s39 = sphi 0, %s38
    %s55 = sphi 0, %s39
    %s61 = sphi 0, %s63
    %s64 = sphi 0, %s61
    %s65 = sphi 0, %s64
    %s81 = sphi 0, %s65
    %s85 = sphi 0, %s85
    %s87 = sphi 0, %s85
    %s88 = sphi 0, %s87
    %s102 = sphi 0, %s88
    %s106 = sphi 0, %s106
    %s108 = sphi 0, %s106
    %s109 = sphi 0, %s108
    %s123 = sphi 0, %s109
    %s127 = sphi 0, %s127
    %s129 = sphi 0, %s127
    %s130 = sphi 0, %s129
    %s144 = sphi 0, %s130
    %s152 = sphi 0, %s154
    %s155 = sphi 0, %s152
    %s156 = sphi 0, %s155
    %s172 = sphi 0, %s156
  $region4: #{fno2d_forward.9} parent=0 // loop_header_branch
    %14 = sbr.rel (%p12) target = $region8
  $region5: #{fno2d_forward.9} parent=0 // loop_body
    %s16 = ssub.s32 %s11, 1
    %s17 = ssub.s32 %s11, 2
    %s24 = sadd.s32 1, %s19
    %p25 = scmp.ge.s32.totalorder %s24, 1
    %s26 = scalar_select %p25, 0, %s24
    %s27 = sadd.s32 1, %s18
    %s28 = scalar_select %p25, %s27, %s18
    %p29 = scmp.ge.s32.totalorder %s28, 2
    %s30 = scalar_select %p29, 0, %s28
    %s31 = ssub.s32 %s18, %s30
    %s32 = ssub.s32 %s19, %s26
    %s33 = sor.u32 %s31, %s32
    %p34 = scmp.eq.s32.totalorder %s33, 0
    %s36 = sadd.s32 %s35, 1
    %s37 = scalar_select %p34, %s35, %s36
    %p40 = pneg %p34
    %p41 = scmp.eq.s32.totalorder %s11, 1
    %p42 = por %p40, %p41
    %p43 = scmp.ne.s32.totalorder %s35, %s38
    %p44 = scmp.eq.s32.totalorder %s11, 0
    %p45 = por %p43, %p44
    %p46 = scmp.ne.s32.totalorder %s35, %s38
    %p47 = scmp.eq.s32.totalorder %s16, 1
    %p48 = por %p46, %p47
    %p49 = scmp.ne.s32.totalorder %s38, %s39
    %p50 = scmp.eq.s32.totalorder %s16, 0
    %p51 = por %p49, %p50
    %p52 = scmp.ne.s32.totalorder %s38, %s39
    %p53 = scmp.eq.s32.totalorder %s17, 1
    %p54 = por %p52, %p53
    %p56 = scmp.ne.s32.totalorder %s39, %s55
    %p57 = scmp.eq.s32.totalorder %s17, 0
    %p58 = por %p56, %p57
    %s59 = ssub.s32 %s19, %s26
    %p60 = scmp.eq.s32.totalorder %s59, 0
    %s62 = sadd.s32 %s61, 1
    %s63 = scalar_select %p60, %s61, %s62
    %p66 = pneg %p60
    %p67 = scmp.eq.s32.totalorder %s11, 1
    %p68 = por %p66, %p67
    %p69 = scmp.ne.s32.totalorder %s61, %s64
    %p70 = scmp.eq.s32.totalorder %s11, 0
    %p71 = por %p69, %p70
    %p72 = scmp.ne.s32.totalorder %s61, %s64
    %p73 = scmp.eq.s32.totalorder %s16, 1
    %p74 = por %p72, %p73
    %p75 = scmp.ne.s32.totalorder %s64, %s65
    %p76 = scmp.eq.s32.totalorder %s16, 0
    %p77 = por %p75, %p76
    %p78 = scmp.ne.s32.totalorder %s64, %s65
    %p79 = scmp.eq.s32.totalorder %s17, 1
    %p80 = por %p78, %p79
    %p82 = scmp.ne.s32.totalorder %s65, %s81
    %p83 = scmp.eq.s32.totalorder %s17, 0
    %p84 = por %p82, %p83
    %s86 = sadd.s32 %s85, 1
    %p89 = scmp.eq.s32.totalorder %s11, 1
    %p90 = scmp.ne.s32.totalorder %s85, %s87
    %p91 = scmp.eq.s32.totalorder %s11, 0
    %p92 = por %p90, %p91
    %p93 = scmp.ne.s32.totalorder %s85, %s87
    %p94 = scmp.eq.s32.totalorder %s16, 1
    %p95 = por %p93, %p94
    %p96 = scmp.ne.s32.totalorder %s87, %s88
    %p97 = scmp.eq.s32.totalorder %s16, 0
    %p98 = por %p96, %p97
    %p99 = scmp.ne.s32.totalorder %s87, %s88
    %p100 = scmp.eq.s32.totalorder %s17, 1
    %p101 = por %p99, %p100
    %p103 = scmp.ne.s32.totalorder %s88, %s102
    %p104 = scmp.eq.s32.totalorder %s17, 0
    %p105 = por %p103, %p104
    %s107 = sadd.s32 %s106, 1
    %p110 = scmp.eq.s32.totalorder %s11, 1
    %p111 = scmp.ne.s32.totalorder %s106, %s108
    %p112 = scmp.eq.s32.totalorder %s11, 0
    %p113 = por %p111, %p112
    %p114 = scmp.ne.s32.totalorder %s106, %s108
    %p115 = scmp.eq.s32.totalorder %s16, 1
    %p116 = por %p114, %p115
    %p117 = scmp.ne.s32.totalorder %s108, %s109
    %p118 = scmp.eq.s32.totalorder %s16, 0
    %p119 = por %p117, %p118
    %p120 = scmp.ne.s32.totalorder %s108, %s109
    %p121 = scmp.eq.s32.totalorder %s17, 1
    %p122 = por %p120, %p121
    %p124 = scmp.ne.s32.totalorder %s109, %s123
    %p125 = scmp.eq.s32.totalorder %s17, 0
    %p126 = por %p124, %p125
    %s128 = sadd.s32 %s127, 1
    %p131 = scmp.eq.s32.totalorder %s11, 1
    %p132 = scmp.ne.s32.totalorder %s127, %s129
    %p133 = scmp.eq.s32.totalorder %s11, 0
    %p134 = por %p132, %p133
    %p135 = scmp.ne.s32.totalorder %s127, %s129
    %p136 = scmp.eq.s32.totalorder %s16, 1
    %p137 = por %p135, %p136
    %p138 = scmp.ne.s32.totalorder %s129, %s130
    %p139 = scmp.eq.s32.totalorder %s16, 0
    %p140 = por %p138, %p139
    %p141 = scmp.ne.s32.totalorder %s129, %s130
    %p142 = scmp.eq.s32.totalorder %s17, 1
    %p143 = por %p141, %p142
    %p145 = scmp.ne.s32.totalorder %s130, %s144
    %p146 = scmp.eq.s32.totalorder %s17, 0
    %p147 = por %p145, %p146
    %s148 = ssub.s32 %s18, %s30
    %s149 = ssub.s32 %s19, %s26
    %s150 = sor.u32 %s148, %s149
    %p151 = scmp.eq.s32.totalorder %s150, 0
    %s153 = sadd.s32 %s152, 1
    %s154 = scalar_select %p151, %s152, %s153
    %p157 = pneg %p151
    %p158 = scmp.eq.s32.totalorder %s11, 1
    %p159 = por %p157, %p158
    %p160 = scmp.ne.s32.totalorder %s152, %s155
    %p161 = scmp.eq.s32.totalorder %s11, 0
    %p162 = por %p160, %p161
    %p163 = scmp.ne.s32.totalorder %s152, %s155
    %p164 = scmp.eq.s32.totalorder %s16, 1
    %p165 = por %p163, %p164
    %p166 = scmp.ne.s32.totalorder %s155, %s156
    %p167 = scmp.eq.s32.totalorder %s16, 0
    %p168 = por %p166, %p167
    %p169 = scmp.ne.s32.totalorder %s155, %s156
    %p170 = scmp.eq.s32.totalorder %s17, 1
    %p171 = por %p169, %p170
    %p173 = scmp.ne.s32.totalorder %s156, %s172
    %p174 = scmp.eq.s32.totalorder %s17, 0
    %p175 = por %p173, %p174
    %p176 = scmp.le.s32.totalorder 1, %s11
    %p177 = scmp.lt.s32.totalorder %s11, 3
    %p178 = pnand %p176, %p177
    %p179 = pneg %p178
    // Predicated region
    $region9: #{fno2d_forward.9} parent=5 // pred_check
      _
    $region10: #{fno2d_forward.9} parent=5 // pred_check_branch
      %181 = sbr.rel (%p178) target = $region12
    $region11: #{fno2d_forward.9} parent=5 // pred_region
      %s182 = ssub.s32 %s11, 1
      // Predicated region
      $region13: #{fno2d_forward.9} parent=11 // pred_check
        %p183 = pneg %p77
      $region14: #{fno2d_forward.9} parent=11 // pred_check_branch
        %185 = sbr.rel (%p183) target = $region16
      $region15: #{fno2d_forward.9} parent=11 // pred_region
        %s186 = smul.u32 2, %s21
        %p187 = scmp.lt.s32.totalorder %s186, 1
        %s188 = scalar_select %p187, %s186, 1
        %s189 = smul.addr %s188, 2
        %s190 = scalar_lea.vmem %s1, %s189
        %s191 = smul.u32 2, %s21
      $region16: #{fno2d_forward.9} parent=11 // pred_fallthru
        _
      // Predicated region
      $region17: #{fno2d_forward.9} parent=11 // pred_check
        %p192 = pneg %p98
      $region18: #{fno2d_forward.9} parent=11 // pred_check_branch
        %194 = sbr.rel (%p192) target = $region20
      $region19: #{fno2d_forward.9} parent=11 // pred_region
        _
      $region20: #{fno2d_forward.9} parent=11 // pred_fallthru
        _
      // Predicated region
      $region21: #{fno2d_forward.9} parent=11 // pred_check
        %p195 = pneg %p119
      $region22: #{fno2d_forward.9} parent=11 // pred_check_branch
        %197 = sbr.rel (%p195) target = $region24
      $region23: #{fno2d_forward.9} parent=11 // pred_region
        _
      $region24: #{fno2d_forward.9} parent=11 // pred_fallthru
        _
      // Predicated region
      $region25: #{fno2d_forward.9} parent=11 // pred_check
        %p198 = pneg %p140
      $region26: #{fno2d_forward.9} parent=11 // pred_check_branch
        %200 = sbr.rel (%p198) target = $region28
      $region27: #{fno2d_forward.9} parent=11 // pred_region
        _
      $region28: #{fno2d_forward.9} parent=11 // pred_fallthru
        _
    $region12: #{fno2d_forward.9} parent=5 // pred_fallthru
      _
    %p201 = scmp.lt.s32.totalorder %s11, 2
    // Predicated region
    $region29: #{fno2d_forward.9} parent=5 // pred_check
      %p202 = pneg %p201
    $region30: #{fno2d_forward.9} parent=5 // pred_check_branch
      %204 = sbr.rel (%p202) target = $region32
    $region31: #{fno2d_forward.9} parent=5 // pred_region
      // Predicated region
      $region33: #{fno2d_forward.9} parent=31 // pred_check
        %p205 = pneg %p45
      $region34: #{fno2d_forward.9} parent=31 // pred_check_branch
        %207 = sbr.rel (%p205) target = $region36
      $region35: #{fno2d_forward.9} parent=31 // pred_region
        %s208 = smul.u32 2, %s19
        %p209 = scmp.lt.s32.totalorder %s18, 1
        %s210 = scalar_select %p209, %s18, 1
        %p211 = scmp.lt.s32.totalorder %s208, 1
        %s212 = scalar_select %p211, %s208, 1
        %s213 = smul.addr %s210, 4
        %s214 = sadd.s32 %s212, %s213
        %s215 = smul.addr %s214, 8
        %s216 = scalar_lea.vmem %s0, %s215
        %s217 = smul.u32 2, %s19
      $region36: #{fno2d_forward.9} parent=31 // pred_fallthru
        _
    $region32: #{fno2d_forward.9} parent=5 // pred_fallthru
      _
    %p218 = scmp.le.s32.totalorder 1, %s11
    %p219 = scmp.lt.s32.totalorder %s11, 3
    %p220 = pnand %p218, %p219
    %p221 = pneg %p220
    // Predicated region
    $region37: #{fno2d_forward.9} parent=5 // pred_check
      _
    $region38: #{fno2d_forward.9} parent=5 // pred_check_branch
      %223 = sbr.rel (%p220) target = $region40
    $region39: #{fno2d_forward.9} parent=5 // pred_region
      %s224 = ssub.s32 %s11, 1
      %s225 = smul.u32 2, %s21
      %p226 = scmp.lt.s32.totalorder %s20, 1
      %s227 = scalar_select %p226, %s20, 1
      %p228 = scmp.lt.s32.totalorder %s225, 1
      %s229 = scalar_select %p228, %s225, 1
      %s230 = smul.addr %s227, 4
      %s231 = sadd.s32 %s229, %s230
      %s232 = smul.addr %s231, 8
      %s233 = scalar_lea.vmem %s0, %s232
      %p234 = pneg %p51
      %p235 = pneg %p48
      %s236 = smul.u32 2, %s21
      %p237 = scmp.lt.s32.totalorder %s236, 1
      %s238 = scalar_select %p237, %s236, 1
      %s239 = smul.addr %s238, 2
      %s240 = scalar_lea.vmem %s1, %s239
      %p241 = pneg %p77
      %p242 = pneg %p74
      %p243 = pneg %p98
      %p244 = pneg %p95
      %p245 = pneg %p119
      %p246 = pneg %p116
      %p247 = pneg %p140
      %p248 = pneg %p137
      %p249 = pneg %p168
      %p250 = pneg %p165
      %s251 = smul.u32 2, %s21
      %p252 = scmp.lt.s32.totalorder %s20, 1
      %s253 = scalar_select %p252, %s20, 1
      %p254 = scmp.lt.s32.totalorder %s251, 1
      %s255 = scalar_select %p254, %s251, 1
      %s256 = smul.addr %s253, 6
      %s257 = sadd.s32 %s255, %s256
      %s258 = smul.addr %s257, 4
      %s259 = scalar_lea.vmem %s5, %s258
      %s260 = smul.u32 2, %s21
      %p261 = scmp.lt.s32.totalorder %s20, 1
      %s262 = scalar_select %p261, %s20, 1
      %p263 = scmp.lt.s32.totalorder %s260, 1
      %s264 = scalar_select %p263, %s260, 1
      %s265 = smul.addr %s262, 4
      %s266 = sadd.s32 %s264, %s265
      %s267 = smul.addr %s266, 8
      %s268 = scalar_lea.vmem %s0, %s267
      %s269 = smul.u32 2, %s21
      %s270 = smul.u32 2, %s21
      %p271 = scmp.lt.s32.totalorder %s270, 1
      %s272 = scalar_select %p271, %s270, 1
      %s273 = smul.addr %s272, 2
      %s274 = scalar_lea.vmem %s1, %s273
      %s275 = smul.u32 2, %s21
      %s276 = smul.u32 2, %s21
      %p277 = scmp.lt.s32.totalorder %s20, 1
      %s278 = scalar_select %p277, %s20, 1
      %p279 = scmp.lt.s32.totalorder %s276, 1
      %s280 = scalar_select %p279, %s276, 1
      %s281 = smul.addr %s278, 6
      %s282 = sadd.s32 %s280, %s281
      %s283 = smul.addr %s282, 4
      %s284 = scalar_lea.vmem %s5, %s283
      %s285 = smul.u32 2, %s21
      %v286 = vld [vmem:[%s268] sm:$0xff]
      %v287 = vld [vmem:[%s268 + $0x8] sm:$0xff]
      %v288 = vld [vmem:[%s268 + $0x10] sm:$0x3]
      %v289 = vld [vmem:[%s268 + $0x18] sm:$0x3]
      %v290 = vld [vmem:[%s274] sm:$0xf]
      %v291 = vld [vmem:[%s2] sm:$0xff]
      %v292 = vld [vmem:[%s2 + $0x8] sm:$0xff]
      %v293 = vld [vmem:[%s2 + $0x10] sm:$0xf]
      %v294 = vld [vmem:[%s3] sm:$0xff]
      %v295 = vld [vmem:[%s3 + $0x8] sm:$0xff]
      %v296 = vld [vmem:[%s3 + $0x10] sm:$0xf]
      %298 = vset.pattern.permute.xlu0 0
      %299 = vperm.xlu0 %298, %v294
      %v300 = vpop.permute.xlu0 %299
      %303 = vset.pattern.permute.xlu0 0
      %304 = vperm.xlu0 %303, %v295
      %v305 = vpop.permute.xlu0 %304
      %308 = vset.pattern.permute.xlu0 0
      %309 = vperm.xlu0 %308, %v296
      %v310 = vpop.permute.xlu0 %309
      %v313 = vperm.slane %v290, 0
      %v314 = vperm.slane %v290, 2
      %v317 = vperm.slane %v313, 0
      %v318 = vperm.slane %v314, 0
      %v319 = vmul.f32 %v300, %v317
      %v320 = vmul.f32 %v300, %v318
      %v321 = vmul.f32 %v305, %v317
      %v322 = vmul.f32 %v305, %v318
      %v323 = vmul.f32 %v310, %v317
      %v324 = vmul.f32 %v310, %v318
      %vm325 = vcmask 80896
      %v327 = vsel %vm325, %v291, 0
      %v330 = vsel %vm325, %v292, 0
      %v333 = vsel %vm325, %v293, 0
      %vm335 = vcmask 1041408
      %v337 = vsel %vm335, %v288, 0
      %v340 = vsel %vm335, %v289, 0
      %342 = vmatpush.msra.mxu0 0.0
      %343 = vmatpush.msra.mxu0 0.0
      %344 = vmatpush.msra.mxu0 0.0
      %345 = vmatpush.msra.mxu0 0.0
      %346 = vmatpush.msra.mxu0 0.0
      %347 = vmatpush.msra.mxu0 0.0
      %348 = vmatpush.msra.mxu0 0.0
      %349 = vmatpush.msra.mxu0 0.0
      %350 = vmatpush.msra.mxu0 0.0
      %351 = vmatpush.msra.mxu0 0.0
      %352 = vmatpush.msra.mxu0 0.0
      %353 = vmatpush.msra.mxu0 0.0
      %354 = vmatpush.msra.mxu0 0.0
      %355 = vmatpush.msra.mxu0 0.0
      %356 = vmatpush.msra.mxu0 %v337
      %357 = vmatpush.msra.mxu0 %v286
      %358 = vmatmul.f32.gmra.mxu0 %v327
      %v359 = vpop.f32.mrf.mxu0
      %v360 = vadd.f32 %v319, %v359
      %361 = vmatmul.f32.gmra.mxu0 %v330
      %v362 = vpop.f32.mrf.mxu0
      %v363 = vadd.f32 %v321, %v362
      %364 = vmatmul.f32.gmra.mxu0 %v333
      %v365 = vpop.f32.mrf.mxu0
      %v366 = vadd.f32 %v323, %v365
      %367 = vdwg.mxu0
      %368 = vmatpush.msra.mxu0 0.0
      %369 = vmatpush.msra.mxu0 0.0
      %370 = vmatpush.msra.mxu0 0.0
      %371 = vmatpush.msra.mxu0 0.0
      %372 = vmatpush.msra.mxu0 0.0
      %373 = vmatpush.msra.mxu0 0.0
      %374 = vmatpush.msra.mxu0 0.0
      %375 = vmatpush.msra.mxu0 0.0
      %376 = vmatpush.msra.mxu0 0.0
      %377 = vmatpush.msra.mxu0 0.0
      %378 = vmatpush.msra.mxu0 0.0
      %379 = vmatpush.msra.mxu0 0.0
      %380 = vmatpush.msra.mxu0 0.0
      %381 = vmatpush.msra.mxu0 0.0
      %382 = vmatpush.msra.mxu0 %v340
      %383 = vmatpush.msra.mxu0 %v287
      %384 = vmatmul.f32.gmra.mxu0 %v327
      %v385 = vpop.f32.mrf.mxu0
      %v386 = vadd.f32 %v320, %v385
      %387 = vmatmul.f32.gmra.mxu0 %v330
      %v388 = vpop.f32.mrf.mxu0
      %v389 = vadd.f32 %v322, %v388
      %390 = vmatmul.f32.gmra.mxu0 %v333
      %v391 = vpop.f32.mrf.mxu0
      %v392 = vadd.f32 %v324, %v391
      %393 = vdwg.mxu0
      %394 = vset.pattern.permute.xlu0 1
      %395 = vperm.xlu0 %394, %v294
      %v396 = vpop.permute.xlu0 %395
      %398 = vset.pattern.permute.xlu0 1
      %399 = vperm.xlu0 %398, %v295
      %v400 = vpop.permute.xlu0 %399
      %402 = vset.pattern.permute.xlu0 1
      %403 = vperm.xlu0 %402, %v296
      %v404 = vpop.permute.xlu0 %403
      %v406 = vperm.slane %v290, 1
      %v407 = vperm.slane %v290, 3
      %v410 = vperm.slane %v406, 1
      %v411 = vperm.slane %v407, 1
      %v412 = vmul.f32 %v396, %v410
      %v413 = vmul.f32 %v396, %v411
      %v414 = vmul.f32 %v400, %v410
      %v415 = vmul.f32 %v400, %v411
      %v416 = vmul.f32 %v404, %v410
      %v417 = vmul.f32 %v404, %v411
      %v418 = vadd.f32 %v360, %v412
      %v419 = vadd.f32 %v386, %v413
      %v420 = vadd.f32 %v363, %v414
      %v421 = vadd.f32 %v389, %v415
      %v422 = vadd.f32 %v366, %v416
      %v423 = vadd.f32 %v392, %v417
      %v424 = vld [vmem:[%s4] sm:$0xff]
      %v425 = vld [vmem:[%s4 + $0x8] sm:$0xff]
      %v426 = vld [vmem:[%s4 + $0x10] sm:$0xf]
      %428 = vset.pattern.permute.xlu0 0
      %429 = vperm.xlu0 %428, %v424
      %v430 = vpop.permute.xlu0 %429
      %433 = vset.pattern.permute.xlu0 0
      %434 = vperm.xlu0 %433, %v425
      %v435 = vpop.permute.xlu0 %434
      %438 = vset.pattern.permute.xlu0 0
      %439 = vperm.xlu0 %438, %v426
      %v440 = vpop.permute.xlu0 %439
      %v442 = vadd.f32 %v418, %v430
      %v443 = vadd.f32 %v419, %v430
      %v444 = vadd.f32 %v420, %v435
      %v445 = vadd.f32 %v421, %v435
      %v446 = vadd.f32 %v422, %v440
      %v447 = vadd.f32 %v423, %v440
      %v448 = vpack.c.bf16 %v443, %v442
      %v449 = vpack.c.bf16 %v445, %v444
      %v450 = vpack.c.bf16 %v447, %v446
      %451 = vst [vmem:[%s284] sm:$0xff] %v448
      %452 = vst [vmem:[%s284 + $0x8] sm:$0xff] %v449
      %453 = vst [vmem:[%s284 + $0x10] sm:$0x33] %v450
      %s454 = smul.u32 2, %s21
      %p455 = scmp.lt.s32.totalorder %s20, 1
      %s456 = scalar_select %p455, %s20, 1
      %p457 = scmp.lt.s32.totalorder %s454, 1
      %s458 = scalar_select %p457, %s454, 1
      %s459 = smul.addr %s456, 6
      %s460 = sadd.s32 %s458, %s459
      %s461 = smul.addr %s460, 4
      %s462 = scalar_lea.vmem %s5, %s461
      // Predicated region
      $region41: #{fno2d_forward.9} parent=39 // pred_check
        %p463 = pneg %p165
      $region42: #{fno2d_forward.9} parent=39 // pred_check_branch
        %465 = sbr.rel (%p463) target = $region44
      $region43: #{fno2d_forward.9} parent=39 // pred_region
        %s466 = smul.u32 2, %s21
      $region44: #{fno2d_forward.9} parent=39 // pred_fallthru
        _
    $region40: #{fno2d_forward.9} parent=5 // pred_fallthru
      _
    %p467 = scmp.le.s32.totalorder 2, %s11
    // Predicated region
    $region45: #{fno2d_forward.9} parent=5 // pred_check
      %p468 = pneg %p467
    $region46: #{fno2d_forward.9} parent=5 // pred_check_branch
      %470 = sbr.rel (%p468) target = $region48
    $region47: #{fno2d_forward.9} parent=5 // pred_region
      %s471 = ssub.s32 %s11, 2
      // Predicated region
      $region49: #{fno2d_forward.9} parent=47 // pred_check
        %p472 = pneg %p171
      $region50: #{fno2d_forward.9} parent=47 // pred_check_branch
        %474 = sbr.rel (%p472) target = $region52
      $region51: #{fno2d_forward.9} parent=47 // pred_region
        %s475 = smul.u32 2, %s23
        %p476 = scmp.lt.s32.totalorder %s22, 1
        %s477 = scalar_select %p476, %s22, 1
        %p478 = scmp.lt.s32.totalorder %s475, 1
        %s479 = scalar_select %p478, %s475, 1
        %s480 = smul.addr %s477, 6
        %s481 = sadd.s32 %s479, %s480
        %s482 = smul.addr %s481, 4
        %s483 = scalar_lea.vmem %s5, %s482
      $region52: #{fno2d_forward.9} parent=47 // pred_fallthru
        _
    $region48: #{fno2d_forward.9} parent=5 // pred_fallthru
      _
  $region6: #{fno2d_forward.9} parent=0 // loop_footer
    %s15 = sadd.s32 1, %s11
  $region7: #{fno2d_forward.9} parent=0 // loop_footer_branch
    %10 = sbr.rel target = $region3
  $region8: #{fno2d_forward.9} parent=0 // loop_exit
    _

// kernel: fno2d_forward.10
$region0: #{fno2d_forward.10}
  #allocation0 [shape = 'u32[]', space=smem, size = 0x4, offset = 0x4, fixed_abs, tag = 'smem constant byte address 0x4 - core index']
  #allocation1 [shape = 'u32[72,128]{1,0:T(1,128)}', space=vmem, size = 0x9000, scoped, tag = 'internal scratch']
  %s0 = inlined_call_operand.vmem [shape: f32[2,20,72], index: 0, kind: input, shape index: {}]
  %s1 = inlined_call_operand.vmem [shape: f32[2,20,72], index: 1, kind: input, shape index: {}]
  %s2 = inlined_call_operand.vmem [shape: f32[20,20,72], index: 2, kind: input, shape index: {}]
  %s3 = inlined_call_operand.vmem [shape: f32[20,20,72], index: 3, kind: input, shape index: {}]
  %s4 = inlined_call_operand.vmem [shape: f32[2,20,72], index: 4, kind: output, shape index: {0}]
  %s5 = inlined_call_operand.vmem [shape: f32[2,20,72], index: 5, kind: output, shape index: {1}]
  %6 = xla_tuple %s4, %s5
  %s7 = sld [smem:[#allocation0]]
  $region34: #{fno2d_forward.10} parent=0
    _
  %s9 = ssub.s32 1, %s7
  %s10 = scalar_select 0, %s9, %s7
  // Predicated region
  $region2: #{fno2d_forward.10} parent=0 // pred_check
    _
  $region3: #{fno2d_forward.10} parent=0 // pred_check_branch
    %12 = sbr.rel (0) target = $region5
  $region4: #{fno2d_forward.10} parent=0 // pred_region
    _
  $region5: #{fno2d_forward.10} parent=0 // pred_fallthru
    _
  // Predicated region
  $region6: #{fno2d_forward.10} parent=0 // pred_check
    _
  $region7: #{fno2d_forward.10} parent=0 // pred_check_branch
    %14 = sbr.rel (0) target = $region9
  $region8: #{fno2d_forward.10} parent=0 // pred_region
    _
  $region9: #{fno2d_forward.10} parent=0 // pred_fallthru
    _
  // Predicated region
  $region10: #{fno2d_forward.10} parent=0 // pred_check
    _
  $region11: #{fno2d_forward.10} parent=0 // pred_check_branch
    %16 = sbr.rel (0) target = $region13
  $region12: #{fno2d_forward.10} parent=0 // pred_region
    _
  $region13: #{fno2d_forward.10} parent=0 // pred_fallthru
    _
  // Predicated region
  $region14: #{fno2d_forward.10} parent=0 // pred_check
    _
  $region15: #{fno2d_forward.10} parent=0 // pred_check_branch
    %18 = sbr.rel (0) target = $region17
  $region16: #{fno2d_forward.10} parent=0 // pred_region
    _
  $region17: #{fno2d_forward.10} parent=0 // pred_fallthru
    _
  %v19 = vld [vmem:[%s0] sm:$0x1]
  %v20 = vld [vmem:[%s0 + $0x18] sm:$0x1]
  %v21 = vld [vmem:[%s1] sm:$0x1]
  %v22 = vld [vmem:[%s1 + $0x18] sm:$0x1]
  %v23 = vld [vmem:[%s2] sm:$0xff]
  %v24 = vld [vmem:[%s2 + $0x8] sm:$0xff]
  %v25 = vld [vmem:[%s2 + $0x10] sm:$0xf]
  %v26 = vld [vmem:[%s3] sm:$0xff]
  %v27 = vld [vmem:[%s3 + $0x8] sm:$0xff]
  %v28 = vld [vmem:[%s3 + $0x10] sm:$0xf]
  %v29 = vperm.slane %v19, 0
  %v30 = vperm.slane %v20, 0
  %v31 = vmul.f32 %v29, %v23
  %v32 = vmul.f32 %v29, %v24
  %v33 = vmul.f32 %v29, %v25
  %v34 = vmul.f32 %v30, %v23
  %v35 = vmul.f32 %v30, %v24
  %v36 = vmul.f32 %v30, %v25
  %v37 = vperm.slane %v21, 0
  %v38 = vperm.slane %v22, 0
  %v39 = vmul.f32 %v37, %v26
  %v40 = vmul.f32 %v37, %v27
  %v41 = vmul.f32 %v37, %v28
  %v42 = vmul.f32 %v38, %v26
  %v43 = vmul.f32 %v38, %v27
  %v44 = vmul.f32 %v38, %v28
  %v45 = vsub.f32 %v31, %v39
  %v46 = vsub.f32 %v32, %v40
  %v47 = vsub.f32 %v33, %v41
  %v48 = vsub.f32 %v34, %v42
  %v49 = vsub.f32 %v35, %v43
  %v50 = vsub.f32 %v36, %v44
  %v51 = vadd.f32 %v45, 0.0
  %v52 = vadd.f32 %v46, 0.0
  %v53 = vadd.f32 %v47, 0.0
  %v54 = vadd.f32 %v48, 0.0
  %v55 = vadd.f32 %v49, 0.0
  %v56 = vadd.f32 %v50, 0.0
  %v57 = vmul.f32 %v29, %v26
  %v58 = vmul.f32 %v29, %v27
  %v59 = vmul.f32 %v29, %v28
  %v60 = vmul.f32 %v30, %v26
  %v61 = vmul.f32 %v30, %v27
  %v62 = vmul.f32 %v30, %v28
  %v63 = vmul.f32 %v37, %v23
  %v64 = vmul.f32 %v37, %v24
  %v65 = vmul.f32 %v37, %v25
  %v66 = vmul.f32 %v38, %v23
  %v67 = vmul.f32 %v38, %v24
  %v68 = vmul.f32 %v38, %v25
  %v69 = vadd.f32 %v57, %v63
  %v70 = vadd.f32 %v58, %v64
  %v71 = vadd.f32 %v59, %v65
  %v72 = vadd.f32 %v60, %v66
  %v73 = vadd.f32 %v61, %v67
  %v74 = vadd.f32 %v62, %v68
  %v75 = vadd.f32 %v69, 0.0
  %v76 = vadd.f32 %v70, 0.0
  %v77 = vadd.f32 %v71, 0.0
  %v78 = vadd.f32 %v72, 0.0
  %v79 = vadd.f32 %v73, 0.0
  %v80 = vadd.f32 %v74, 0.0
  %v81 = vld [vmem:[%s0 + $0x1] sm:$0x1]
  %v82 = vld [vmem:[%s0 + $0x19] sm:$0x1]
  %v83 = vld [vmem:[%s1 + $0x1] sm:$0x1]
  %v84 = vld [vmem:[%s1 + $0x19] sm:$0x1]
  %s85 = scalar_lea.vmem %s2, 24
  %v86 = vld [vmem:[%s85] sm:$0xff]
  %v87 = vld [vmem:[%s85 + $0x8] sm:$0xff]
  %v88 = vld [vmem:[%s85 + $0x10] sm:$0xf]
  %s89 = scalar_lea.vmem %s3, 24
  %v90 = vld [vmem:[%s89] sm:$0xff]
  %v91 = vld [vmem:[%s89 + $0x8] sm:$0xff]
  %v92 = vld [vmem:[%s89 + $0x10] sm:$0xf]
  %v93 = vperm.slane %v81, 0
  %v94 = vperm.slane %v82, 0
  %v95 = vmul.f32 %v93, %v86
  %v96 = vmul.f32 %v93, %v87
  %v97 = vmul.f32 %v93, %v88
  %v98 = vmul.f32 %v94, %v86
  %v99 = vmul.f32 %v94, %v87
  %v100 = vmul.f32 %v94, %v88
  %v101 = vperm.slane %v83, 0
  %v102 = vperm.slane %v84, 0
  %v103 = vmul.f32 %v101, %v90
  %v104 = vmul.f32 %v101, %v91
  %v105 = vmul.f32 %v101, %v92
  %v106 = vmul.f32 %v102, %v90
  %v107 = vmul.f32 %v102, %v91
  %v108 = vmul.f32 %v102, %v92
  %v109 = vsub.f32 %v95, %v103
  %v110 = vsub.f32 %v96, %v104
  %v111 = vsub.f32 %v97, %v105
  %v112 = vsub.f32 %v98, %v106
  %v113 = vsub.f32 %v99, %v107
  %v114 = vsub.f32 %v100, %v108
  %v115 = vadd.f32 %v51, %v109
  %v116 = vadd.f32 %v52, %v110
  %v117 = vadd.f32 %v53, %v111
  %v118 = vadd.f32 %v54, %v112
  %v119 = vadd.f32 %v55, %v113
  %v120 = vadd.f32 %v56, %v114
  %v121 = vmul.f32 %v93, %v90
  %v122 = vmul.f32 %v93, %v91
  %v123 = vmul.f32 %v93, %v92
  %v124 = vmul.f32 %v94, %v90
  %v125 = vmul.f32 %v94, %v91
  %v126 = vmul.f32 %v94, %v92
  %v127 = vmul.f32 %v101, %v86
  %v128 = vmul.f32 %v101, %v87
  %v129 = vmul.f32 %v101, %v88
  %v130 = vmul.f32 %v102, %v86
  %v131 = vmul.f32 %v102, %v87
  %v132 = vmul.f32 %v102, %v88
  %v133 = vadd.f32 %v121, %v127
  %v134 = vadd.f32 %v122, %v128
  %v135 = vadd.f32 %v123, %v129
  %v136 = vadd.f32 %v124, %v130
  %v137 = vadd.f32 %v125, %v131
  %v138 = vadd.f32 %v126, %v132
  %v139 = vadd.f32 %v75, %v133
  %v140 = vadd.f32 %v76, %v134
  %v141 = vadd.f32 %v77, %v135
  %v142 = vadd.f32 %v78, %v136
  %v143 = vadd.f32 %v79, %v137
  %v144 = vadd.f32 %v80, %v138
  %v145 = vld [vmem:[%s0 + $0x2] sm:$0x1]
  %v146 = vld [vmem:[%s0 + $0x1a] sm:$0x1]
  %v147 = vld [vmem:[%s1 + $0x2] sm:$0x1]
  %v148 = vld [vmem:[%s1 + $0x1a] sm:$0x1]
  %s149 = scalar_lea.vmem %s2, 48
  %v150 = vld [vmem:[%s149] sm:$0xff]
  %v151 = vld [vmem:[%s149 + $0x8] sm:$0xff]
  %v152 = vld [vmem:[%s149 + $0x10] sm:$0xf]
  %s153 = scalar_lea.vmem %s3, 48
  %v154 = vld [vmem:[%s153] sm:$0xff]
  %v155 = vld [vmem:[%s153 + $0x8] sm:$0xff]
  %v156 = vld [vmem:[%s153 + $0x10] sm:$0xf]
  %v157 = vperm.slane %v145, 0
  %v158 = vperm.slane %v146, 0
  %v159 = vmul.f32 %v157, %v150
  %v160 = vmul.f32 %v157, %v151
  %v161 = vmul.f32 %v157, %v152
  %v162 = vmul.f32 %v158, %v150
  %v163 = vmul.f32 %v158, %v151
  %v164 = vmul.f32 %v158, %v152
  %v165 = vperm.slane %v147, 0
  %v166 = vperm.slane %v148, 0
  %v167 = vmul.f32 %v165, %v154
  %v168 = vmul.f32 %v165, %v155
  %v169 = vmul.f32 %v165, %v156
  %v170 = vmul.f32 %v166, %v154
  %v171 = vmul.f32 %v166, %v155
  %v172 = vmul.f32 %v166, %v156
  %v173 = vsub.f32 %v159, %v167
  %v174 = vsub.f32 %v160, %v168
  %v175 = vsub.f32 %v161, %v169
  %v176 = vsub.f32 %v162, %v170
  %v177 = vsub.f32 %v163, %v171
  %v178 = vsub.f32 %v164, %v172
  %v179 = vadd.f32 %v115, %v173
  %v180 = vadd.f32 %v116, %v174
  %v181 = vadd.f32 %v117, %v175
  %v182 = vadd.f32 %v118, %v176
  %v183 = vadd.f32 %v119, %v177
  %v184 = vadd.f32 %v120, %v178
  %v185 = vmul.f32 %v157, %v154
  %v186 = vmul.f32 %v157, %v155
  %v187 = vmul.f32 %v157, %v156
  %v188 = vmul.f32 %v158, %v154
  %v189 = vmul.f32 %v158, %v155
  %v190 = vmul.f32 %v158, %v156
  %v191 = vmul.f32 %v165, %v150
  %v192 = vmul.f32 %v165, %v151
  %v193 = vmul.f32 %v165, %v152
  %v194 = vmul.f32 %v166, %v150
  %v195 = vmul.f32 %v166, %v151
  %v196 = vmul.f32 %v166, %v152
  %v197 = vadd.f32 %v185, %v191
  %v198 = vadd.f32 %v186, %v192
  %v199 = vadd.f32 %v187, %v193
  %v200 = vadd.f32 %v188, %v194
  %v201 = vadd.f32 %v189, %v195
  %v202 = vadd.f32 %v190, %v196
  %v203 = vadd.f32 %v139, %v197
  %v204 = vadd.f32 %v140, %v198
  %v205 = vadd.f32 %v141, %v199
  %v206 = vadd.f32 %v142, %v200
  %v207 = vadd.f32 %v143, %v201
  %v208 = vadd.f32 %v144, %v202
  %v209 = vld [vmem:[%s0 + $0x3] sm:$0x1]
  %v210 = vld [vmem:[%s0 + $0x1b] sm:$0x1]
  %v211 = vld [vmem:[%s1 + $0x3] sm:$0x1]
  %v212 = vld [vmem:[%s1 + $0x1b] sm:$0x1]
  %s213 = scalar_lea.vmem %s2, 72
  %v214 = vld [vmem:[%s213] sm:$0xff]
  %v215 = vld [vmem:[%s213 + $0x8] sm:$0xff]
  %v216 = vld [vmem:[%s213 + $0x10] sm:$0xf]
  %s217 = scalar_lea.vmem %s3, 72
  %v218 = vld [vmem:[%s217] sm:$0xff]
  %v219 = vld [vmem:[%s217 + $0x8] sm:$0xff]
  %v220 = vld [vmem:[%s217 + $0x10] sm:$0xf]
  %v221 = vperm.slane %v209, 0
  %v222 = vperm.slane %v210, 0
  %v223 = vmul.f32 %v221, %v214
  %v224 = vmul.f32 %v221, %v215
  %v225 = vmul.f32 %v221, %v216
  %v226 = vmul.f32 %v222, %v214
  %v227 = vmul.f32 %v222, %v215
  %v228 = vmul.f32 %v222, %v216
  %v229 = vperm.slane %v211, 0
  %v230 = vperm.slane %v212, 0
  %v231 = vmul.f32 %v229, %v218
  %v232 = vmul.f32 %v229, %v219
  %v233 = vmul.f32 %v229, %v220
  %v234 = vmul.f32 %v230, %v218
  %v235 = vmul.f32 %v230, %v219
  %v236 = vmul.f32 %v230, %v220
  %v237 = vsub.f32 %v223, %v231
  %v238 = vsub.f32 %v224, %v232
  %v239 = vsub.f32 %v225, %v233
  %v240 = vsub.f32 %v226, %v234
  %v241 = vsub.f32 %v227, %v235
  %v242 = vsub.f32 %v228, %v236
  %v243 = vadd.f32 %v179, %v237
  %v244 = vadd.f32 %v180, %v238
  %v245 = vadd.f32 %v181, %v239
  %v246 = vadd.f32 %v182, %v240
  %v247 = vadd.f32 %v183, %v241
  %v248 = vadd.f32 %v184, %v242
  %v249 = vmul.f32 %v221, %v218
  %v250 = vmul.f32 %v221, %v219
  %v251 = vmul.f32 %v221, %v220
  %v252 = vmul.f32 %v222, %v218
  %v253 = vmul.f32 %v222, %v219
  %v254 = vmul.f32 %v222, %v220
  %v255 = vmul.f32 %v229, %v214
  %v256 = vmul.f32 %v229, %v215
  %v257 = vmul.f32 %v229, %v216
  %v258 = vmul.f32 %v230, %v214
  %v259 = vmul.f32 %v230, %v215
  %v260 = vmul.f32 %v230, %v216
  %v261 = vadd.f32 %v249, %v255
  %v262 = vadd.f32 %v250, %v256
  %v263 = vadd.f32 %v251, %v257
  %v264 = vadd.f32 %v252, %v258
  %v265 = vadd.f32 %v253, %v259
  %v266 = vadd.f32 %v254, %v260
  %v267 = vadd.f32 %v203, %v261
  %v268 = vadd.f32 %v204, %v262
  %v269 = vadd.f32 %v205, %v263
  %v270 = vadd.f32 %v206, %v264
  %v271 = vadd.f32 %v207, %v265
  %v272 = vadd.f32 %v208, %v266
  %v273 = vld [vmem:[%s0 + $0x4] sm:$0x1]
  %v274 = vld [vmem:[%s0 + $0x1c] sm:$0x1]
  %v275 = vld [vmem:[%s1 + $0x4] sm:$0x1]
  %v276 = vld [vmem:[%s1 + $0x1c] sm:$0x1]
  %s277 = scalar_lea.vmem %s2, 96
  %v278 = vld [vmem:[%s277] sm:$0xff]
  %v279 = vld [vmem:[%s277 + $0x8] sm:$0xff]
  %v280 = vld [vmem:[%s277 + $0x10] sm:$0xf]
  %s281 = scalar_lea.vmem %s3, 96
  %v282 = vld [vmem:[%s281] sm:$0xff]
  %v283 = vld [vmem:[%s281 + $0x8] sm:$0xff]
  %v284 = vld [vmem:[%s281 + $0x10] sm:$0xf]
  %v285 = vperm.slane %v273, 0
  %v286 = vperm.slane %v274, 0
  %v287 = vmul.f32 %v285, %v278
  %v288 = vmul.f32 %v285, %v279
  %v289 = vmul.f32 %v285, %v280
  %v290 = vmul.f32 %v286, %v278
  %v291 = vmul.f32 %v286, %v279
  %v292 = vmul.f32 %v286, %v280
  %v293 = vperm.slane %v275, 0
  %v294 = vperm.slane %v276, 0
  %v295 = vmul.f32 %v293, %v282
  %v296 = vmul.f32 %v293, %v283
  %v297 = vmul.f32 %v293, %v284
  %v298 = vmul.f32 %v294, %v282
  %v299 = vmul.f32 %v294, %v283
  %v300 = vmul.f32 %v294, %v284
  %v301 = vsub.f32 %v287, %v295
  %v302 = vsub.f32 %v288, %v296
  %v303 = vsub.f32 %v289, %v297
  %v304 = vsub.f32 %v290, %v298
  %v305 = vsub.f32 %v291, %v299
  %v306 = vsub.f32 %v292, %v300
  %v307 = vadd.f32 %v243, %v301
  %v308 = vadd.f32 %v244, %v302
  %v309 = vadd.f32 %v245, %v303
  %v310 = vadd.f32 %v246, %v304
  %v311 = vadd.f32 %v247, %v305
  %v312 = vadd.f32 %v248, %v306
  %v313 = vmul.f32 %v285, %v282
  %v314 = vmul.f32 %v285, %v283
  %v315 = vmul.f32 %v285, %v284
  %v316 = vmul.f32 %v286, %v282
  %v317 = vmul.f32 %v286, %v283
  %v318 = vmul.f32 %v286, %v284
  %v319 = vmul.f32 %v293, %v278
  %v320 = vmul.f32 %v293, %v279
  %v321 = vmul.f32 %v293, %v280
  %v322 = vmul.f32 %v294, %v278
  %v323 = vmul.f32 %v294, %v279
  %v324 = vmul.f32 %v294, %v280
  %v325 = vadd.f32 %v313, %v319
  %v326 = vadd.f32 %v314, %v320
  %v327 = vadd.f32 %v315, %v321
  %v328 = vadd.f32 %v316, %v322
  %v329 = vadd.f32 %v317, %v323
  %v330 = vadd.f32 %v318, %v324
  %v331 = vadd.f32 %v267, %v325
  %v332 = vadd.f32 %v268, %v326
  %v333 = vadd.f32 %v269, %v327
  %v334 = vadd.f32 %v270, %v328
  %v335 = vadd.f32 %v271, %v329
  %v336 = vadd.f32 %v272, %v330
  %v337 = vld [vmem:[%s0 + $0x5] sm:$0x1]
  %v338 = vld [vmem:[%s0 + $0x1d] sm:$0x1]
  %v339 = vld [vmem:[%s1 + $0x5] sm:$0x1]
  %v340 = vld [vmem:[%s1 + $0x1d] sm:$0x1]
  %s341 = scalar_lea.vmem %s2, 120
  %v342 = vld [vmem:[%s341] sm:$0xff]
  %v343 = vld [vmem:[%s341 + $0x8] sm:$0xff]
  %v344 = vld [vmem:[%s341 + $0x10] sm:$0xf]
  %s345 = scalar_lea.vmem %s3, 120
  %v346 = vld [vmem:[%s345] sm:$0xff]
  %v347 = vld [vmem:[%s345 + $0x8] sm:$0xff]
  %v348 = vld [vmem:[%s345 + $0x10] sm:$0xf]
  %v349 = vperm.slane %v337, 0
  %v350 = vperm.slane %v338, 0
  %v351 = vmul.f32 %v349, %v342
  %v352 = vmul.f32 %v349, %v343
  %v353 = vmul.f32 %v349, %v344
  %v354 = vmul.f32 %v350, %v342
  %v355 = vmul.f32 %v350, %v343
  %v356 = vmul.f32 %v350, %v344
  %v357 = vperm.slane %v339, 0
  %v358 = vperm.slane %v340, 0
  %v359 = vmul.f32 %v357, %v346
  %v360 = vmul.f32 %v357, %v347
  %v361 = vmul.f32 %v357, %v348
  %v362 = vmul.f32 %v358, %v346
  %v363 = vmul.f32 %v358, %v347
  %v364 = vmul.f32 %v358, %v348
  %v365 = vsub.f32 %v351, %v359
  %v366 = vsub.f32 %v352, %v360
  %v367 = vsub.f32 %v353, %v361
  %v368 = vsub.f32 %v354, %v362
  %v369 = vsub.f32 %v355, %v363
  %v370 = vsub.f32 %v356, %v364
  %v371 = vadd.f32 %v307, %v365
  %v372 = vadd.f32 %v308, %v366
  %v373 = vadd.f32 %v309, %v367
  %v374 = vadd.f32 %v310, %v368
  %v375 = vadd.f32 %v311, %v369
  %v376 = vadd.f32 %v312, %v370
  %v377 = vmul.f32 %v349, %v346
  %v378 = vmul.f32 %v349, %v347
  %v379 = vmul.f32 %v349, %v348
  %v380 = vmul.f32 %v350, %v346
  %v381 = vmul.f32 %v350, %v347
  %v382 = vmul.f32 %v350, %v348
  %v383 = vmul.f32 %v357, %v342
  %v384 = vmul.f32 %v357, %v343
  %v385 = vmul.f32 %v357, %v344
  %v386 = vmul.f32 %v358, %v342
  %v387 = vmul.f32 %v358, %v343
  %v388 = vmul.f32 %v358, %v344
  %v389 = vadd.f32 %v377, %v383
  %v390 = vadd.f32 %v378, %v384
  %v391 = vadd.f32 %v379, %v385
  %v392 = vadd.f32 %v380, %v386
  %v393 = vadd.f32 %v381, %v387
  %v394 = vadd.f32 %v382, %v388
  %v395 = vadd.f32 %v331, %v389
  %v396 = vadd.f32 %v332, %v390
  %v397 = vadd.f32 %v333, %v391
  %v398 = vadd.f32 %v334, %v392
  %v399 = vadd.f32 %v335, %v393
  %v400 = vadd.f32 %v336, %v394
  %v401 = vld [vmem:[%s0 + $0x6] sm:$0x1]
  %v402 = vld [vmem:[%s0 + $0x1e] sm:$0x1]
  %v403 = vld [vmem:[%s1 + $0x6] sm:$0x1]
  %v404 = vld [vmem:[%s1 + $0x1e] sm:$0x1]
  %s405 = scalar_lea.vmem %s2, 144
  %v406 = vld [vmem:[%s405] sm:$0xff]
  %v407 = vld [vmem:[%s405 + $0x8] sm:$0xff]
  %v408 = vld [vmem:[%s405 + $0x10] sm:$0xf]
  %s409 = scalar_lea.vmem %s3, 144
  %v410 = vld [vmem:[%s409] sm:$0xff]
  %v411 = vld [vmem:[%s409 + $0x8] sm:$0xff]
  %v412 = vld [vmem:[%s409 + $0x10] sm:$0xf]
  %v413 = vperm.slane %v401, 0
  %v414 = vperm.slane %v402, 0
  %v415 = vmul.f32 %v413, %v406
  %v416 = vmul.f32 %v413, %v407
  %v417 = vmul.f32 %v413, %v408
  %v418 = vmul.f32 %v414, %v406
  %v419 = vmul.f32 %v414, %v407
  %v420 = vmul.f32 %v414, %v408
  %v421 = vperm.slane %v403, 0
  %v422 = vperm.slane %v404, 0
  %v423 = vmul.f32 %v421, %v410
  %v424 = vmul.f32 %v421, %v411
  %v425 = vmul.f32 %v421, %v412
  %v426 = vmul.f32 %v422, %v410
  %v427 = vmul.f32 %v422, %v411
  %v428 = vmul.f32 %v422, %v412
  %v429 = vsub.f32 %v415, %v423
  %v430 = vsub.f32 %v416, %v424
  %v431 = vsub.f32 %v417, %v425
  %v432 = vsub.f32 %v418, %v426
  %v433 = vsub.f32 %v419, %v427
  %v434 = vsub.f32 %v420, %v428
  %v435 = vadd.f32 %v371, %v429
  %v436 = vadd.f32 %v372, %v430
  %v437 = vadd.f32 %v373, %v431
  %v438 = vadd.f32 %v374, %v432
  %v439 = vadd.f32 %v375, %v433
  %v440 = vadd.f32 %v376, %v434
  %v441 = vmul.f32 %v413, %v410
  %v442 = vmul.f32 %v413, %v411
  %v443 = vmul.f32 %v413, %v412
  %v444 = vmul.f32 %v414, %v410
  %v445 = vmul.f32 %v414, %v411
  %v446 = vmul.f32 %v414, %v412
  %v447 = vmul.f32 %v421, %v406
  %v448 = vmul.f32 %v421, %v407
  %v449 = vmul.f32 %v421, %v408
  %v450 = vmul.f32 %v422, %v406
  %v451 = vmul.f32 %v422, %v407
  %v452 = vmul.f32 %v422, %v408
  %v453 = vadd.f32 %v441, %v447
  %v454 = vadd.f32 %v442, %v448
  %v455 = vadd.f32 %v443, %v449
  %v456 = vadd.f32 %v444, %v450
  %v457 = vadd.f32 %v445, %v451
  %v458 = vadd.f32 %v446, %v452
  %v459 = vadd.f32 %v395, %v453
  %v460 = vadd.f32 %v396, %v454
  %v461 = vadd.f32 %v397, %v455
  %v462 = vadd.f32 %v398, %v456
  %v463 = vadd.f32 %v399, %v457
  %v464 = vadd.f32 %v400, %v458
  %v465 = vld [vmem:[%s0 + $0x7] sm:$0x1]
  %v466 = vld [vmem:[%s0 + $0x1f] sm:$0x1]
  %v467 = vld [vmem:[%s1 + $0x7] sm:$0x1]
  %v468 = vld [vmem:[%s1 + $0x1f] sm:$0x1]
  %s469 = scalar_lea.vmem %s2, 168
  %v470 = vld [vmem:[%s469] sm:$0xff]
  %v471 = vld [vmem:[%s469 + $0x8] sm:$0xff]
  %v472 = vld [vmem:[%s469 + $0x10] sm:$0xf]
  %s473 = scalar_lea.vmem %s3, 168
  %v474 = vld [vmem:[%s473] sm:$0xff]
  %v475 = vld [vmem:[%s473 + $0x8] sm:$0xff]
  %v476 = vld [vmem:[%s473 + $0x10] sm:$0xf]
  %v477 = vperm.slane %v465, 0
  %v478 = vperm.slane %v466, 0
  %v479 = vmul.f32 %v477, %v470
  %v480 = vmul.f32 %v477, %v471
  %v481 = vmul.f32 %v477, %v472
  %v482 = vmul.f32 %v478, %v470
  %v483 = vmul.f32 %v478, %v471
  %v484 = vmul.f32 %v478, %v472
  %v485 = vperm.slane %v467, 0
  %v486 = vperm.slane %v468, 0
  %v487 = vmul.f32 %v485, %v474
  %v488 = vmul.f32 %v485, %v475
  %v489 = vmul.f32 %v485, %v476
  %v490 = vmul.f32 %v486, %v474
  %v491 = vmul.f32 %v486, %v475
  %v492 = vmul.f32 %v486, %v476
  %v493 = vsub.f32 %v479, %v487
  %v494 = vsub.f32 %v480, %v488
  %v495 = vsub.f32 %v481, %v489
  %v496 = vsub.f32 %v482, %v490
  %v497 = vsub.f32 %v483, %v491
  %v498 = vsub.f32 %v484, %v492
  %v499 = vadd.f32 %v435, %v493
  %v500 = vadd.f32 %v436, %v494
  %v501 = vadd.f32 %v437, %v495
  %v502 = vadd.f32 %v438, %v496
  %v503 = vadd.f32 %v439, %v497
  %v504 = vadd.f32 %v440, %v498
  %v505 = vmul.f32 %v477, %v474
  %v506 = vmul.f32 %v477, %v475
  %v507 = vmul.f32 %v477, %v476
  %v508 = vmul.f32 %v478, %v474
  %v509 = vmul.f32 %v478, %v475
  %v510 = vmul.f32 %v478, %v476
  %v511 = vmul.f32 %v485, %v470
  %v512 = vmul.f32 %v485, %v471
  %v513 = vmul.f32 %v485, %v472
  %v514 = vmul.f32 %v486, %v470
  %v515 = vmul.f32 %v486, %v471
  %v516 = vmul.f32 %v486, %v472
  %v517 = vadd.f32 %v505, %v511
  %v518 = vadd.f32 %v506, %v512
  %v519 = vadd.f32 %v507, %v513
  %v520 = vadd.f32 %v508, %v514
  %v521 = vadd.f32 %v509, %v515
  %v522 = vadd.f32 %v510, %v516
  %v523 = vadd.f32 %v459, %v517
  %v524 = vadd.f32 %v460, %v518
  %v525 = vadd.f32 %v461, %v519
  %v526 = vadd.f32 %v462, %v520
  %v527 = vadd.f32 %v463, %v521
  %v528 = vadd.f32 %v464, %v522
  %v529 = vld [vmem:[%s0 + $0x8] sm:$0x1]
  %v530 = vld [vmem:[%s0 + $0x20] sm:$0x1]
  %v531 = vld [vmem:[%s1 + $0x8] sm:$0x1]
  %v532 = vld [vmem:[%s1 + $0x20] sm:$0x1]
  %s533 = scalar_lea.vmem %s2, 192
  %v534 = vld [vmem:[%s533] sm:$0xff]
  %v535 = vld [vmem:[%s533 + $0x8] sm:$0xff]
  %v536 = vld [vmem:[%s533 + $0x10] sm:$0xf]
  %s537 = scalar_lea.vmem %s3, 192
  %v538 = vld [vmem:[%s537] sm:$0xff]
  %v539 = vld [vmem:[%s537 + $0x8] sm:$0xff]
  %v540 = vld [vmem:[%s537 + $0x10] sm:$0xf]
  %v541 = vperm.slane %v529, 0
  %v542 = vperm.slane %v530, 0
  %v543 = vmul.f32 %v541, %v534
  %v544 = vmul.f32 %v541, %v535
  %v545 = vmul.f32 %v541, %v536
  %v546 = vmul.f32 %v542, %v534
  %v547 = vmul.f32 %v542, %v535
  %v548 = vmul.f32 %v542, %v536
  %v549 = vperm.slane %v531, 0
  %v550 = vperm.slane %v532, 0
  %v551 = vmul.f32 %v549, %v538
  %v552 = vmul.f32 %v549, %v539
  %v553 = vmul.f32 %v549, %v540
  %v554 = vmul.f32 %v550, %v538
  %v555 = vmul.f32 %v550, %v539
  %v556 = vmul.f32 %v550, %v540
  %v557 = vsub.f32 %v543, %v551
  %v558 = vsub.f32 %v544, %v552
  %v559 = vsub.f32 %v545, %v553
  %v560 = vsub.f32 %v546, %v554
  %v561 = vsub.f32 %v547, %v555
  %v562 = vsub.f32 %v548, %v556
  %v563 = vadd.f32 %v499, %v557
  %v564 = vadd.f32 %v500, %v558
  %v565 = vadd.f32 %v501, %v559
  %v566 = vadd.f32 %v502, %v560
  %v567 = vadd.f32 %v503, %v561
  %v568 = vadd.f32 %v504, %v562
  %v569 = vmul.f32 %v541, %v538
  %v570 = vmul.f32 %v541, %v539
  %v571 = vmul.f32 %v541, %v540
  %v572 = vmul.f32 %v542, %v538
  %v573 = vmul.f32 %v542, %v539
  %v574 = vmul.f32 %v542, %v540
  %v575 = vmul.f32 %v549, %v534
  %v576 = vmul.f32 %v549, %v535
  %v577 = vmul.f32 %v549, %v536
  %v578 = vmul.f32 %v550, %v534
  %v579 = vmul.f32 %v550, %v535
  %v580 = vmul.f32 %v550, %v536
  %v581 = vadd.f32 %v569, %v575
  %v582 = vadd.f32 %v570, %v576
  %v583 = vadd.f32 %v571, %v577
  %v584 = vadd.f32 %v572, %v578
  %v585 = vadd.f32 %v573, %v579
  %v586 = vadd.f32 %v574, %v580
  %v587 = vadd.f32 %v523, %v581
  %v588 = vadd.f32 %v524, %v582
  %v589 = vadd.f32 %v525, %v583
  %v590 = vadd.f32 %v526, %v584
  %v591 = vadd.f32 %v527, %v585
  %v592 = vadd.f32 %v528, %v586
  %v593 = vld [vmem:[%s0 + $0x9] sm:$0x1]
  %v594 = vld [vmem:[%s0 + $0x21] sm:$0x1]
  %v595 = vld [vmem:[%s1 + $0x9] sm:$0x1]
  %v596 = vld [vmem:[%s1 + $0x21] sm:$0x1]
  %s597 = scalar_lea.vmem %s2, 216
  %v598 = vld [vmem:[%s597] sm:$0xff]
  %v599 = vld [vmem:[%s597 + $0x8] sm:$0xff]
  %v600 = vld [vmem:[%s597 + $0x10] sm:$0xf]
  %s601 = scalar_lea.vmem %s3, 216
  %v602 = vld [vmem:[%s601] sm:$0xff]
  %v603 = vld [vmem:[%s601 + $0x8] sm:$0xff]
  %v604 = vld [vmem:[%s601 + $0x10] sm:$0xf]
  %v605 = vperm.slane %v593, 0
  %v606 = vperm.slane %v594, 0
  %v607 = vmul.f32 %v605, %v598
  %v608 = vmul.f32 %v605, %v599
  %v609 = vmul.f32 %v605, %v600
  %v610 = vmul.f32 %v606, %v598
  %v611 = vmul.f32 %v606, %v599
  %v612 = vmul.f32 %v606, %v600
  %v613 = vperm.slane %v595, 0
  %v614 = vperm.slane %v596, 0
  %v615 = vmul.f32 %v613, %v602
  %v616 = vmul.f32 %v613, %v603
  %v617 = vmul.f32 %v613, %v604
  %v618 = vmul.f32 %v614, %v602
  %v619 = vmul.f32 %v614, %v603
  %v620 = vmul.f32 %v614, %v604
  %v621 = vsub.f32 %v607, %v615
  %v622 = vsub.f32 %v608, %v616
  %v623 = vsub.f32 %v609, %v617
  %v624 = vsub.f32 %v610, %v618
  %v625 = vsub.f32 %v611, %v619
  %v626 = vsub.f32 %v612, %v620
  %v627 = vadd.f32 %v563, %v621
  %v628 = vadd.f32 %v564, %v622
  %v629 = vadd.f32 %v565, %v623
  %v630 = vadd.f32 %v566, %v624
  %v631 = vadd.f32 %v567, %v625
  %v632 = vadd.f32 %v568, %v626
  %v633 = vmul.f32 %v605, %v602
  %v634 = vmul.f32 %v605, %v603
  %v635 = vmul.f32 %v605, %v604
  %v636 = vmul.f32 %v606, %v602
  %v637 = vmul.f32 %v606, %v603
  %v638 = vmul.f32 %v606, %v604
  %v639 = vmul.f32 %v613, %v598
  %v640 = vmul.f32 %v613, %v599
  %v641 = vmul.f32 %v613, %v600
  %v642 = vmul.f32 %v614, %v598
  %v643 = vmul.f32 %v614, %v599
  %v644 = vmul.f32 %v614, %v600
  %v645 = vadd.f32 %v633, %v639
  %v646 = vadd.f32 %v634, %v640
  %v647 = vadd.f32 %v635, %v641
  %v648 = vadd.f32 %v636, %v642
  %v649 = vadd.f32 %v637, %v643
  %v650 = vadd.f32 %v638, %v644
  %v651 = vadd.f32 %v587, %v645
  %v652 = vadd.f32 %v588, %v646
  %v653 = vadd.f32 %v589, %v647
  %v654 = vadd.f32 %v590, %v648
  %v655 = vadd.f32 %v591, %v649
  %v656 = vadd.f32 %v592, %v650
  %v657 = vld [vmem:[%s0 + $0xa] sm:$0x1]
  %v658 = vld [vmem:[%s0 + $0x22] sm:$0x1]
  %v659 = vld [vmem:[%s1 + $0xa] sm:$0x1]
  %v660 = vld [vmem:[%s1 + $0x22] sm:$0x1]
  %s661 = scalar_lea.vmem %s2, 240
  %v662 = vld [vmem:[%s661] sm:$0xff]
  %v663 = vld [vmem:[%s661 + $0x8] sm:$0xff]
  %v664 = vld [vmem:[%s661 + $0x10] sm:$0xf]
  %s665 = scalar_lea.vmem %s3, 240
  %v666 = vld [vmem:[%s665] sm:$0xff]
  %v667 = vld [vmem:[%s665 + $0x8] sm:$0xff]
  %v668 = vld [vmem:[%s665 + $0x10] sm:$0xf]
  %v669 = vperm.slane %v657, 0
  %v670 = vperm.slane %v658, 0
  %v671 = vmul.f32 %v669, %v662
  %v672 = vmul.f32 %v669, %v663
  %v673 = vmul.f32 %v669, %v664
  %v674 = vmul.f32 %v670, %v662
  %v675 = vmul.f32 %v670, %v663
  %v676 = vmul.f32 %v670, %v664
  %v677 = vperm.slane %v659, 0
  %v678 = vperm.slane %v660, 0
  %v679 = vmul.f32 %v677, %v666
  %v680 = vmul.f32 %v677, %v667
  %v681 = vmul.f32 %v677, %v668
  %v682 = vmul.f32 %v678, %v666
  %v683 = vmul.f32 %v678, %v667
  %v684 = vmul.f32 %v678, %v668
  %v685 = vsub.f32 %v671, %v679
  %v686 = vsub.f32 %v672, %v680
  %v687 = vsub.f32 %v673, %v681
  %v688 = vsub.f32 %v674, %v682
  %v689 = vsub.f32 %v675, %v683
  %v690 = vsub.f32 %v676, %v684
  %v691 = vadd.f32 %v627, %v685
  %v692 = vadd.f32 %v628, %v686
  %v693 = vadd.f32 %v629, %v687
  %v694 = vadd.f32 %v630, %v688
  %v695 = vadd.f32 %v631, %v689
  %v696 = vadd.f32 %v632, %v690
  %v697 = vmul.f32 %v669, %v666
  %v698 = vmul.f32 %v669, %v667
  %v699 = vmul.f32 %v669, %v668
  %v700 = vmul.f32 %v670, %v666
  %v701 = vmul.f32 %v670, %v667
  %v702 = vmul.f32 %v670, %v668
  %v703 = vmul.f32 %v677, %v662
  %v704 = vmul.f32 %v677, %v663
  %v705 = vmul.f32 %v677, %v664
  %v706 = vmul.f32 %v678, %v662
  %v707 = vmul.f32 %v678, %v663
  %v708 = vmul.f32 %v678, %v664
  %v709 = vadd.f32 %v697, %v703
  %v710 = vadd.f32 %v698, %v704
  %v711 = vadd.f32 %v699, %v705
  %v712 = vadd.f32 %v700, %v706
  %v713 = vadd.f32 %v701, %v707
  %v714 = vadd.f32 %v702, %v708
  %v715 = vadd.f32 %v651, %v709
  %v716 = vadd.f32 %v652, %v710
  %v717 = vadd.f32 %v653, %v711
  %v718 = vadd.f32 %v654, %v712
  %v719 = vadd.f32 %v655, %v713
  %v720 = vadd.f32 %v656, %v714
  %v721 = vld [vmem:[%s0 + $0xb] sm:$0x1]
  %v722 = vld [vmem:[%s0 + $0x23] sm:$0x1]
  %v723 = vld [vmem:[%s1 + $0xb] sm:$0x1]
  %v724 = vld [vmem:[%s1 + $0x23] sm:$0x1]
  %s725 = scalar_lea.vmem %s2, 264
  %v726 = vld [vmem:[%s725] sm:$0xff]
  %v727 = vld [vmem:[%s725 + $0x8] sm:$0xff]
  %v728 = vld [vmem:[%s725 + $0x10] sm:$0xf]
  %s729 = scalar_lea.vmem %s3, 264
  %v730 = vld [vmem:[%s729] sm:$0xff]
  %v731 = vld [vmem:[%s729 + $0x8] sm:$0xff]
  %v732 = vld [vmem:[%s729 + $0x10] sm:$0xf]
  %v733 = vperm.slane %v721, 0
  %v734 = vperm.slane %v722, 0
  %v735 = vmul.f32 %v733, %v726
  %v736 = vmul.f32 %v733, %v727
  %v737 = vmul.f32 %v733, %v728
  %v738 = vmul.f32 %v734, %v726
  %v739 = vmul.f32 %v734, %v727
  %v740 = vmul.f32 %v734, %v728
  %v741 = vperm.slane %v723, 0
  %v742 = vperm.slane %v724, 0
  %v743 = vmul.f32 %v741, %v730
  %v744 = vmul.f32 %v741, %v731
  %v745 = vmul.f32 %v741, %v732
  %v746 = vmul.f32 %v742, %v730
  %v747 = vmul.f32 %v742, %v731
  %v748 = vmul.f32 %v742, %v732
  %v749 = vsub.f32 %v735, %v743
  %v750 = vsub.f32 %v736, %v744
  %v751 = vsub.f32 %v737, %v745
  %v752 = vsub.f32 %v738, %v746
  %v753 = vsub.f32 %v739, %v747
  %v754 = vsub.f32 %v740, %v748
  %v755 = vadd.f32 %v691, %v749
  %v756 = vadd.f32 %v692, %v750
  %v757 = vadd.f32 %v693, %v751
  %v758 = vadd.f32 %v694, %v752
  %v759 = vadd.f32 %v695, %v753
  %v760 = vadd.f32 %v696, %v754
  %v761 = vmul.f32 %v733, %v730
  %v762 = vmul.f32 %v733, %v731
  %v763 = vmul.f32 %v733, %v732
  %v764 = vmul.f32 %v734, %v730
  %v765 = vmul.f32 %v734, %v731
  %v766 = vmul.f32 %v734, %v732
  %v767 = vmul.f32 %v741, %v726
  %v768 = vmul.f32 %v741, %v727
  %v769 = vmul.f32 %v741, %v728
  %v770 = vmul.f32 %v742, %v726
  %v771 = vmul.f32 %v742, %v727
  %v772 = vmul.f32 %v742, %v728
  %v773 = vadd.f32 %v761, %v767
  %v774 = vadd.f32 %v762, %v768
  %v775 = vadd.f32 %v763, %v769
  %v776 = vadd.f32 %v764, %v770
  %v777 = vadd.f32 %v765, %v771
  %v778 = vadd.f32 %v766, %v772
  %v779 = vadd.f32 %v715, %v773
  %v780 = vadd.f32 %v716, %v774
  %v781 = vadd.f32 %v717, %v775
  %v782 = vadd.f32 %v718, %v776
  %v783 = vadd.f32 %v719, %v777
  %v784 = vadd.f32 %v720, %v778
  %v785 = vld [vmem:[%s0 + $0xc] sm:$0x1]
  %v786 = vld [vmem:[%s0 + $0x24] sm:$0x1]
  %v787 = vld [vmem:[%s1 + $0xc] sm:$0x1]
  %v788 = vld [vmem:[%s1 + $0x24] sm:$0x1]
  %s789 = scalar_lea.vmem %s2, 288
  %v790 = vld [vmem:[%s789] sm:$0xff]
  %v791 = vld [vmem:[%s789 + $0x8] sm:$0xff]
  %v792 = vld [vmem:[%s789 + $0x10] sm:$0xf]
  %s793 = scalar_lea.vmem %s3, 288
  %v794 = vld [vmem:[%s793] sm:$0xff]
  %v795 = vld [vmem:[%s793 + $0x8] sm:$0xff]
  %v796 = vld [vmem:[%s793 + $0x10] sm:$0xf]
  %v797 = vperm.slane %v785, 0
  %v798 = vperm.slane %v786, 0
  %v799 = vmul.f32 %v797, %v790
  %v800 = vmul.f32 %v797, %v791
  %v801 = vmul.f32 %v797, %v792
  %v802 = vmul.f32 %v798, %v790
  %v803 = vmul.f32 %v798, %v791
  %v804 = vmul.f32 %v798, %v792
  %v805 = vperm.slane %v787, 0
  %v806 = vperm.slane %v788, 0
  %v807 = vmul.f32 %v805, %v794
  %v808 = vmul.f32 %v805, %v795
  %v809 = vmul.f32 %v805, %v796
  %v810 = vmul.f32 %v806, %v794
  %v811 = vmul.f32 %v806, %v795
  %v812 = vmul.f32 %v806, %v796
  %v813 = vsub.f32 %v799, %v807
  %v814 = vsub.f32 %v800, %v808
  %v815 = vsub.f32 %v801, %v809
  %v816 = vsub.f32 %v802, %v810
  %v817 = vsub.f32 %v803, %v811
  %v818 = vsub.f32 %v804, %v812
  %v819 = vadd.f32 %v755, %v813
  %v820 = vadd.f32 %v756, %v814
  %v821 = vadd.f32 %v757, %v815
  %v822 = vadd.f32 %v758, %v816
  %v823 = vadd.f32 %v759, %v817
  %v824 = vadd.f32 %v760, %v818
  %v825 = vmul.f32 %v797, %v794
  %v826 = vmul.f32 %v797, %v795
  %v827 = vmul.f32 %v797, %v796
  %v828 = vmul.f32 %v798, %v794
  %v829 = vmul.f32 %v798, %v795
  %v830 = vmul.f32 %v798, %v796
  %v831 = vmul.f32 %v805, %v790
  %v832 = vmul.f32 %v805, %v791
  %v833 = vmul.f32 %v805, %v792
  %v834 = vmul.f32 %v806, %v790
  %v835 = vmul.f32 %v806, %v791
  %v836 = vmul.f32 %v806, %v792
  %v837 = vadd.f32 %v825, %v831
  %v838 = vadd.f32 %v826, %v832
  %v839 = vadd.f32 %v827, %v833
  %v840 = vadd.f32 %v828, %v834
  %v841 = vadd.f32 %v829, %v835
  %v842 = vadd.f32 %v830, %v836
  %v843 = vadd.f32 %v779, %v837
  %v844 = vadd.f32 %v780, %v838
  %v845 = vadd.f32 %v781, %v839
  %v846 = vadd.f32 %v782, %v840
  %v847 = vadd.f32 %v783, %v841
  %v848 = vadd.f32 %v784, %v842
  %v849 = vld [vmem:[%s0 + $0xd] sm:$0x1]
  %v850 = vld [vmem:[%s0 + $0x25] sm:$0x1]
  %v851 = vld [vmem:[%s1 + $0xd] sm:$0x1]
  %v852 = vld [vmem:[%s1 + $0x25] sm:$0x1]
  %s853 = scalar_lea.vmem %s2, 312
  %v854 = vld [vmem:[%s853] sm:$0xff]
  %v855 = vld [vmem:[%s853 + $0x8] sm:$0xff]
  %v856 = vld [vmem:[%s853 + $0x10] sm:$0xf]
  %s857 = scalar_lea.vmem %s3, 312
  %v858 = vld [vmem:[%s857] sm:$0xff]
  %v859 = vld [vmem:[%s857 + $0x8] sm:$0xff]
  %v860 = vld [vmem:[%s857 + $0x10] sm:$0xf]
  %v861 = vperm.slane %v849, 0
  %v862 = vperm.slane %v850, 0
  %v863 = vmul.f32 %v861, %v854
  %v864 = vmul.f32 %v861, %v855
  %v865 = vmul.f32 %v861, %v856
  %v866 = vmul.f32 %v862, %v854
  %v867 = vmul.f32 %v862, %v855
  %v868 = vmul.f32 %v862, %v856
  %v869 = vperm.slane %v851, 0
  %v870 = vperm.slane %v852, 0
  %v871 = vmul.f32 %v869, %v858
  %v872 = vmul.f32 %v869, %v859
  %v873 = vmul.f32 %v869, %v860
  %v874 = vmul.f32 %v870, %v858
  %v875 = vmul.f32 %v870, %v859
  %v876 = vmul.f32 %v870, %v860
  %v877 = vsub.f32 %v863, %v871
  %v878 = vsub.f32 %v864, %v872
  %v879 = vsub.f32 %v865, %v873
  %v880 = vsub.f32 %v866, %v874
  %v881 = vsub.f32 %v867, %v875
  %v882 = vsub.f32 %v868, %v876
  %v883 = vadd.f32 %v819, %v877
  %v884 = vadd.f32 %v820, %v878
  %v885 = vadd.f32 %v821, %v879
  %v886 = vadd.f32 %v822, %v880
  %v887 = vadd.f32 %v823, %v881
  %v888 = vadd.f32 %v824, %v882
  %v889 = vmul.f32 %v861, %v858
  %v890 = vmul.f32 %v861, %v859
  %v891 = vmul.f32 %v861, %v860
  %v892 = vmul.f32 %v862, %v858
  %v893 = vmul.f32 %v862, %v859
  %v894 = vmul.f32 %v862, %v860
  %v895 = vmul.f32 %v869, %v854
  %v896 = vmul.f32 %v869, %v855
  %v897 = vmul.f32 %v869, %v856
  %v898 = vmul.f32 %v870, %v854
  %v899 = vmul.f32 %v870, %v855
  %v900 = vmul.f32 %v870, %v856
  %v901 = vadd.f32 %v889, %v895
  %v902 = vadd.f32 %v890, %v896
  %v903 = vadd.f32 %v891, %v897
  %v904 = vadd.f32 %v892, %v898
  %v905 = vadd.f32 %v893, %v899
  %v906 = vadd.f32 %v894, %v900
  %v907 = vadd.f32 %v843, %v901
  %v908 = vadd.f32 %v844, %v902
  %v909 = vadd.f32 %v845, %v903
  %v910 = vadd.f32 %v846, %v904
  %v911 = vadd.f32 %v847, %v905
  %v912 = vadd.f32 %v848, %v906
  %v913 = vld [vmem:[%s0 + $0xe] sm:$0x1]
  %v914 = vld [vmem:[%s0 + $0x26] sm:$0x1]
  %v915 = vld [vmem:[%s1 + $0xe] sm:$0x1]
  %v916 = vld [vmem:[%s1 + $0x26] sm:$0x1]
  %s917 = scalar_lea.vmem %s2, 336
  %v918 = vld [vmem:[%s917] sm:$0xff]
  %v919 = vld [vmem:[%s917 + $0x8] sm:$0xff]
  %v920 = vld [vmem:[%s917 + $0x10] sm:$0xf]
  %s921 = scalar_lea.vmem %s3, 336
  %v922 = vld [vmem:[%s921] sm:$0xff]
  %v923 = vld [vmem:[%s921 + $0x8] sm:$0xff]
  %v924 = vld [vmem:[%s921 + $0x10] sm:$0xf]
  %v925 = vperm.slane %v913, 0
  %v926 = vperm.slane %v914, 0
  %v927 = vmul.f32 %v925, %v918
  %v928 = vmul.f32 %v925, %v919
  %v929 = vmul.f32 %v925, %v920
  %v930 = vmul.f32 %v926, %v918
  %v931 = vmul.f32 %v926, %v919
  %v932 = vmul.f32 %v926, %v920
  %v933 = vperm.slane %v915, 0
  %v934 = vperm.slane %v916, 0
  %v935 = vmul.f32 %v933, %v922
  %v936 = vmul.f32 %v933, %v923
  %v937 = vmul.f32 %v933, %v924
  %v938 = vmul.f32 %v934, %v922
  %v939 = vmul.f32 %v934, %v923
  %v940 = vmul.f32 %v934, %v924
  %v941 = vsub.f32 %v927, %v935
  %v942 = vsub.f32 %v928, %v936
  %v943 = vsub.f32 %v929, %v937
  %v944 = vsub.f32 %v930, %v938
  %v945 = vsub.f32 %v931, %v939
  %v946 = vsub.f32 %v932, %v940
  %v947 = vadd.f32 %v883, %v941
  %v948 = vadd.f32 %v884, %v942
  %v949 = vadd.f32 %v885, %v943
  %v950 = vadd.f32 %v886, %v944
  %v951 = vadd.f32 %v887, %v945
  %v952 = vadd.f32 %v888, %v946
  %v953 = vmul.f32 %v925, %v922
  %v954 = vmul.f32 %v925, %v923
  %v955 = vmul.f32 %v925, %v924
  %v956 = vmul.f32 %v926, %v922
  %v957 = vmul.f32 %v926, %v923
  %v958 = vmul.f32 %v926, %v924
  %v959 = vmul.f32 %v933, %v918
  %v960 = vmul.f32 %v933, %v919
  %v961 = vmul.f32 %v933, %v920
  %v962 = vmul.f32 %v934, %v918
  %v963 = vmul.f32 %v934, %v919
  %v964 = vmul.f32 %v934, %v920
  %v965 = vadd.f32 %v953, %v959
  %v966 = vadd.f32 %v954, %v960
  %v967 = vadd.f32 %v955, %v961
  %v968 = vadd.f32 %v956, %v962
  %v969 = vadd.f32 %v957, %v963
  %v970 = vadd.f32 %v958, %v964
  %v971 = vadd.f32 %v907, %v965
  %v972 = vadd.f32 %v908, %v966
  %v973 = vadd.f32 %v909, %v967
  %v974 = vadd.f32 %v910, %v968
  %v975 = vadd.f32 %v911, %v969
  %v976 = vadd.f32 %v912, %v970
  %v977 = vld [vmem:[%s0 + $0xf] sm:$0x1]
  %v978 = vld [vmem:[%s0 + $0x27] sm:$0x1]
  %v979 = vld [vmem:[%s1 + $0xf] sm:$0x1]
  %v980 = vld [vmem:[%s1 + $0x27] sm:$0x1]
  %s981 = scalar_lea.vmem %s2, 360
  %v982 = vld [vmem:[%s981] sm:$0xff]
  %v983 = vld [vmem:[%s981 + $0x8] sm:$0xff]
  %v984 = vld [vmem:[%s981 + $0x10] sm:$0xf]
  %s985 = scalar_lea.vmem %s3, 360
  %v986 = vld [vmem:[%s985] sm:$0xff]
  %v987 = vld [vmem:[%s985 + $0x8] sm:$0xff]
  %v988 = vld [vmem:[%s985 + $0x10] sm:$0xf]
  %v989 = vperm.slane %v977, 0
  %v990 = vperm.slane %v978, 0
  %v991 = vmul.f32 %v989, %v982
  %v992 = vmul.f32 %v989, %v983
  %v993 = vmul.f32 %v989, %v984
  %v994 = vmul.f32 %v990, %v982
  %v995 = vmul.f32 %v990, %v983
  %v996 = vmul.f32 %v990, %v984
  %v997 = vperm.slane %v979, 0
  %v998 = vperm.slane %v980, 0
  %v999 = vmul.f32 %v997, %v986
  %v1000 = vmul.f32 %v997, %v987
  %v1001 = vmul.f32 %v997, %v988
  %v1002 = vmul.f32 %v998, %v986
  %v1003 = vmul.f32 %v998, %v987
  %v1004 = vmul.f32 %v998, %v988
  %v1005 = vsub.f32 %v991, %v999
  %v1006 = vsub.f32 %v992, %v1000
  %v1007 = vsub.f32 %v993, %v1001
  %v1008 = vsub.f32 %v994, %v1002
  %v1009 = vsub.f32 %v995, %v1003
  %v1010 = vsub.f32 %v996, %v1004
  %v1011 = vadd.f32 %v947, %v1005
  %v1012 = vadd.f32 %v948, %v1006
  %v1013 = vadd.f32 %v949, %v1007
  %v1014 = vadd.f32 %v950, %v1008
  %v1015 = vadd.f32 %v951, %v1009
  %v1016 = vadd.f32 %v952, %v1010
  %v1017 = vmul.f32 %v989, %v986
  %v1018 = vmul.f32 %v989, %v987
  %v1019 = vmul.f32 %v989, %v988
  %v1020 = vmul.f32 %v990, %v986
  %v1021 = vmul.f32 %v990, %v987
  %v1022 = vmul.f32 %v990, %v988
  %v1023 = vmul.f32 %v997, %v982
  %v1024 = vmul.f32 %v997, %v983
  %v1025 = vmul.f32 %v997, %v984
  %v1026 = vmul.f32 %v998, %v982
  %v1027 = vmul.f32 %v998, %v983
  %v1028 = vmul.f32 %v998, %v984
  %v1029 = vadd.f32 %v1017, %v1023
  %v1030 = vadd.f32 %v1018, %v1024
  %v1031 = vadd.f32 %v1019, %v1025
  %v1032 = vadd.f32 %v1020, %v1026
  %v1033 = vadd.f32 %v1021, %v1027
  %v1034 = vadd.f32 %v1022, %v1028
  %v1035 = vadd.f32 %v971, %v1029
  %v1036 = vadd.f32 %v972, %v1030
  %v1037 = vadd.f32 %v973, %v1031
  %v1038 = vadd.f32 %v974, %v1032
  %v1039 = vadd.f32 %v975, %v1033
  %v1040 = vadd.f32 %v976, %v1034
  %v1041 = vld [vmem:[%s0 + $0x10] sm:$0x1]
  %v1042 = vld [vmem:[%s0 + $0x28] sm:$0x1]
  %v1043 = vld [vmem:[%s1 + $0x10] sm:$0x1]
  %v1044 = vld [vmem:[%s1 + $0x28] sm:$0x1]
  %s1045 = scalar_lea.vmem %s2, 384
  %v1046 = vld [vmem:[%s1045] sm:$0xff]
  %v1047 = vld [vmem:[%s1045 + $0x8] sm:$0xff]
  %v1048 = vld [vmem:[%s1045 + $0x10] sm:$0xf]
  %s1049 = scalar_lea.vmem %s3, 384
  %v1050 = vld [vmem:[%s1049] sm:$0xff]
  %v1051 = vld [vmem:[%s1049 + $0x8] sm:$0xff]
  %v1052 = vld [vmem:[%s1049 + $0x10] sm:$0xf]
  %v1053 = vperm.slane %v1041, 0
  %v1054 = vperm.slane %v1042, 0
  %v1055 = vmul.f32 %v1053, %v1046
  %v1056 = vmul.f32 %v1053, %v1047
  %v1057 = vmul.f32 %v1053, %v1048
  %v1058 = vmul.f32 %v1054, %v1046
  %v1059 = vmul.f32 %v1054, %v1047
  %v1060 = vmul.f32 %v1054, %v1048
  %v1061 = vperm.slane %v1043, 0
  %v1062 = vperm.slane %v1044, 0
  %v1063 = vmul.f32 %v1061, %v1050
  %v1064 = vmul.f32 %v1061, %v1051
  %v1065 = vmul.f32 %v1061, %v1052
  %v1066 = vmul.f32 %v1062, %v1050
  %v1067 = vmul.f32 %v1062, %v1051
  %v1068 = vmul.f32 %v1062, %v1052
  %v1069 = vsub.f32 %v1055, %v1063
  %v1070 = vsub.f32 %v1056, %v1064
  %v1071 = vsub.f32 %v1057, %v1065
  %v1072 = vsub.f32 %v1058, %v1066
  %v1073 = vsub.f32 %v1059, %v1067
  %v1074 = vsub.f32 %v1060, %v1068
  %v1075 = vadd.f32 %v1011, %v1069
  %v1076 = vadd.f32 %v1012, %v1070
  %v1077 = vadd.f32 %v1013, %v1071
  %v1078 = vadd.f32 %v1014, %v1072
  %v1079 = vadd.f32 %v1015, %v1073
  %v1080 = vadd.f32 %v1016, %v1074
  %v1081 = vmul.f32 %v1053, %v1050
  %v1082 = vmul.f32 %v1053, %v1051
  %v1083 = vmul.f32 %v1053, %v1052
  %v1084 = vmul.f32 %v1054, %v1050
  %v1085 = vmul.f32 %v1054, %v1051
  %v1086 = vmul.f32 %v1054, %v1052
  %v1087 = vmul.f32 %v1061, %v1046
  %v1088 = vmul.f32 %v1061, %v1047
  %v1089 = vmul.f32 %v1061, %v1048
  %v1090 = vmul.f32 %v1062, %v1046
  %v1091 = vmul.f32 %v1062, %v1047
  %v1092 = vmul.f32 %v1062, %v1048
  %v1093 = vadd.f32 %v1081, %v1087
  %v1094 = vadd.f32 %v1082, %v1088
  %v1095 = vadd.f32 %v1083, %v1089
  %v1096 = vadd.f32 %v1084, %v1090
  %v1097 = vadd.f32 %v1085, %v1091
  %v1098 = vadd.f32 %v1086, %v1092
  %v1099 = vadd.f32 %v1035, %v1093
  %v1100 = vadd.f32 %v1036, %v1094
  %v1101 = vadd.f32 %v1037, %v1095
  %v1102 = vadd.f32 %v1038, %v1096
  %v1103 = vadd.f32 %v1039, %v1097
  %v1104 = vadd.f32 %v1040, %v1098
  %v1105 = vld [vmem:[%s0 + $0x11] sm:$0x1]
  %v1106 = vld [vmem:[%s0 + $0x29] sm:$0x1]
  %v1107 = vld [vmem:[%s1 + $0x11] sm:$0x1]
  %v1108 = vld [vmem:[%s1 + $0x29] sm:$0x1]
  %s1109 = scalar_lea.vmem %s2, 408
  %v1110 = vld [vmem:[%s1109] sm:$0xff]
  %v1111 = vld [vmem:[%s1109 + $0x8] sm:$0xff]
  %v1112 = vld [vmem:[%s1109 + $0x10] sm:$0xf]
  %s1113 = scalar_lea.vmem %s3, 408
  %v1114 = vld [vmem:[%s1113] sm:$0xff]
  %v1115 = vld [vmem:[%s1113 + $0x8] sm:$0xff]
  %v1116 = vld [vmem:[%s1113 + $0x10] sm:$0xf]
  %v1117 = vperm.slane %v1105, 0
  %v1118 = vperm.slane %v1106, 0
  %v1119 = vmul.f32 %v1117, %v1110
  %v1120 = vmul.f32 %v1117, %v1111
  %v1121 = vmul.f32 %v1117, %v1112
  %v1122 = vmul.f32 %v1118, %v1110
  %v1123 = vmul.f32 %v1118, %v1111
  %v1124 = vmul.f32 %v1118, %v1112
  %v1125 = vperm.slane %v1107, 0
  %v1126 = vperm.slane %v1108, 0
  %v1127 = vmul.f32 %v1125, %v1114
  %v1128 = vmul.f32 %v1125, %v1115
  %v1129 = vmul.f32 %v1125, %v1116
  %v1130 = vmul.f32 %v1126, %v1114
  %v1131 = vmul.f32 %v1126, %v1115
  %v1132 = vmul.f32 %v1126, %v1116
  %v1133 = vsub.f32 %v1119, %v1127
  %v1134 = vsub.f32 %v1120, %v1128
  %v1135 = vsub.f32 %v1121, %v1129
  %v1136 = vsub.f32 %v1122, %v1130
  %v1137 = vsub.f32 %v1123, %v1131
  %v1138 = vsub.f32 %v1124, %v1132
  %v1139 = vadd.f32 %v1075, %v1133
  %v1140 = vadd.f32 %v1076, %v1134
  %v1141 = vadd.f32 %v1077, %v1135
  %v1142 = vadd.f32 %v1078, %v1136
  %v1143 = vadd.f32 %v1079, %v1137
  %v1144 = vadd.f32 %v1080, %v1138
  %v1145 = vmul.f32 %v1117, %v1114
  %v1146 = vmul.f32 %v1117, %v1115
  %v1147 = vmul.f32 %v1117, %v1116
  %v1148 = vmul.f32 %v1118, %v1114
  %v1149 = vmul.f32 %v1118, %v1115
  %v1150 = vmul.f32 %v1118, %v1116
  %v1151 = vmul.f32 %v1125, %v1110
  %v1152 = vmul.f32 %v1125, %v1111
  %v1153 = vmul.f32 %v1125, %v1112
  %v1154 = vmul.f32 %v1126, %v1110
  %v1155 = vmul.f32 %v1126, %v1111
  %v1156 = vmul.f32 %v1126, %v1112
  %v1157 = vadd.f32 %v1145, %v1151
  %v1158 = vadd.f32 %v1146, %v1152
  %v1159 = vadd.f32 %v1147, %v1153
  %v1160 = vadd.f32 %v1148, %v1154
  %v1161 = vadd.f32 %v1149, %v1155
  %v1162 = vadd.f32 %v1150, %v1156
  %v1163 = vadd.f32 %v1099, %v1157
  %v1164 = vadd.f32 %v1100, %v1158
  %v1165 = vadd.f32 %v1101, %v1159
  %v1166 = vadd.f32 %v1102, %v1160
  %v1167 = vadd.f32 %v1103, %v1161
  %v1168 = vadd.f32 %v1104, %v1162
  %v1169 = vld [vmem:[%s0 + $0x12] sm:$0x1]
  %v1170 = vld [vmem:[%s0 + $0x2a] sm:$0x1]
  %v1171 = vld [vmem:[%s1 + $0x12] sm:$0x1]
  %v1172 = vld [vmem:[%s1 + $0x2a] sm:$0x1]
  %s1173 = scalar_lea.vmem %s2, 432
  %v1174 = vld [vmem:[%s1173] sm:$0xff]
  %v1175 = vld [vmem:[%s1173 + $0x8] sm:$0xff]
  %v1176 = vld [vmem:[%s1173 + $0x10] sm:$0xf]
  %s1177 = scalar_lea.vmem %s3, 432
  %v1178 = vld [vmem:[%s1177] sm:$0xff]
  %v1179 = vld [vmem:[%s1177 + $0x8] sm:$0xff]
  %v1180 = vld [vmem:[%s1177 + $0x10] sm:$0xf]
  %v1181 = vperm.slane %v1169, 0
  %v1182 = vperm.slane %v1170, 0
  %v1183 = vmul.f32 %v1181, %v1174
  %v1184 = vmul.f32 %v1181, %v1175
  %v1185 = vmul.f32 %v1181, %v1176
  %v1186 = vmul.f32 %v1182, %v1174
  %v1187 = vmul.f32 %v1182, %v1175
  %v1188 = vmul.f32 %v1182, %v1176
  %v1189 = vperm.slane %v1171, 0
  %v1190 = vperm.slane %v1172, 0
  %v1191 = vmul.f32 %v1189, %v1178
  %v1192 = vmul.f32 %v1189, %v1179
  %v1193 = vmul.f32 %v1189, %v1180
  %v1194 = vmul.f32 %v1190, %v1178
  %v1195 = vmul.f32 %v1190, %v1179
  %v1196 = vmul.f32 %v1190, %v1180
  %v1197 = vsub.f32 %v1183, %v1191
  %v1198 = vsub.f32 %v1184, %v1192
  %v1199 = vsub.f32 %v1185, %v1193
  %v1200 = vsub.f32 %v1186, %v1194
  %v1201 = vsub.f32 %v1187, %v1195
  %v1202 = vsub.f32 %v1188, %v1196
  %v1203 = vadd.f32 %v1139, %v1197
  %v1204 = vadd.f32 %v1140, %v1198
  %v1205 = vadd.f32 %v1141, %v1199
  %v1206 = vadd.f32 %v1142, %v1200
  %v1207 = vadd.f32 %v1143, %v1201
  %v1208 = vadd.f32 %v1144, %v1202
  %v1209 = vmul.f32 %v1181, %v1178
  %v1210 = vmul.f32 %v1181, %v1179
  %v1211 = vmul.f32 %v1181, %v1180
  %v1212 = vmul.f32 %v1182, %v1178
  %v1213 = vmul.f32 %v1182, %v1179
  %v1214 = vmul.f32 %v1182, %v1180
  %v1215 = vmul.f32 %v1189, %v1174
  %v1216 = vmul.f32 %v1189, %v1175
  %v1217 = vmul.f32 %v1189, %v1176
  %v1218 = vmul.f32 %v1190, %v1174
  %v1219 = vmul.f32 %v1190, %v1175
  %v1220 = vmul.f32 %v1190, %v1176
  %v1221 = vadd.f32 %v1209, %v1215
  %v1222 = vadd.f32 %v1210, %v1216
  %v1223 = vadd.f32 %v1211, %v1217
  %v1224 = vadd.f32 %v1212, %v1218
  %v1225 = vadd.f32 %v1213, %v1219
  %v1226 = vadd.f32 %v1214, %v1220
  %v1227 = vadd.f32 %v1163, %v1221
  %v1228 = vadd.f32 %v1164, %v1222
  %v1229 = vadd.f32 %v1165, %v1223
  %v1230 = vadd.f32 %v1166, %v1224
  %v1231 = vadd.f32 %v1167, %v1225
  %v1232 = vadd.f32 %v1168, %v1226
  %v1233 = vld [vmem:[%s0 + $0x13] sm:$0x1]
  %v1234 = vld [vmem:[%s0 + $0x2b] sm:$0x1]
  %v1235 = vld [vmem:[%s1 + $0x13] sm:$0x1]
  %v1236 = vld [vmem:[%s1 + $0x2b] sm:$0x1]
  %s1237 = scalar_lea.vmem %s2, 456
  %v1238 = vld [vmem:[%s1237] sm:$0xff]
  %v1239 = vld [vmem:[%s1237 + $0x8] sm:$0xff]
  %v1240 = vld [vmem:[%s1237 + $0x10] sm:$0xf]
  %s1241 = scalar_lea.vmem %s3, 456
  %v1242 = vld [vmem:[%s1241] sm:$0xff]
  %v1243 = vld [vmem:[%s1241 + $0x8] sm:$0xff]
  %v1244 = vld [vmem:[%s1241 + $0x10] sm:$0xf]
  %v1245 = vperm.slane %v1233, 0
  %v1246 = vperm.slane %v1234, 0
  %v1247 = vmul.f32 %v1245, %v1238
  %v1248 = vmul.f32 %v1245, %v1239
  %v1249 = vmul.f32 %v1245, %v1240
  %v1250 = vmul.f32 %v1246, %v1238
  %v1251 = vmul.f32 %v1246, %v1239
  %v1252 = vmul.f32 %v1246, %v1240
  %v1253 = vperm.slane %v1235, 0
  %v1254 = vperm.slane %v1236, 0
  %v1255 = vmul.f32 %v1253, %v1242
  %v1256 = vmul.f32 %v1253, %v1243
  %v1257 = vmul.f32 %v1253, %v1244
  %v1258 = vmul.f32 %v1254, %v1242
  %v1259 = vmul.f32 %v1254, %v1243
  %v1260 = vmul.f32 %v1254, %v1244
  %v1261 = vsub.f32 %v1247, %v1255
  %v1262 = vsub.f32 %v1248, %v1256
  %v1263 = vsub.f32 %v1249, %v1257
  %v1264 = vsub.f32 %v1250, %v1258
  %v1265 = vsub.f32 %v1251, %v1259
  %v1266 = vsub.f32 %v1252, %v1260
  %v1267 = vadd.f32 %v1203, %v1261
  %v1268 = vadd.f32 %v1204, %v1262
  %v1269 = vadd.f32 %v1205, %v1263
  %v1270 = vadd.f32 %v1206, %v1264
  %v1271 = vadd.f32 %v1207, %v1265
  %v1272 = vadd.f32 %v1208, %v1266
  %v1273 = vmul.f32 %v1245, %v1242
  %v1274 = vmul.f32 %v1245, %v1243
  %v1275 = vmul.f32 %v1245, %v1244
  %v1276 = vmul.f32 %v1246, %v1242
  %v1277 = vmul.f32 %v1246, %v1243
  %v1278 = vmul.f32 %v1246, %v1244
  %v1279 = vmul.f32 %v1253, %v1238
  %v1280 = vmul.f32 %v1253, %v1239
  %v1281 = vmul.f32 %v1253, %v1240
  %v1282 = vmul.f32 %v1254, %v1238
  %v1283 = vmul.f32 %v1254, %v1239
  %v1284 = vmul.f32 %v1254, %v1240
  %v1285 = vadd.f32 %v1273, %v1279
  %v1286 = vadd.f32 %v1274, %v1280
  %v1287 = vadd.f32 %v1275, %v1281
  %v1288 = vadd.f32 %v1276, %v1282
  %v1289 = vadd.f32 %v1277, %v1283
  %v1290 = vadd.f32 %v1278, %v1284
  %v1291 = vadd.f32 %v1227, %v1285
  %v1292 = vadd.f32 %v1228, %v1286
  %v1293 = vadd.f32 %v1229, %v1287
  %v1294 = vadd.f32 %v1230, %v1288
  %v1295 = vadd.f32 %v1231, %v1289
  %v1296 = vadd.f32 %v1232, %v1290
  %vm1297 = vcmask 588800
  %1298 = vst.msk [vmem:[%s4] sm:$0xff] %vm1297, %v1267
  %1299 = vst.msk [vmem:[%s4 + $0x8] sm:$0xff] %vm1297, %v1268
  %vm1300 = vcmask 584704
  %1301 = vst.msk [vmem:[%s4 + $0x10] sm:$0xf] %vm1300, %v1269
  %1302 = vst.msk [vmem:[%s4 + $0x18] sm:$0xff] %vm1297, %v1270
  %1303 = vst.msk [vmem:[%s4 + $0x20] sm:$0xff] %vm1297, %v1271
  %1304 = vst.msk [vmem:[%s4 + $0x28] sm:$0xf] %vm1300, %v1272
  %1305 = vst.msk [vmem:[%s5] sm:$0xff] %vm1297, %v1291
  %1306 = vst.msk [vmem:[%s5 + $0x8] sm:$0xff] %vm1297, %v1292
  %1307 = vst.msk [vmem:[%s5 + $0x10] sm:$0xf] %vm1300, %v1293
  %1308 = vst.msk [vmem:[%s5 + $0x18] sm:$0xff] %vm1297, %v1294
  %1309 = vst.msk [vmem:[%s5 + $0x20] sm:$0xff] %vm1297, %v1295
  %1310 = vst.msk [vmem:[%s5 + $0x28] sm:$0xf] %vm1300, %v1296
  // Predicated region
  $region18: #{fno2d_forward.10} parent=0 // pred_check
    _
  $region19: #{fno2d_forward.10} parent=0 // pred_check_branch
    %1312 = sbr.rel (0) target = $region21
  $region20: #{fno2d_forward.10} parent=0 // pred_region
    _
  $region21: #{fno2d_forward.10} parent=0 // pred_fallthru
    _
  // Predicated region
  $region22: #{fno2d_forward.10} parent=0 // pred_check
    _
  $region23: #{fno2d_forward.10} parent=0 // pred_check_branch
    %1314 = sbr.rel (0) target = $region25
  $region24: #{fno2d_forward.10} parent=0 // pred_region
    _
  $region25: #{fno2d_forward.10} parent=0 // pred_fallthru
    _
  // Predicated region
  $region26: #{fno2d_forward.10} parent=0 // pred_check
    _
  $region27: #{fno2d_forward.10} parent=0 // pred_check_branch
    %1316 = sbr.rel (0) target = $region29
  $region28: #{fno2d_forward.10} parent=0 // pred_region
    _
  $region29: #{fno2d_forward.10} parent=0 // pred_fallthru
    _
  // Predicated region
  $region30: #{fno2d_forward.10} parent=0 // pred_check
    _
  $region31: #{fno2d_forward.10} parent=0 // pred_check_branch
    %1318 = sbr.rel (0) target = $region33
  $region32: #{fno2d_forward.10} parent=0 // pred_region
    _
  $region33: #{fno2d_forward.10} parent=0 // pred_fallthru
    _

// kernel: reverse.8
$region0: #{reverse.8}
  #allocation0 [shape = 's32[1]{0}', space=sflag, size = 0x4, scoped, tag = 'scoped memory for reverse.8']
  %s0 = inlined_call_operand.vmem [shape: f32[2,20,16,7], index: 0, kind: input, shape index: {}]
  %s1 = inlined_call_operand.vmem [shape: f32[2,20,16,7], index: 1, kind: output, shape index: {}]
  %s2 = scalar_lea.vmem %s0, 96
  %v3 = vld [vmem:[%s2] sm:$0xff]
  %4 = vst [vmem:[%s1] sm:$0xff] %v3
  %s5 = scalar_lea.vmem %s0, 208
  %v6 = vld [vmem:[%s5] sm:$0xff]
  %s7 = scalar_lea.vmem %s1, 112
  %8 = vst [vmem:[%s7] sm:$0xff] %v6
  %s9 = scalar_lea.vmem %s0, 80
  %v10 = vld [vmem:[%s9] sm:$0xff]
  %s11 = scalar_lea.vmem %s1, 16
  %12 = vst [vmem:[%s11] sm:$0xff] %v10
  %s13 = scalar_lea.vmem %s0, 192
  %v14 = vld [vmem:[%s13] sm:$0xff]
  %s15 = scalar_lea.vmem %s1, 128
  %16 = vst [vmem:[%s15] sm:$0xff] %v14
  %s17 = scalar_lea.vmem %s0, 64
  %v18 = vld [vmem:[%s17] sm:$0xff]
  %s19 = scalar_lea.vmem %s1, 32
  %20 = vst [vmem:[%s19] sm:$0xff] %v18
  %s21 = scalar_lea.vmem %s0, 176
  %v22 = vld [vmem:[%s21] sm:$0xff]
  %s23 = scalar_lea.vmem %s1, 144
  %24 = vst [vmem:[%s23] sm:$0xff] %v22
  %s25 = scalar_lea.vmem %s0, 48
  %v26 = vld [vmem:[%s25] sm:$0xff]
  %s27 = scalar_lea.vmem %s1, 48
  %28 = vst [vmem:[%s27] sm:$0xff] %v26
  %s29 = scalar_lea.vmem %s0, 160
  %v30 = vld [vmem:[%s29] sm:$0xff]
  %s31 = scalar_lea.vmem %s1, 160
  %32 = vst [vmem:[%s31] sm:$0xff] %v30
  %s33 = scalar_lea.vmem %s0, 32
  %v34 = vld [vmem:[%s33] sm:$0xff]
  %s35 = scalar_lea.vmem %s1, 64
  %36 = vst [vmem:[%s35] sm:$0xff] %v34
  %s37 = scalar_lea.vmem %s0, 144
  %v38 = vld [vmem:[%s37] sm:$0xff]
  %s39 = scalar_lea.vmem %s1, 176
  %40 = vst [vmem:[%s39] sm:$0xff] %v38
  %s41 = scalar_lea.vmem %s0, 16
  %v42 = vld [vmem:[%s41] sm:$0xff]
  %s43 = scalar_lea.vmem %s1, 80
  %44 = vst [vmem:[%s43] sm:$0xff] %v42
  %s45 = scalar_lea.vmem %s0, 128
  %v46 = vld [vmem:[%s45] sm:$0xff]
  %s47 = scalar_lea.vmem %s1, 192
  %48 = vst [vmem:[%s47] sm:$0xff] %v46
  %v49 = vld [vmem:[%s0] sm:$0xff]
  %s50 = scalar_lea.vmem %s1, 96
  %51 = vst [vmem:[%s50] sm:$0xff] %v49
  %s52 = scalar_lea.vmem %s0, 112
  %v53 = vld [vmem:[%s52] sm:$0xff]
  %s54 = scalar_lea.vmem %s1, 208
  %55 = vst [vmem:[%s54] sm:$0xff] %v53
  %s56 = scalar_lea.vmem %s0, 104
  %v57 = vld [vmem:[%s56] sm:$0xff]
  %s58 = scalar_lea.vmem %s1, 8
  %59 = vst [vmem:[%s58] sm:$0xff] %v57
  %s60 = scalar_lea.vmem %s0, 216
  %v61 = vld [vmem:[%s60] sm:$0xff]
  %s62 = scalar_lea.vmem %s1, 120
  %63 = vst [vmem:[%s62] sm:$0xff] %v61
  %s64 = scalar_lea.vmem %s0, 88
  %v65 = vld [vmem:[%s64] sm:$0xff]
  %s66 = scalar_lea.vmem %s1, 24
  %67 = vst [vmem:[%s66] sm:$0xff] %v65
  %s68 = scalar_lea.vmem %s0, 200
  %v69 = vld [vmem:[%s68] sm:$0xff]
  %s70 = scalar_lea.vmem %s1, 136
  %71 = vst [vmem:[%s70] sm:$0xff] %v69
  %s72 = scalar_lea.vmem %s0, 72
  %v73 = vld [vmem:[%s72] sm:$0xff]
  %s74 = scalar_lea.vmem %s1, 40
  %75 = vst [vmem:[%s74] sm:$0xff] %v73
  %s76 = scalar_lea.vmem %s0, 184
  %v77 = vld [vmem:[%s76] sm:$0xff]
  %s78 = scalar_lea.vmem %s1, 152
  %79 = vst [vmem:[%s78] sm:$0xff] %v77
  %s80 = scalar_lea.vmem %s0, 56
  %v81 = vld [vmem:[%s80] sm:$0xff]
  %s82 = scalar_lea.vmem %s1, 56
  %83 = vst [vmem:[%s82] sm:$0xff] %v81
  %s84 = scalar_lea.vmem %s0, 168
  %v85 = vld [vmem:[%s84] sm:$0xff]
  %s86 = scalar_lea.vmem %s1, 168
  %87 = vst [vmem:[%s86] sm:$0xff] %v85
  %s88 = scalar_lea.vmem %s0, 40
  %v89 = vld [vmem:[%s88] sm:$0xff]
  %s90 = scalar_lea.vmem %s1, 72
  %91 = vst [vmem:[%s90] sm:$0xff] %v89
  %s92 = scalar_lea.vmem %s0, 152
  %v93 = vld [vmem:[%s92] sm:$0xff]
  %s94 = scalar_lea.vmem %s1, 184
  %95 = vst [vmem:[%s94] sm:$0xff] %v93
  %s96 = scalar_lea.vmem %s0, 24
  %v97 = vld [vmem:[%s96] sm:$0xff]
  %s98 = scalar_lea.vmem %s1, 88
  %99 = vst [vmem:[%s98] sm:$0xff] %v97
  %s100 = scalar_lea.vmem %s0, 136
  %v101 = vld [vmem:[%s100] sm:$0xff]
  %s102 = scalar_lea.vmem %s1, 200
  %103 = vst [vmem:[%s102] sm:$0xff] %v101
  %s104 = scalar_lea.vmem %s0, 8
  %v105 = vld [vmem:[%s104] sm:$0xff]
  %s106 = scalar_lea.vmem %s1, 104
  %107 = vst [vmem:[%s106] sm:$0xff] %v105
  %s108 = scalar_lea.vmem %s0, 120
  %v109 = vld [vmem:[%s108] sm:$0xff]
  %s110 = scalar_lea.vmem %s1, 216
  %111 = vst [vmem:[%s110] sm:$0xff] %v109

// kernel: fno2d_forward.11
$region0: #{fno2d_forward.11}
  #allocation0 [shape = 'u32[]', space=smem, size = 0x4, offset = 0x4, fixed_abs, tag = 'smem constant byte address 0x4 - core index']
  #allocation1 [shape = 'u32[72,128]{1,0:T(1,128)}', space=vmem, size = 0x9000, scoped, tag = 'internal scratch']
  %s0 = inlined_call_operand.vmem [shape: f32[2,20,256], index: 0, kind: input, shape index: {}]
  %s1 = inlined_call_operand.vmem [shape: bf16[2,20,256], index: 1, kind: input, shape index: {}, may-alias: {1,4}]
  %s2 = inlined_call_operand.vmem [shape: f32[20,20], index: 2, kind: input, shape index: {}]
  %s3 = inlined_call_operand.vmem [shape: f32[20,1], index: 3, kind: input, shape index: {}]
  %s4 = inlined_call_operand.vmem [shape: bf16[2,20,256], index: 4, kind: output, shape index: {}, may-alias: {1,4}]
  %s5 = sld [smem:[#allocation0]]
  $region49: #{fno2d_forward.11} parent=0
    _
  %s7 = ssub.s32 1, %s5
  %s8 = scalar_select 0, %s7, %s5
  loop: start=0, step=1, limit=4
  $region2: #{fno2d_forward.11} parent=0 // loop_pre_header
    _
  $region3: #{fno2d_forward.11} parent=0 // loop_header
    %s10 = sphi 0, %s14
    %p11 = scmp.ge.s32.totalorder %s10, 4
    %s17 = sphi 0, %s29
    %s18 = sphi 0, %s25
    %s19 = sphi 0, %s17
    %s20 = sphi 0, %s18
    %s21 = sphi 0, %s19
    %s22 = sphi 0, %s20
    %s34 = sphi 0, %s36
    %s37 = sphi 0, %s34
    %s38 = sphi 0, %s37
    %s54 = sphi 0, %s38
    %s62 = sphi 0, %s64
    %s65 = sphi 0, %s62
    %s66 = sphi 0, %s65
    %s82 = sphi 0, %s66
    %s86 = sphi 0, %s86
    %s88 = sphi 0, %s86
    %s89 = sphi 0, %s88
    %s103 = sphi 0, %s89
    %s107 = sphi 0, %s107
    %s109 = sphi 0, %s107
    %s110 = sphi 0, %s109
    %s124 = sphi 0, %s110
    %s132 = sphi 0, %s134
    %s135 = sphi 0, %s132
    %s136 = sphi 0, %s135
    %s152 = sphi 0, %s136
  $region4: #{fno2d_forward.11} parent=0 // loop_header_branch
    %13 = sbr.rel (%p11) target = $region8
  $region5: #{fno2d_forward.11} parent=0 // loop_body
    %s15 = ssub.s32 %s10, 1
    %s16 = ssub.s32 %s10, 2
    %s23 = sadd.s32 1, %s18
    %p24 = scmp.ge.s32.totalorder %s23, 1
    %s25 = scalar_select %p24, 0, %s23
    %s26 = sadd.s32 1, %s17
    %s27 = scalar_select %p24, %s26, %s17
    %p28 = scmp.ge.s32.totalorder %s27, 2
    %s29 = scalar_select %p28, 0, %s27
    %s30 = ssub.s32 %s17, %s29
    %s31 = ssub.s32 %s18, %s25
    %s32 = sor.u32 %s30, %s31
    %p33 = scmp.eq.s32.totalorder %s32, 0
    %s35 = sadd.s32 %s34, 1
    %s36 = scalar_select %p33, %s34, %s35
    %p39 = pneg %p33
    %p40 = scmp.eq.s32.totalorder %s10, 1
    %p41 = por %p39, %p40
    %p42 = scmp.ne.s32.totalorder %s34, %s37
    %p43 = scmp.eq.s32.totalorder %s10, 0
    %p44 = por %p42, %p43
    %p45 = scmp.ne.s32.totalorder %s34, %s37
    %p46 = scmp.eq.s32.totalorder %s15, 1
    %p47 = por %p45, %p46
    %p48 = scmp.ne.s32.totalorder %s37, %s38
    %p49 = scmp.eq.s32.totalorder %s15, 0
    %p50 = por %p48, %p49
    %p51 = scmp.ne.s32.totalorder %s37, %s38
    %p52 = scmp.eq.s32.totalorder %s16, 1
    %p53 = por %p51, %p52
    %p55 = scmp.ne.s32.totalorder %s38, %s54
    %p56 = scmp.eq.s32.totalorder %s16, 0
    %p57 = por %p55, %p56
    %s58 = ssub.s32 %s17, %s29
    %s59 = ssub.s32 %s18, %s25
    %s60 = sor.u32 %s58, %s59
    %p61 = scmp.eq.s32.totalorder %s60, 0
    %s63 = sadd.s32 %s62, 1
    %s64 = scalar_select %p61, %s62, %s63
    %p67 = pneg %p61
    %p68 = scmp.eq.s32.totalorder %s10, 1
    %p69 = por %p67, %p68
    %p70 = scmp.ne.s32.totalorder %s62, %s65
    %p71 = scmp.eq.s32.totalorder %s10, 0
    %p72 = por %p70, %p71
    %p73 = scmp.ne.s32.totalorder %s62, %s65
    %p74 = scmp.eq.s32.totalorder %s15, 1
    %p75 = por %p73, %p74
    %p76 = scmp.ne.s32.totalorder %s65, %s66
    %p77 = scmp.eq.s32.totalorder %s15, 0
    %p78 = por %p76, %p77
    %p79 = scmp.ne.s32.totalorder %s65, %s66
    %p80 = scmp.eq.s32.totalorder %s16, 1
    %p81 = por %p79, %p80
    %p83 = scmp.ne.s32.totalorder %s66, %s82
    %p84 = scmp.eq.s32.totalorder %s16, 0
    %p85 = por %p83, %p84
    %s87 = sadd.s32 %s86, 1
    %p90 = scmp.eq.s32.totalorder %s10, 1
    %p91 = scmp.ne.s32.totalorder %s86, %s88
    %p92 = scmp.eq.s32.totalorder %s10, 0
    %p93 = por %p91, %p92
    %p94 = scmp.ne.s32.totalorder %s86, %s88
    %p95 = scmp.eq.s32.totalorder %s15, 1
    %p96 = por %p94, %p95
    %p97 = scmp.ne.s32.totalorder %s88, %s89
    %p98 = scmp.eq.s32.totalorder %s15, 0
    %p99 = por %p97, %p98
    %p100 = scmp.ne.s32.totalorder %s88, %s89
    %p101 = scmp.eq.s32.totalorder %s16, 1
    %p102 = por %p100, %p101
    %p104 = scmp.ne.s32.totalorder %s89, %s103
    %p105 = scmp.eq.s32.totalorder %s16, 0
    %p106 = por %p104, %p105
    %s108 = sadd.s32 %s107, 1
    %p111 = scmp.eq.s32.totalorder %s10, 1
    %p112 = scmp.ne.s32.totalorder %s107, %s109
    %p113 = scmp.eq.s32.totalorder %s10, 0
    %p114 = por %p112, %p113
    %p115 = scmp.ne.s32.totalorder %s107, %s109
    %p116 = scmp.eq.s32.totalorder %s15, 1
    %p117 = por %p115, %p116
    %p118 = scmp.ne.s32.totalorder %s109, %s110
    %p119 = scmp.eq.s32.totalorder %s15, 0
    %p120 = por %p118, %p119
    %p121 = scmp.ne.s32.totalorder %s109, %s110
    %p122 = scmp.eq.s32.totalorder %s16, 1
    %p123 = por %p121, %p122
    %p125 = scmp.ne.s32.totalorder %s110, %s124
    %p126 = scmp.eq.s32.totalorder %s16, 0
    %p127 = por %p125, %p126
    %s128 = ssub.s32 %s17, %s29
    %s129 = ssub.s32 %s18, %s25
    %s130 = sor.u32 %s128, %s129
    %p131 = scmp.eq.s32.totalorder %s130, 0
    %s133 = sadd.s32 %s132, 1
    %s134 = scalar_select %p131, %s132, %s133
    %p137 = pneg %p131
    %p138 = scmp.eq.s32.totalorder %s10, 1
    %p139 = por %p137, %p138
    %p140 = scmp.ne.s32.totalorder %s132, %s135
    %p141 = scmp.eq.s32.totalorder %s10, 0
    %p142 = por %p140, %p141
    %p143 = scmp.ne.s32.totalorder %s132, %s135
    %p144 = scmp.eq.s32.totalorder %s15, 1
    %p145 = por %p143, %p144
    %p146 = scmp.ne.s32.totalorder %s135, %s136
    %p147 = scmp.eq.s32.totalorder %s15, 0
    %p148 = por %p146, %p147
    %p149 = scmp.ne.s32.totalorder %s135, %s136
    %p150 = scmp.eq.s32.totalorder %s16, 1
    %p151 = por %p149, %p150
    %p153 = scmp.ne.s32.totalorder %s136, %s152
    %p154 = scmp.eq.s32.totalorder %s16, 0
    %p155 = por %p153, %p154
    %p156 = scmp.le.s32.totalorder 1, %s10
    %p157 = scmp.lt.s32.totalorder %s10, 3
    %p158 = pnand %p156, %p157
    %p159 = pneg %p158
    // Predicated region
    $region9: #{fno2d_forward.11} parent=5 // pred_check
      _
    $region10: #{fno2d_forward.11} parent=5 // pred_check_branch
      %161 = sbr.rel (%p158) target = $region12
    $region11: #{fno2d_forward.11} parent=5 // pred_region
      %s162 = ssub.s32 %s10, 1
      // Predicated region
      $region13: #{fno2d_forward.11} parent=11 // pred_check
        %p163 = pneg %p99
      $region14: #{fno2d_forward.11} parent=11 // pred_check_branch
        %165 = sbr.rel (%p163) target = $region16
      $region15: #{fno2d_forward.11} parent=11 // pred_region
        _
      $region16: #{fno2d_forward.11} parent=11 // pred_fallthru
        _
      // Predicated region
      $region17: #{fno2d_forward.11} parent=11 // pred_check
        %p166 = pneg %p120
      $region18: #{fno2d_forward.11} parent=11 // pred_check_branch
        %168 = sbr.rel (%p166) target = $region20
      $region19: #{fno2d_forward.11} parent=11 // pred_region
        _
      $region20: #{fno2d_forward.11} parent=11 // pred_fallthru
        _
    $region12: #{fno2d_forward.11} parent=5 // pred_fallthru
      _
    %p169 = scmp.lt.s32.totalorder %s10, 2
    // Predicated region
    $region21: #{fno2d_forward.11} parent=5 // pred_check
      %p170 = pneg %p169
    $region22: #{fno2d_forward.11} parent=5 // pred_check_branch
      %172 = sbr.rel (%p170) target = $region24
    $region23: #{fno2d_forward.11} parent=5 // pred_region
      // Predicated region
      $region25: #{fno2d_forward.11} parent=23 // pred_check
        %p173 = pneg %p44
      $region26: #{fno2d_forward.11} parent=23 // pred_check_branch
        %175 = sbr.rel (%p173) target = $region28
      $region27: #{fno2d_forward.11} parent=23 // pred_region
        %s176 = smul.u32 2, %s18
        %p177 = scmp.lt.s32.totalorder %s17, 1
        %s178 = scalar_select %p177, %s17, 1
        %p179 = scmp.lt.s32.totalorder %s176, 1
        %s180 = scalar_select %p179, %s176, 1
        %s181 = smul.addr %s178, 6
        %s182 = sadd.s32 %s180, %s181
        %s183 = smul.addr %s182, 8
        %s184 = scalar_lea.vmem %s0, %s183
        %s185 = smul.u32 2, %s18
      $region28: #{fno2d_forward.11} parent=23 // pred_fallthru
        _
      // Predicated region
      $region29: #{fno2d_forward.11} parent=23 // pred_check
        %p186 = pneg %p72
      $region30: #{fno2d_forward.11} parent=23 // pred_check_branch
        %188 = sbr.rel (%p186) target = $region32
      $region31: #{fno2d_forward.11} parent=23 // pred_region
        %s189 = smul.u32 2, %s18
        %p190 = scmp.lt.s32.totalorder %s17, 1
        %s191 = scalar_select %p190, %s17, 1
        %p192 = scmp.lt.s32.totalorder %s189, 1
        %s193 = scalar_select %p192, %s189, 1
        %s194 = smul.addr %s191, 6
        %s195 = sadd.s32 %s193, %s194
        %s196 = smul.addr %s195, 4
        %s197 = scalar_lea.vmem %s1, %s196
        %s198 = smul.u32 2, %s18
      $region32: #{fno2d_forward.11} parent=23 // pred_fallthru
        _
    $region24: #{fno2d_forward.11} parent=5 // pred_fallthru
      _
    %p199 = scmp.le.s32.totalorder 1, %s10
    %p200 = scmp.lt.s32.totalorder %s10, 3
    %p201 = pnand %p199, %p200
    %p202 = pneg %p201
    // Predicated region
    $region33: #{fno2d_forward.11} parent=5 // pred_check
      _
    $region34: #{fno2d_forward.11} parent=5 // pred_check_branch
      %204 = sbr.rel (%p201) target = $region36
    $region35: #{fno2d_forward.11} parent=5 // pred_region
      %s205 = ssub.s32 %s10, 1
      %s206 = smul.u32 2, %s20
      %p207 = scmp.lt.s32.totalorder %s19, 1
      %s208 = scalar_select %p207, %s19, 1
      %p209 = scmp.lt.s32.totalorder %s206, 1
      %s210 = scalar_select %p209, %s206, 1
      %s211 = smul.addr %s208, 6
      %s212 = sadd.s32 %s210, %s211
      %s213 = smul.addr %s212, 8
      %s214 = scalar_lea.vmem %s0, %s213
      %p215 = pneg %p50
      %p216 = pneg %p47
      %s217 = smul.u32 2, %s20
      %p218 = scmp.lt.s32.totalorder %s19, 1
      %s219 = scalar_select %p218, %s19, 1
      %p220 = scmp.lt.s32.totalorder %s217, 1
      %s221 = scalar_select %p220, %s217, 1
      %s222 = smul.addr %s219, 6
      %s223 = sadd.s32 %s221, %s222
      %s224 = smul.addr %s223, 4
      %s225 = scalar_lea.vmem %s1, %s224
      %p226 = pneg %p78
      %p227 = pneg %p75
      %p228 = pneg %p99
      %p229 = pneg %p96
      %p230 = pneg %p120
      %p231 = pneg %p117
      %p232 = pneg %p148
      %p233 = pneg %p145
      %s234 = smul.u32 2, %s20
      %p235 = scmp.lt.s32.totalorder %s19, 1
      %s236 = scalar_select %p235, %s19, 1
      %p237 = scmp.lt.s32.totalorder %s234, 1
      %s238 = scalar_select %p237, %s234, 1
      %s239 = smul.addr %s236, 6
      %s240 = sadd.s32 %s238, %s239
      %s241 = smul.addr %s240, 4
      %s242 = scalar_lea.vmem %s4, %s241
      %s243 = smul.u32 2, %s20
      %p244 = scmp.lt.s32.totalorder %s19, 1
      %s245 = scalar_select %p244, %s19, 1
      %p246 = scmp.lt.s32.totalorder %s243, 1
      %s247 = scalar_select %p246, %s243, 1
      %s248 = smul.addr %s245, 6
      %s249 = sadd.s32 %s247, %s248
      %s250 = smul.addr %s249, 8
      %s251 = scalar_lea.vmem %s0, %s250
      %s252 = smul.u32 2, %s20
      %s253 = smul.u32 2, %s20
      %p254 = scmp.lt.s32.totalorder %s19, 1
      %s255 = scalar_select %p254, %s19, 1
      %p256 = scmp.lt.s32.totalorder %s253, 1
      %s257 = scalar_select %p256, %s253, 1
      %s258 = smul.addr %s255, 6
      %s259 = sadd.s32 %s257, %s258
      %s260 = smul.addr %s259, 4
      %s261 = scalar_lea.vmem %s1, %s260
      %s262 = smul.u32 2, %s20
      %s263 = smul.u32 2, %s20
      %p264 = scmp.lt.s32.totalorder %s19, 1
      %s265 = scalar_select %p264, %s19, 1
      %p266 = scmp.lt.s32.totalorder %s263, 1
      %s267 = scalar_select %p266, %s263, 1
      %s268 = smul.addr %s265, 6
      %s269 = sadd.s32 %s267, %s268
      %s270 = smul.addr %s269, 4
      %s271 = scalar_lea.vmem %s4, %s270
      %s272 = smul.u32 2, %s20
      %v273 = vld [vmem:[%s261] sm:$0xff]
      %v274 = vld [vmem:[%s261 + $0x8] sm:$0xff]
      %v275 = vld [vmem:[%s261 + $0x10] sm:$0x33]
      %v276 = vunpack.c.l.bf16 %v273
      %v277 = vunpack.c.h.bf16 %v273
      %v278 = vunpack.c.l.bf16 %v274
      %v279 = vunpack.c.h.bf16 %v274
      %v280 = vunpack.c.l.bf16 %v275
      %v281 = vunpack.c.h.bf16 %v275
      %v282 = vld [vmem:[%s2] sm:$0xff]
      %v283 = vld [vmem:[%s2 + $0x8] sm:$0xff]
      %v284 = vld [vmem:[%s2 + $0x10] sm:$0xf]
      %v285 = vld [vmem:[%s3] sm:$0xff]
      %v286 = vld [vmem:[%s3 + $0x8] sm:$0xff]
      %v287 = vld [vmem:[%s3 + $0x10] sm:$0xf]
      %289 = vset.pattern.permute.xlu0 0
      %290 = vperm.xlu0 %289, %v285
      %v291 = vpop.permute.xlu0 %290
      %294 = vset.pattern.permute.xlu0 0
      %295 = vperm.xlu0 %294, %v286
      %v296 = vpop.permute.xlu0 %295
      %299 = vset.pattern.permute.xlu0 0
      %300 = vperm.xlu0 %299, %v287
      %v301 = vpop.permute.xlu0 %300
      %vm303 = vcmask 162816
      %v305 = vsel %vm303, %v282, 0
      %v308 = vsel %vm303, %v283, 0
      %v311 = vsel %vm303, %v284, 0
      %vm313 = vcmask 1043456
      %v315 = vsel %vm313, %v280, 0
      %v318 = vsel %vm313, %v281, 0
      %320 = vmatpush.msra.mxu0 0.0
      %321 = vmatpush.msra.mxu0 0.0
      %322 = vmatpush.msra.mxu0 0.0
      %323 = vmatpush.msra.mxu0 0.0
      %324 = vmatpush.msra.mxu0 0.0
      %325 = vmatpush.msra.mxu0 0.0
      %326 = vmatpush.msra.mxu0 0.0
      %327 = vmatpush.msra.mxu0 0.0
      %328 = vmatpush.msra.mxu0 0.0
      %329 = vmatpush.msra.mxu0 0.0
      %330 = vmatpush.msra.mxu0 0.0
      %331 = vmatpush.msra.mxu0 0.0
      %332 = vmatpush.msra.mxu0 0.0
      %333 = vmatpush.msra.mxu0 %v315
      %334 = vmatpush.msra.mxu0 %v278
      %335 = vmatpush.msra.mxu0 %v276
      %336 = vmatmul.f32.gmra.mxu0 %v305
      %v337 = vpop.f32.mrf.mxu0
      %v338 = vadd.f32 %v291, %v337
      %339 = vmatmul.f32.gmra.mxu0 %v308
      %v340 = vpop.f32.mrf.mxu0
      %v341 = vadd.f32 %v296, %v340
      %342 = vmatmul.f32.gmra.mxu0 %v311
      %v343 = vpop.f32.mrf.mxu0
      %v344 = vadd.f32 %v301, %v343
      %345 = vdwg.mxu0
      %346 = vmatpush.msra.mxu0 0.0
      %347 = vmatpush.msra.mxu0 0.0
      %348 = vmatpush.msra.mxu0 0.0
      %349 = vmatpush.msra.mxu0 0.0
      %350 = vmatpush.msra.mxu0 0.0
      %351 = vmatpush.msra.mxu0 0.0
      %352 = vmatpush.msra.mxu0 0.0
      %353 = vmatpush.msra.mxu0 0.0
      %354 = vmatpush.msra.mxu0 0.0
      %355 = vmatpush.msra.mxu0 0.0
      %356 = vmatpush.msra.mxu0 0.0
      %357 = vmatpush.msra.mxu0 0.0
      %358 = vmatpush.msra.mxu0 0.0
      %359 = vmatpush.msra.mxu0 %v318
      %360 = vmatpush.msra.mxu0 %v279
      %361 = vmatpush.msra.mxu0 %v277
      %362 = vmatmul.f32.gmra.mxu0 %v305
      %v363 = vpop.f32.mrf.mxu0
      %v364 = vadd.f32 %v291, %v363
      %365 = vmatmul.f32.gmra.mxu0 %v308
      %v366 = vpop.f32.mrf.mxu0
      %v367 = vadd.f32 %v296, %v366
      %368 = vmatmul.f32.gmra.mxu0 %v311
      %v369 = vpop.f32.mrf.mxu0
      %v370 = vadd.f32 %v301, %v369
      %371 = vdwg.mxu0
      %v372 = vld [vmem:[%s251] sm:$0xff]
      %v373 = vld [vmem:[%s251 + $0x8] sm:$0xff]
      %v374 = vld [vmem:[%s251 + $0x10] sm:$0xff]
      %v375 = vld [vmem:[%s251 + $0x18] sm:$0xff]
      %v376 = vld [vmem:[%s251 + $0x20] sm:$0xf]
      %v377 = vld [vmem:[%s251 + $0x28] sm:$0xf]
      %v378 = vadd.f32 %v338, %v372
      %v379 = vadd.f32 %v364, %v373
      %v380 = vadd.f32 %v341, %v374
      %v381 = vadd.f32 %v367, %v375
      %v382 = vadd.f32 %v344, %v376
      %v383 = vadd.f32 %v370, %v377
      %v384 = vmul.f32 %v378, 0.5
      %v385 = vmul.f32 %v379, 0.5
      %v386 = vmul.f32 %v380, 0.5
      %v387 = vmul.f32 %v381, 0.5
      %v388 = vmul.f32 %v382, 0.5
      %v389 = vmul.f32 %v383, 0.5
      %v390 = vmul.f32 %v378, 0.70710677
      %v391 = vmul.f32 %v379, 0.70710677
      %v392 = vmul.f32 %v380, 0.70710677
      %v393 = vmul.f32 %v381, 0.70710677
      %v394 = vmul.f32 %v382, 0.70710677
      %v395 = vmul.f32 %v383, 0.70710677
      %v396 = vmul.f32 %v390, %v390
      %v397 = vmin.f32 16.0, %v396
      %v398 = vmul.f32 %v397, 2.1237322e-06
      %v399 = vadd.f32 %v398, 0.00028619796
      %v400 = vmul.f32 %v397, %v399
      %v401 = vadd.f32 %v400, 0.0036580483
      %v402 = vmul.f32 %v397, %v401
      %v403 = vadd.f32 %v402, 0.05243302
      %v404 = vmul.f32 %v397, %v403
      %v405 = vadd.f32 %v404, 0.18741608
      %v406 = vmul.f32 %v397, %v405
      %v407 = vadd.f32 %v406, 1.1283791
      %v408 = vmul.f32 %v390, %v407
      %v409 = vmul.f32 %v397, 3.8918573e-05
      %v410 = vadd.f32 %v409, 0.001143296
      %v411 = vmul.f32 %v397, %v410
      %v412 = vadd.f32 %v411, 0.014752088
      %v413 = vmul.f32 %v397, %v412
      %v414 = vadd.f32 %v413, 0.112945676
      %v415 = vmul.f32 %v397, %v414
      %v416 = vadd.f32 %v415, 0.4994258
      %v417 = vmul.f32 %v397, %v416
      %v418 = vadd.f32 %v417, 1.0
      %v419 = vrcp.pop %v418
      %v420 = vmul.f32 %v418, %v419
      %v421 = vsub.f32 1.0, %v420
      %v422 = vmul.f32 %v419, %v421
      %v423 = vadd.f32 %v419, %v422
      %vm424 = vweird.f32 %v418
      %vm425 = vweird.f32 %v419
      %vm426 = vmor %vm424, %vm425
      %v427 = vsel %vm426, %v419, %v423
      %v428 = vand.u32 2147483647, %v418
      %vm429 = vcmp.eq.f32.partialorder %v428, 8.507059e+37
      %v430 = vand.u32 %v418, 2147483648
      %v431 = vor.u32 1.1754944e-38, %v430
      %v432 = vsel %vm429, %v431, %v427
      %v433 = vmul.f32 %v408, %v432
      %v434 = vmin.f32 %v433, 1.0
      %v435 = vmax.f32 %v434, -1.0
      %v436 = vmul.f32 %v391, %v391
      %v437 = vmin.f32 16.0, %v436
      %v438 = vmul.f32 %v437, 2.1237322e-06
      %v439 = vadd.f32 %v438, 0.00028619796
      %v440 = vmul.f32 %v437, %v439
      %v441 = vadd.f32 %v440, 0.0036580483
      %v442 = vmul.f32 %v437, %v441
      %v443 = vadd.f32 %v442, 0.05243302
      %v444 = vmul.f32 %v437, %v443
      %v445 = vadd.f32 %v444, 0.18741608
      %v446 = vmul.f32 %v437, %v445
      %v447 = vadd.f32 %v446, 1.1283791
      %v448 = vmul.f32 %v391, %v447
      %v449 = vmul.f32 %v437, 3.8918573e-05
      %v450 = vadd.f32 %v449, 0.001143296
      %v451 = vmul.f32 %v437, %v450
      %v452 = vadd.f32 %v451, 0.014752088
      %v453 = vmul.f32 %v437, %v452
      %v454 = vadd.f32 %v453, 0.112945676
      %v455 = vmul.f32 %v437, %v454
      %v456 = vadd.f32 %v455, 0.4994258
      %v457 = vmul.f32 %v437, %v456
      %v458 = vadd.f32 %v457, 1.0
      %v459 = vrcp.pop %v458
      %v460 = vmul.f32 %v458, %v459
      %v461 = vsub.f32 1.0, %v460
      %v462 = vmul.f32 %v459, %v461
      %v463 = vadd.f32 %v459, %v462
      %vm464 = vweird.f32 %v458
      %vm465 = vweird.f32 %v459
      %vm466 = vmor %vm464, %vm465
      %v467 = vsel %vm466, %v459, %v463
      %v468 = vand.u32 2147483647, %v458
      %vm469 = vcmp.eq.f32.partialorder %v468, 8.507059e+37
      %v470 = vand.u32 %v458, 2147483648
      %v471 = vor.u32 1.1754944e-38, %v470
      %v472 = vsel %vm469, %v471, %v467
      %v473 = vmul.f32 %v448, %v472
      %v474 = vmin.f32 %v473, 1.0
      %v475 = vmax.f32 %v474, -1.0
      %v476 = vmul.f32 %v392, %v392
      %v477 = vmin.f32 16.0, %v476
      %v478 = vmul.f32 %v477, 2.1237322e-06
      %v479 = vadd.f32 %v478, 0.00028619796
      %v480 = vmul.f32 %v477, %v479
      %v481 = vadd.f32 %v480, 0.0036580483
      %v482 = vmul.f32 %v477, %v481
      %v483 = vadd.f32 %v482, 0.05243302
      %v484 = vmul.f32 %v477, %v483
      %v485 = vadd.f32 %v484, 0.18741608
      %v486 = vmul.f32 %v477, %v485
      %v487 = vadd.f32 %v486, 1.1283791
      %v488 = vmul.f32 %v392, %v487
      %v489 = vmul.f32 %v477, 3.8918573e-05
      %v490 = vadd.f32 %v489, 0.001143296
      %v491 = vmul.f32 %v477, %v490
      %v492 = vadd.f32 %v491, 0.014752088
      %v493 = vmul.f32 %v477, %v492
      %v494 = vadd.f32 %v493, 0.112945676
      %v495 = vmul.f32 %v477, %v494
      %v496 = vadd.f32 %v495, 0.4994258
      %v497 = vmul.f32 %v477, %v496
      %v498 = vadd.f32 %v497, 1.0
      %v499 = vrcp.pop %v498
      %v500 = vmul.f32 %v498, %v499
      %v501 = vsub.f32 1.0, %v500
      %v502 = vmul.f32 %v499, %v501
      %v503 = vadd.f32 %v499, %v502
      %vm504 = vweird.f32 %v498
      %vm505 = vweird.f32 %v499
      %vm506 = vmor %vm504, %vm505
      %v507 = vsel %vm506, %v499, %v503
      %v508 = vand.u32 2147483647, %v498
      %vm509 = vcmp.eq.f32.partialorder %v508, 8.507059e+37
      %v510 = vand.u32 %v498, 2147483648
      %v511 = vor.u32 1.1754944e-38, %v510
      %v512 = vsel %vm509, %v511, %v507
      %v513 = vmul.f32 %v488, %v512
      %v514 = vmin.f32 %v513, 1.0
      %v515 = vmax.f32 %v514, -1.0
      %v516 = vmul.f32 %v393, %v393
      %v517 = vmin.f32 16.0, %v516
      %v518 = vmul.f32 %v517, 2.1237322e-06
      %v519 = vadd.f32 %v518, 0.00028619796
      %v520 = vmul.f32 %v517, %v519
      %v521 = vadd.f32 %v520, 0.0036580483
      %v522 = vmul.f32 %v517, %v521
      %v523 = vadd.f32 %v522, 0.05243302
      %v524 = vmul.f32 %v517, %v523
      %v525 = vadd.f32 %v524, 0.18741608
      %v526 = vmul.f32 %v517, %v525
      %v527 = vadd.f32 %v526, 1.1283791
      %v528 = vmul.f32 %v393, %v527
      %v529 = vmul.f32 %v517, 3.8918573e-05
      %v530 = vadd.f32 %v529, 0.001143296
      %v531 = vmul.f32 %v517, %v530
      %v532 = vadd.f32 %v531, 0.014752088
      %v533 = vmul.f32 %v517, %v532
      %v534 = vadd.f32 %v533, 0.112945676
      %v535 = vmul.f32 %v517, %v534
      %v536 = vadd.f32 %v535, 0.4994258
      %v537 = vmul.f32 %v517, %v536
      %v538 = vadd.f32 %v537, 1.0
      %v539 = vrcp.pop %v538
      %v540 = vmul.f32 %v538, %v539
      %v541 = vsub.f32 1.0, %v540
      %v542 = vmul.f32 %v539, %v541
      %v543 = vadd.f32 %v539, %v542
      %vm544 = vweird.f32 %v538
      %vm545 = vweird.f32 %v539
      %vm546 = vmor %vm544, %vm545
      %v547 = vsel %vm546, %v539, %v543
      %v548 = vand.u32 2147483647, %v538
      %vm549 = vcmp.eq.f32.partialorder %v548, 8.507059e+37
      %v550 = vand.u32 %v538, 2147483648
      %v551 = vor.u32 1.1754944e-38, %v550
      %v552 = vsel %vm549, %v551, %v547
      %v553 = vmul.f32 %v528, %v552
      %v554 = vmin.f32 %v553, 1.0
      %v555 = vmax.f32 %v554, -1.0
      %v556 = vmul.f32 %v394, %v394
      %v557 = vmin.f32 16.0, %v556
      %v558 = vmul.f32 %v557, 2.1237322e-06
      %v559 = vadd.f32 %v558, 0.00028619796
      %v560 = vmul.f32 %v557, %v559
      %v561 = vadd.f32 %v560, 0.0036580483
      %v562 = vmul.f32 %v557, %v561
      %v563 = vadd.f32 %v562, 0.05243302
      %v564 = vmul.f32 %v557, %v563
      %v565 = vadd.f32 %v564, 0.18741608
      %v566 = vmul.f32 %v557, %v565
      %v567 = vadd.f32 %v566, 1.1283791
      %v568 = vmul.f32 %v394, %v567
      %v569 = vmul.f32 %v557, 3.8918573e-05
      %v570 = vadd.f32 %v569, 0.001143296
      %v571 = vmul.f32 %v557, %v570
      %v572 = vadd.f32 %v571, 0.014752088
      %v573 = vmul.f32 %v557, %v572
      %v574 = vadd.f32 %v573, 0.112945676
      %v575 = vmul.f32 %v557, %v574
      %v576 = vadd.f32 %v575, 0.4994258
      %v577 = vmul.f32 %v557, %v576
      %v578 = vadd.f32 %v577, 1.0
      %v579 = vrcp.pop %v578
      %v580 = vmul.f32 %v578, %v579
      %v581 = vsub.f32 1.0, %v580
      %v582 = vmul.f32 %v579, %v581
      %v583 = vadd.f32 %v579, %v582
      %vm584 = vweird.f32 %v578
      %vm585 = vweird.f32 %v579
      %vm586 = vmor %vm584, %vm585
      %v587 = vsel %vm586, %v579, %v583
      %v588 = vand.u32 2147483647, %v578
      %vm589 = vcmp.eq.f32.partialorder %v588, 8.507059e+37
      %v590 = vand.u32 %v578, 2147483648
      %v591 = vor.u32 1.1754944e-38, %v590
      %v592 = vsel %vm589, %v591, %v587
      %v593 = vmul.f32 %v568, %v592
      %v594 = vmin.f32 %v593, 1.0
      %v595 = vmax.f32 %v594, -1.0
      %v596 = vmul.f32 %v395, %v395
      %v597 = vmin.f32 16.0, %v596
      %v598 = vmul.f32 %v597, 2.1237322e-06
      %v599 = vadd.f32 %v598, 0.00028619796
      %v600 = vmul.f32 %v597, %v599
      %v601 = vadd.f32 %v600, 0.0036580483
      %v602 = vmul.f32 %v597, %v601
      %v603 = vadd.f32 %v602, 0.05243302
      %v604 = vmul.f32 %v597, %v603
      %v605 = vadd.f32 %v604, 0.18741608
      %v606 = vmul.f32 %v597, %v605
      %v607 = vadd.f32 %v606, 1.1283791
      %v608 = vmul.f32 %v395, %v607
      %v609 = vmul.f32 %v597, 3.8918573e-05
      %v610 = vadd.f32 %v609, 0.001143296
      %v611 = vmul.f32 %v597, %v610
      %v612 = vadd.f32 %v611, 0.014752088
      %v613 = vmul.f32 %v597, %v612
      %v614 = vadd.f32 %v613, 0.112945676
      %v615 = vmul.f32 %v597, %v614
      %v616 = vadd.f32 %v615, 0.4994258
      %v617 = vmul.f32 %v597, %v616
      %v618 = vadd.f32 %v617, 1.0
      %v619 = vrcp.pop %v618
      %v620 = vmul.f32 %v618, %v619
      %v621 = vsub.f32 1.0, %v620
      %v622 = vmul.f32 %v619, %v621
      %v623 = vadd.f32 %v619, %v622
      %vm624 = vweird.f32 %v618
      %vm625 = vweird.f32 %v619
      %vm626 = vmor %vm624, %vm625
      %v627 = vsel %vm626, %v619, %v623
      %v628 = vand.u32 2147483647, %v618
      %vm629 = vcmp.eq.f32.partialorder %v628, 8.507059e+37
      %v630 = vand.u32 %v618, 2147483648
      %v631 = vor.u32 1.1754944e-38, %v630
      %v632 = vsel %vm629, %v631, %v627
      %v633 = vmul.f32 %v608, %v632
      %v634 = vmin.f32 %v633, 1.0
      %v635 = vmax.f32 %v634, -1.0
      %v636 = vadd.f32 %v435, 1.0
      %v637 = vadd.f32 %v475, 1.0
      %v638 = vadd.f32 %v515, 1.0
      %v639 = vadd.f32 %v555, 1.0
      %v640 = vadd.f32 %v595, 1.0
      %v641 = vadd.f32 %v635, 1.0
      %v642 = vmul.f32 %v384, %v636
      %v643 = vmul.f32 %v385, %v637
      %v644 = vmul.f32 %v386, %v638
      %v645 = vmul.f32 %v387, %v639
      %v646 = vmul.f32 %v388, %v640
      %v647 = vmul.f32 %v389, %v641
      %v648 = vpack.c.bf16 %v643, %v642
      %v649 = vpack.c.bf16 %v645, %v644
      %v650 = vpack.c.bf16 %v647, %v646
      %651 = vst [vmem:[%s271] sm:$0xff] %v648
      %652 = vst [vmem:[%s271 + $0x8] sm:$0xff] %v649
      %653 = vst [vmem:[%s271 + $0x10] sm:$0x33] %v650
      %s654 = smul.u32 2, %s20
      %p655 = scmp.lt.s32.totalorder %s19, 1
      %s656 = scalar_select %p655, %s19, 1
      %p657 = scmp.lt.s32.totalorder %s654, 1
      %s658 = scalar_select %p657, %s654, 1
      %s659 = smul.addr %s656, 6
      %s660 = sadd.s32 %s658, %s659
      %s661 = smul.addr %s660, 4
      %s662 = scalar_lea.vmem %s4, %s661
      // Predicated region
      $region37: #{fno2d_forward.11} parent=35 // pred_check
        %p663 = pneg %p145
      $region38: #{fno2d_forward.11} parent=35 // pred_check_branch
        %665 = sbr.rel (%p663) target = $region40
      $region39: #{fno2d_forward.11} parent=35 // pred_region
        %s666 = smul.u32 2, %s20
      $region40: #{fno2d_forward.11} parent=35 // pred_fallthru
        _
    $region36: #{fno2d_forward.11} parent=5 // pred_fallthru
      _
    %p667 = scmp.le.s32.totalorder 2, %s10
    // Predicated region
    $region41: #{fno2d_forward.11} parent=5 // pred_check
      %p668 = pneg %p667
    $region42: #{fno2d_forward.11} parent=5 // pred_check_branch
      %670 = sbr.rel (%p668) target = $region44
    $region43: #{fno2d_forward.11} parent=5 // pred_region
      %s671 = ssub.s32 %s10, 2
      // Predicated region
      $region45: #{fno2d_forward.11} parent=43 // pred_check
        %p672 = pneg %p151
      $region46: #{fno2d_forward.11} parent=43 // pred_check_branch
        %674 = sbr.rel (%p672) target = $region48
      $region47: #{fno2d_forward.11} parent=43 // pred_region
        %s675 = smul.u32 2, %s22
        %p676 = scmp.lt.s32.totalorder %s21, 1
        %s677 = scalar_select %p676, %s21, 1
        %p678 = scmp.lt.s32.totalorder %s675, 1
        %s679 = scalar_select %p678, %s675, 1
        %s680 = smul.addr %s677, 6
        %s681 = sadd.s32 %s679, %s680
        %s682 = smul.addr %s681, 4
        %s683 = scalar_lea.vmem %s4, %s682
      $region48: #{fno2d_forward.11} parent=43 // pred_fallthru
        _
    $region44: #{fno2d_forward.11} parent=5 // pred_fallthru
      _
  $region6: #{fno2d_forward.11} parent=0 // loop_footer
    %s14 = sadd.s32 1, %s10
  $region7: #{fno2d_forward.11} parent=0 // loop_footer_branch
    %9 = sbr.rel target = $region3
  $region8: #{fno2d_forward.11} parent=0 // loop_exit
    _

// kernel: fno2d_forward.17
$region0: #{fno2d_forward.17}
  #allocation0 [shape = 'u32[]', space=smem, size = 0x4, offset = 0x4, fixed_abs, tag = 'smem constant byte address 0x4 - core index']
  #allocation1 [shape = 'u32[72,128]{1,0:T(1,128)}', space=vmem, size = 0x9000, scoped, tag = 'internal scratch']
  #allocation2 [shape = 'f32[1,1]{1,0:T(1,128)S(1)}', space=vmem, size = 0x200, scoped, tag = 'scoped memory for fno2d_forward.17']
  %s0 = inlined_call_operand.vmem [shape: f32[2,20,256], index: 0, kind: input, shape index: {}]
  %s1 = inlined_call_operand.vmem [shape: bf16[2,20,256], index: 1, kind: input, shape index: {}]
  %s2 = inlined_call_operand.vmem [shape: f32[20,20], index: 2, kind: input, shape index: {}]
  %s3 = inlined_call_operand.vmem [shape: f32[20,1], index: 3, kind: input, shape index: {}]
  %s4 = inlined_call_operand.vmem [shape: f32[128,20], index: 4, kind: input, shape index: {}]
  %s5 = inlined_call_operand.vmem [shape: f32[128,1], index: 5, kind: input, shape index: {}]
  %s6 = inlined_call_operand.vmem [shape: f32[1,128], index: 6, kind: input, shape index: {}]
  %s7 = inlined_call_operand.<no memory space> [shape: f32[1,1], index: 7, kind: input, shape index: {}]
  %s8 = inlined_call_operand.vmem [shape: f32[2,1,256], index: 8, kind: output, shape index: {}]
  %s9 = sld [smem:[#allocation0]]
  $region65: #{fno2d_forward.17} parent=0
    _
  %s11 = ssub.s32 1, %s9
  %s12 = scalar_select 0, %s11, %s9
  %v13 = vstv %s7
  %14 = vst [vmem:[#allocation2] sm:$0x1] %v13
  loop: start=0, step=1, limit=4
  $region2: #{fno2d_forward.17} parent=0 // loop_pre_header
    _
  $region3: #{fno2d_forward.17} parent=0 // loop_header
    %s16 = sphi 0, %s20
    %p17 = scmp.ge.s32.totalorder %s16, 4
    %s23 = sphi 0, %s35
    %s24 = sphi 0, %s31
    %s25 = sphi 0, %s23
    %s26 = sphi 0, %s24
    %s27 = sphi 0, %s25
    %s28 = sphi 0, %s26
    %s40 = sphi 0, %s42
    %s43 = sphi 0, %s40
    %s44 = sphi 0, %s43
    %s60 = sphi 0, %s44
    %s68 = sphi 0, %s70
    %s71 = sphi 0, %s68
    %s72 = sphi 0, %s71
    %s88 = sphi 0, %s72
    %s92 = sphi 0, %s92
    %s94 = sphi 0, %s92
    %s95 = sphi 0, %s94
    %s109 = sphi 0, %s95
    %s113 = sphi 0, %s113
    %s115 = sphi 0, %s113
    %s116 = sphi 0, %s115
    %s130 = sphi 0, %s116
    %s134 = sphi 0, %s134
    %s136 = sphi 0, %s134
    %s137 = sphi 0, %s136
    %s151 = sphi 0, %s137
    %s155 = sphi 0, %s155
    %s157 = sphi 0, %s155
    %s158 = sphi 0, %s157
    %s172 = sphi 0, %s158
    %s176 = sphi 0, %s176
    %s178 = sphi 0, %s176
    %s179 = sphi 0, %s178
    %s193 = sphi 0, %s179
    %s197 = sphi 0, %s197
    %s199 = sphi 0, %s197
    %s200 = sphi 0, %s199
    %s214 = sphi 0, %s200
    %s222 = sphi 0, %s224
    %s225 = sphi 0, %s222
    %s226 = sphi 0, %s225
    %s242 = sphi 0, %s226
  $region4: #{fno2d_forward.17} parent=0 // loop_header_branch
    %19 = sbr.rel (%p17) target = $region8
  $region5: #{fno2d_forward.17} parent=0 // loop_body
    %s21 = ssub.s32 %s16, 1
    %s22 = ssub.s32 %s16, 2
    %s29 = sadd.s32 1, %s24
    %p30 = scmp.ge.s32.totalorder %s29, 1
    %s31 = scalar_select %p30, 0, %s29
    %s32 = sadd.s32 1, %s23
    %s33 = scalar_select %p30, %s32, %s23
    %p34 = scmp.ge.s32.totalorder %s33, 2
    %s35 = scalar_select %p34, 0, %s33
    %s36 = ssub.s32 %s23, %s35
    %s37 = ssub.s32 %s24, %s31
    %s38 = sor.u32 %s36, %s37
    %p39 = scmp.eq.s32.totalorder %s38, 0
    %s41 = sadd.s32 %s40, 1
    %s42 = scalar_select %p39, %s40, %s41
    %p45 = pneg %p39
    %p46 = scmp.eq.s32.totalorder %s16, 1
    %p47 = por %p45, %p46
    %p48 = scmp.ne.s32.totalorder %s40, %s43
    %p49 = scmp.eq.s32.totalorder %s16, 0
    %p50 = por %p48, %p49
    %p51 = scmp.ne.s32.totalorder %s40, %s43
    %p52 = scmp.eq.s32.totalorder %s21, 1
    %p53 = por %p51, %p52
    %p54 = scmp.ne.s32.totalorder %s43, %s44
    %p55 = scmp.eq.s32.totalorder %s21, 0
    %p56 = por %p54, %p55
    %p57 = scmp.ne.s32.totalorder %s43, %s44
    %p58 = scmp.eq.s32.totalorder %s22, 1
    %p59 = por %p57, %p58
    %p61 = scmp.ne.s32.totalorder %s44, %s60
    %p62 = scmp.eq.s32.totalorder %s22, 0
    %p63 = por %p61, %p62
    %s64 = ssub.s32 %s23, %s35
    %s65 = ssub.s32 %s24, %s31
    %s66 = sor.u32 %s64, %s65
    %p67 = scmp.eq.s32.totalorder %s66, 0
    %s69 = sadd.s32 %s68, 1
    %s70 = scalar_select %p67, %s68, %s69
    %p73 = pneg %p67
    %p74 = scmp.eq.s32.totalorder %s16, 1
    %p75 = por %p73, %p74
    %p76 = scmp.ne.s32.totalorder %s68, %s71
    %p77 = scmp.eq.s32.totalorder %s16, 0
    %p78 = por %p76, %p77
    %p79 = scmp.ne.s32.totalorder %s68, %s71
    %p80 = scmp.eq.s32.totalorder %s21, 1
    %p81 = por %p79, %p80
    %p82 = scmp.ne.s32.totalorder %s71, %s72
    %p83 = scmp.eq.s32.totalorder %s21, 0
    %p84 = por %p82, %p83
    %p85 = scmp.ne.s32.totalorder %s71, %s72
    %p86 = scmp.eq.s32.totalorder %s22, 1
    %p87 = por %p85, %p86
    %p89 = scmp.ne.s32.totalorder %s72, %s88
    %p90 = scmp.eq.s32.totalorder %s22, 0
    %p91 = por %p89, %p90
    %s93 = sadd.s32 %s92, 1
    %p96 = scmp.eq.s32.totalorder %s16, 1
    %p97 = scmp.ne.s32.totalorder %s92, %s94
    %p98 = scmp.eq.s32.totalorder %s16, 0
    %p99 = por %p97, %p98
    %p100 = scmp.ne.s32.totalorder %s92, %s94
    %p101 = scmp.eq.s32.totalorder %s21, 1
    %p102 = por %p100, %p101
    %p103 = scmp.ne.s32.totalorder %s94, %s95
    %p104 = scmp.eq.s32.totalorder %s21, 0
    %p105 = por %p103, %p104
    %p106 = scmp.ne.s32.totalorder %s94, %s95
    %p107 = scmp.eq.s32.totalorder %s22, 1
    %p108 = por %p106, %p107
    %p110 = scmp.ne.s32.totalorder %s95, %s109
    %p111 = scmp.eq.s32.totalorder %s22, 0
    %p112 = por %p110, %p111
    %s114 = sadd.s32 %s113, 1
    %p117 = scmp.eq.s32.totalorder %s16, 1
    %p118 = scmp.ne.s32.totalorder %s113, %s115
    %p119 = scmp.eq.s32.totalorder %s16, 0
    %p120 = por %p118, %p119
    %p121 = scmp.ne.s32.totalorder %s113, %s115
    %p122 = scmp.eq.s32.totalorder %s21, 1
    %p123 = por %p121, %p122
    %p124 = scmp.ne.s32.totalorder %s115, %s116
    %p125 = scmp.eq.s32.totalorder %s21, 0
    %p126 = por %p124, %p125
    %p127 = scmp.ne.s32.totalorder %s115, %s116
    %p128 = scmp.eq.s32.totalorder %s22, 1
    %p129 = por %p127, %p128
    %p131 = scmp.ne.s32.totalorder %s116, %s130
    %p132 = scmp.eq.s32.totalorder %s22, 0
    %p133 = por %p131, %p132
    %s135 = sadd.s32 %s134, 1
    %p138 = scmp.eq.s32.totalorder %s16, 1
    %p139 = scmp.ne.s32.totalorder %s134, %s136
    %p140 = scmp.eq.s32.totalorder %s16, 0
    %p141 = por %p139, %p140
    %p142 = scmp.ne.s32.totalorder %s134, %s136
    %p143 = scmp.eq.s32.totalorder %s21, 1
    %p144 = por %p142, %p143
    %p145 = scmp.ne.s32.totalorder %s136, %s137
    %p146 = scmp.eq.s32.totalorder %s21, 0
    %p147 = por %p145, %p146
    %p148 = scmp.ne.s32.totalorder %s136, %s137
    %p149 = scmp.eq.s32.totalorder %s22, 1
    %p150 = por %p148, %p149
    %p152 = scmp.ne.s32.totalorder %s137, %s151
    %p153 = scmp.eq.s32.totalorder %s22, 0
    %p154 = por %p152, %p153
    %s156 = sadd.s32 %s155, 1
    %p159 = scmp.eq.s32.totalorder %s16, 1
    %p160 = scmp.ne.s32.totalorder %s155, %s157
    %p161 = scmp.eq.s32.totalorder %s16, 0
    %p162 = por %p160, %p161
    %p163 = scmp.ne.s32.totalorder %s155, %s157
    %p164 = scmp.eq.s32.totalorder %s21, 1
    %p165 = por %p163, %p164
    %p166 = scmp.ne.s32.totalorder %s157, %s158
    %p167 = scmp.eq.s32.totalorder %s21, 0
    %p168 = por %p166, %p167
    %p169 = scmp.ne.s32.totalorder %s157, %s158
    %p170 = scmp.eq.s32.totalorder %s22, 1
    %p171 = por %p169, %p170
    %p173 = scmp.ne.s32.totalorder %s158, %s172
    %p174 = scmp.eq.s32.totalorder %s22, 0
    %p175 = por %p173, %p174
    %s177 = sadd.s32 %s176, 1
    %p180 = scmp.eq.s32.totalorder %s16, 1
    %p181 = scmp.ne.s32.totalorder %s176, %s178
    %p182 = scmp.eq.s32.totalorder %s16, 0
    %p183 = por %p181, %p182
    %p184 = scmp.ne.s32.totalorder %s176, %s178
    %p185 = scmp.eq.s32.totalorder %s21, 1
    %p186 = por %p184, %p185
    %p187 = scmp.ne.s32.totalorder %s178, %s179
    %p188 = scmp.eq.s32.totalorder %s21, 0
    %p189 = por %p187, %p188
    %p190 = scmp.ne.s32.totalorder %s178, %s179
    %p191 = scmp.eq.s32.totalorder %s22, 1
    %p192 = por %p190, %p191
    %p194 = scmp.ne.s32.totalorder %s179, %s193
    %p195 = scmp.eq.s32.totalorder %s22, 0
    %p196 = por %p194, %p195
    %s198 = sadd.s32 %s197, 1
    %p201 = scmp.eq.s32.totalorder %s16, 1
    %p202 = scmp.ne.s32.totalorder %s197, %s199
    %p203 = scmp.eq.s32.totalorder %s16, 0
    %p204 = por %p202, %p203
    %p205 = scmp.ne.s32.totalorder %s197, %s199
    %p206 = scmp.eq.s32.totalorder %s21, 1
    %p207 = por %p205, %p206
    %p208 = scmp.ne.s32.totalorder %s199, %s200
    %p209 = scmp.eq.s32.totalorder %s21, 0
    %p210 = por %p208, %p209
    %p211 = scmp.ne.s32.totalorder %s199, %s200
    %p212 = scmp.eq.s32.totalorder %s22, 1
    %p213 = por %p211, %p212
    %p215 = scmp.ne.s32.totalorder %s200, %s214
    %p216 = scmp.eq.s32.totalorder %s22, 0
    %p217 = por %p215, %p216
    %s218 = ssub.s32 %s23, %s35
    %s219 = ssub.s32 %s24, %s31
    %s220 = sor.u32 %s218, %s219
    %p221 = scmp.eq.s32.totalorder %s220, 0
    %s223 = sadd.s32 %s222, 1
    %s224 = scalar_select %p221, %s222, %s223
    %p227 = pneg %p221
    %p228 = scmp.eq.s32.totalorder %s16, 1
    %p229 = por %p227, %p228
    %p230 = scmp.ne.s32.totalorder %s222, %s225
    %p231 = scmp.eq.s32.totalorder %s16, 0
    %p232 = por %p230, %p231
    %p233 = scmp.ne.s32.totalorder %s222, %s225
    %p234 = scmp.eq.s32.totalorder %s21, 1
    %p235 = por %p233, %p234
    %p236 = scmp.ne.s32.totalorder %s225, %s226
    %p237 = scmp.eq.s32.totalorder %s21, 0
    %p238 = por %p236, %p237
    %p239 = scmp.ne.s32.totalorder %s225, %s226
    %p240 = scmp.eq.s32.totalorder %s22, 1
    %p241 = por %p239, %p240
    %p243 = scmp.ne.s32.totalorder %s226, %s242
    %p244 = scmp.eq.s32.totalorder %s22, 0
    %p245 = por %p243, %p244
    %p246 = scmp.le.s32.totalorder 1, %s16
    %p247 = scmp.lt.s32.totalorder %s16, 3
    %p248 = pnand %p246, %p247
    %p249 = pneg %p248
    // Predicated region
    $region9: #{fno2d_forward.17} parent=5 // pred_check
      _
    $region10: #{fno2d_forward.17} parent=5 // pred_check_branch
      %251 = sbr.rel (%p248) target = $region12
    $region11: #{fno2d_forward.17} parent=5 // pred_region
      %s252 = ssub.s32 %s16, 1
      // Predicated region
      $region13: #{fno2d_forward.17} parent=11 // pred_check
        %p253 = pneg %p105
      $region14: #{fno2d_forward.17} parent=11 // pred_check_branch
        %255 = sbr.rel (%p253) target = $region16
      $region15: #{fno2d_forward.17} parent=11 // pred_region
        _
      $region16: #{fno2d_forward.17} parent=11 // pred_fallthru
        _
      // Predicated region
      $region17: #{fno2d_forward.17} parent=11 // pred_check
        %p256 = pneg %p126
      $region18: #{fno2d_forward.17} parent=11 // pred_check_branch
        %258 = sbr.rel (%p256) target = $region20
      $region19: #{fno2d_forward.17} parent=11 // pred_region
        _
      $region20: #{fno2d_forward.17} parent=11 // pred_fallthru
        _
      // Predicated region
      $region21: #{fno2d_forward.17} parent=11 // pred_check
        %p259 = pneg %p147
      $region22: #{fno2d_forward.17} parent=11 // pred_check_branch
        %261 = sbr.rel (%p259) target = $region24
      $region23: #{fno2d_forward.17} parent=11 // pred_region
        _
      $region24: #{fno2d_forward.17} parent=11 // pred_fallthru
        _
      // Predicated region
      $region25: #{fno2d_forward.17} parent=11 // pred_check
        %p262 = pneg %p168
      $region26: #{fno2d_forward.17} parent=11 // pred_check_branch
        %264 = sbr.rel (%p262) target = $region28
      $region27: #{fno2d_forward.17} parent=11 // pred_region
        _
      $region28: #{fno2d_forward.17} parent=11 // pred_fallthru
        _
      // Predicated region
      $region29: #{fno2d_forward.17} parent=11 // pred_check
        %p265 = pneg %p189
      $region30: #{fno2d_forward.17} parent=11 // pred_check_branch
        %267 = sbr.rel (%p265) target = $region32
      $region31: #{fno2d_forward.17} parent=11 // pred_region
        _
      $region32: #{fno2d_forward.17} parent=11 // pred_fallthru
        _
      // Predicated region
      $region33: #{fno2d_forward.17} parent=11 // pred_check
        %p268 = pneg %p210
      $region34: #{fno2d_forward.17} parent=11 // pred_check_branch
        %270 = sbr.rel (%p268) target = $region36
      $region35: #{fno2d_forward.17} parent=11 // pred_region
        _
      $region36: #{fno2d_forward.17} parent=11 // pred_fallthru
        _
    $region12: #{fno2d_forward.17} parent=5 // pred_fallthru
      _
    %p271 = scmp.lt.s32.totalorder %s16, 2
    // Predicated region
    $region37: #{fno2d_forward.17} parent=5 // pred_check
      %p272 = pneg %p271
    $region38: #{fno2d_forward.17} parent=5 // pred_check_branch
      %274 = sbr.rel (%p272) target = $region40
    $region39: #{fno2d_forward.17} parent=5 // pred_region
      // Predicated region
      $region41: #{fno2d_forward.17} parent=39 // pred_check
        %p275 = pneg %p50
      $region42: #{fno2d_forward.17} parent=39 // pred_check_branch
        %277 = sbr.rel (%p275) target = $region44
      $region43: #{fno2d_forward.17} parent=39 // pred_region
        %s278 = smul.u32 2, %s24
        %p279 = scmp.lt.s32.totalorder %s23, 1
        %s280 = scalar_select %p279, %s23, 1
        %p281 = scmp.lt.s32.totalorder %s278, 1
        %s282 = scalar_select %p281, %s278, 1
        %s283 = smul.addr %s280, 6
        %s284 = sadd.s32 %s282, %s283
        %s285 = smul.addr %s284, 8
        %s286 = scalar_lea.vmem %s0, %s285
        %s287 = smul.u32 2, %s24
      $region44: #{fno2d_forward.17} parent=39 // pred_fallthru
        _
      // Predicated region
      $region45: #{fno2d_forward.17} parent=39 // pred_check
        %p288 = pneg %p78
      $region46: #{fno2d_forward.17} parent=39 // pred_check_branch
        %290 = sbr.rel (%p288) target = $region48
      $region47: #{fno2d_forward.17} parent=39 // pred_region
        %s291 = smul.u32 2, %s24
        %p292 = scmp.lt.s32.totalorder %s23, 1
        %s293 = scalar_select %p292, %s23, 1
        %p294 = scmp.lt.s32.totalorder %s291, 1
        %s295 = scalar_select %p294, %s291, 1
        %s296 = smul.addr %s293, 6
        %s297 = sadd.s32 %s295, %s296
        %s298 = smul.addr %s297, 4
        %s299 = scalar_lea.vmem %s1, %s298
        %s300 = smul.u32 2, %s24
      $region48: #{fno2d_forward.17} parent=39 // pred_fallthru
        _
    $region40: #{fno2d_forward.17} parent=5 // pred_fallthru
      _
    %p301 = scmp.le.s32.totalorder 1, %s16
    %p302 = scmp.lt.s32.totalorder %s16, 3
    %p303 = pnand %p301, %p302
    %p304 = pneg %p303
    // Predicated region
    $region49: #{fno2d_forward.17} parent=5 // pred_check
      _
    $region50: #{fno2d_forward.17} parent=5 // pred_check_branch
      %306 = sbr.rel (%p303) target = $region52
    $region51: #{fno2d_forward.17} parent=5 // pred_region
      %s307 = ssub.s32 %s16, 1
      %s308 = smul.u32 2, %s26
      %p309 = scmp.lt.s32.totalorder %s25, 1
      %s310 = scalar_select %p309, %s25, 1
      %p311 = scmp.lt.s32.totalorder %s308, 1
      %s312 = scalar_select %p311, %s308, 1
      %s313 = smul.addr %s310, 6
      %s314 = sadd.s32 %s312, %s313
      %s315 = smul.addr %s314, 8
      %s316 = scalar_lea.vmem %s0, %s315
      %p317 = pneg %p56
      %p318 = pneg %p53
      %s319 = smul.u32 2, %s26
      %p320 = scmp.lt.s32.totalorder %s25, 1
      %s321 = scalar_select %p320, %s25, 1
      %p322 = scmp.lt.s32.totalorder %s319, 1
      %s323 = scalar_select %p322, %s319, 1
      %s324 = smul.addr %s321, 6
      %s325 = sadd.s32 %s323, %s324
      %s326 = smul.addr %s325, 4
      %s327 = scalar_lea.vmem %s1, %s326
      %p328 = pneg %p84
      %p329 = pneg %p81
      %p330 = pneg %p105
      %p331 = pneg %p102
      %p332 = pneg %p126
      %p333 = pneg %p123
      %p334 = pneg %p147
      %p335 = pneg %p144
      %p336 = pneg %p168
      %p337 = pneg %p165
      %p338 = pneg %p189
      %p339 = pneg %p186
      %p340 = pneg %p210
      %p341 = pneg %p207
      %p342 = pneg %p238
      %p343 = pneg %p235
      %s344 = smul.u32 2, %s26
      %p345 = scmp.lt.s32.totalorder %s25, 1
      %s346 = scalar_select %p345, %s25, 1
      %p347 = scmp.lt.s32.totalorder %s344, 1
      %s348 = scalar_select %p347, %s344, 1
      %s349 = smul.addr %s346, 2
      %s350 = sadd.s32 %s348, %s349
      %s351 = scalar_lea.vmem %s8, %s350
      %s352 = smul.u32 2, %s26
      %p353 = scmp.lt.s32.totalorder %s25, 1
      %s354 = scalar_select %p353, %s25, 1
      %p355 = scmp.lt.s32.totalorder %s352, 1
      %s356 = scalar_select %p355, %s352, 1
      %s357 = smul.addr %s354, 6
      %s358 = sadd.s32 %s356, %s357
      %s359 = smul.addr %s358, 8
      %s360 = scalar_lea.vmem %s0, %s359
      %s361 = smul.u32 2, %s26
      %s362 = smul.u32 2, %s26
      %p363 = scmp.lt.s32.totalorder %s25, 1
      %s364 = scalar_select %p363, %s25, 1
      %p365 = scmp.lt.s32.totalorder %s362, 1
      %s366 = scalar_select %p365, %s362, 1
      %s367 = smul.addr %s364, 6
      %s368 = sadd.s32 %s366, %s367
      %s369 = smul.addr %s368, 4
      %s370 = scalar_lea.vmem %s1, %s369
      %s371 = smul.u32 2, %s26
      %s372 = smul.u32 2, %s26
      %p373 = scmp.lt.s32.totalorder %s25, 1
      %s374 = scalar_select %p373, %s25, 1
      %p375 = scmp.lt.s32.totalorder %s372, 1
      %s376 = scalar_select %p375, %s372, 1
      %s377 = smul.addr %s374, 2
      %s378 = sadd.s32 %s376, %s377
      %s379 = scalar_lea.vmem %s8, %s378
      %s380 = smul.u32 2, %s26
      %v381 = vld [vmem:[%s370] sm:$0xff]
      %v382 = vld [vmem:[%s370 + $0x8] sm:$0xff]
      %v383 = vld [vmem:[%s370 + $0x10] sm:$0x33]
      %v384 = vunpack.c.l.bf16 %v381
      %v385 = vunpack.c.h.bf16 %v381
      %v386 = vunpack.c.l.bf16 %v382
      %v387 = vunpack.c.h.bf16 %v382
      %v388 = vunpack.c.l.bf16 %v383
      %v389 = vunpack.c.h.bf16 %v383
      %v390 = vld [vmem:[%s2] sm:$0xff]
      %v391 = vld [vmem:[%s2 + $0x8] sm:$0xff]
      %v392 = vld [vmem:[%s2 + $0x10] sm:$0xf]
      %v393 = vld [vmem:[%s3] sm:$0xff]
      %v394 = vld [vmem:[%s3 + $0x8] sm:$0xff]
      %v395 = vld [vmem:[%s3 + $0x10] sm:$0xf]
      %397 = vset.pattern.permute.xlu0 0
      %398 = vperm.xlu0 %397, %v393
      %v399 = vpop.permute.xlu0 %398
      %402 = vset.pattern.permute.xlu0 0
      %403 = vperm.xlu0 %402, %v394
      %v404 = vpop.permute.xlu0 %403
      %407 = vset.pattern.permute.xlu0 0
      %408 = vperm.xlu0 %407, %v395
      %v409 = vpop.permute.xlu0 %408
      %vm411 = vcmask 162816
      %v413 = vsel %vm411, %v390, 0
      %v416 = vsel %vm411, %v391, 0
      %v419 = vsel %vm411, %v392, 0
      %vm421 = vcmask 1043456
      %v423 = vsel %vm421, %v388, 0
      %v426 = vsel %vm421, %v389, 0
      %428 = vmatpush.msra.mxu0 0.0
      %429 = vmatpush.msra.mxu0 0.0
      %430 = vmatpush.msra.mxu0 0.0
      %431 = vmatpush.msra.mxu0 0.0
      %432 = vmatpush.msra.mxu0 0.0
      %433 = vmatpush.msra.mxu0 0.0
      %434 = vmatpush.msra.mxu0 0.0
      %435 = vmatpush.msra.mxu0 0.0
      %436 = vmatpush.msra.mxu0 0.0
      %437 = vmatpush.msra.mxu0 0.0
      %438 = vmatpush.msra.mxu0 0.0
      %439 = vmatpush.msra.mxu0 0.0
      %440 = vmatpush.msra.mxu0 0.0
      %441 = vmatpush.msra.mxu0 %v423
      %442 = vmatpush.msra.mxu0 %v386
      %443 = vmatpush.msra.mxu0 %v384
      %444 = vmatmul.f32.gmra.mxu0 %v413
      %v445 = vpop.f32.mrf.mxu0
      %v446 = vadd.f32 %v399, %v445
      %447 = vmatmul.f32.gmra.mxu0 %v416
      %v448 = vpop.f32.mrf.mxu0
      %v449 = vadd.f32 %v404, %v448
      %450 = vmatmul.f32.gmra.mxu0 %v419
      %v451 = vpop.f32.mrf.mxu0
      %v452 = vadd.f32 %v409, %v451
      %453 = vdwg.mxu0
      %454 = vmatpush.msra.mxu0 0.0
      %455 = vmatpush.msra.mxu0 0.0
      %456 = vmatpush.msra.mxu0 0.0
      %457 = vmatpush.msra.mxu0 0.0
      %458 = vmatpush.msra.mxu0 0.0
      %459 = vmatpush.msra.mxu0 0.0
      %460 = vmatpush.msra.mxu0 0.0
      %461 = vmatpush.msra.mxu0 0.0
      %462 = vmatpush.msra.mxu0 0.0
      %463 = vmatpush.msra.mxu0 0.0
      %464 = vmatpush.msra.mxu0 0.0
      %465 = vmatpush.msra.mxu0 0.0
      %466 = vmatpush.msra.mxu0 0.0
      %467 = vmatpush.msra.mxu0 %v426
      %468 = vmatpush.msra.mxu0 %v387
      %469 = vmatpush.msra.mxu0 %v385
      %470 = vmatmul.f32.gmra.mxu0 %v413
      %v471 = vpop.f32.mrf.mxu0
      %v472 = vadd.f32 %v399, %v471
      %473 = vmatmul.f32.gmra.mxu0 %v416
      %v474 = vpop.f32.mrf.mxu0
      %v475 = vadd.f32 %v404, %v474
      %476 = vmatmul.f32.gmra.mxu0 %v419
      %v477 = vpop.f32.mrf.mxu0
      %v478 = vadd.f32 %v409, %v477
      %479 = vdwg.mxu0
      %v480 = vld [vmem:[%s360] sm:$0xff]
      %v481 = vld [vmem:[%s360 + $0x8] sm:$0xff]
      %v482 = vld [vmem:[%s360 + $0x10] sm:$0xff]
      %v483 = vld [vmem:[%s360 + $0x18] sm:$0xff]
      %v484 = vld [vmem:[%s360 + $0x20] sm:$0xf]
      %v485 = vld [vmem:[%s360 + $0x28] sm:$0xf]
      %v486 = vadd.f32 %v446, %v480
      %v487 = vadd.f32 %v472, %v481
      %v488 = vadd.f32 %v449, %v482
      %v489 = vadd.f32 %v475, %v483
      %v490 = vadd.f32 %v452, %v484
      %v491 = vadd.f32 %v478, %v485
      %v492 = vld [vmem:[%s4] sm:$0xff]
      %v493 = vld [vmem:[%s4 + $0x8] sm:$0xff]
      %v494 = vld [vmem:[%s4 + $0x10] sm:$0xff]
      %v495 = vld [vmem:[%s4 + $0x18] sm:$0xff]
      %v496 = vld [vmem:[%s4 + $0x20] sm:$0xff]
      %v497 = vld [vmem:[%s4 + $0x28] sm:$0xff]
      %v498 = vld [vmem:[%s4 + $0x30] sm:$0xff]
      %v499 = vld [vmem:[%s4 + $0x38] sm:$0xff]
      %v500 = vld [vmem:[%s4 + $0x40] sm:$0xff]
      %v501 = vld [vmem:[%s4 + $0x48] sm:$0xff]
      %v502 = vld [vmem:[%s4 + $0x50] sm:$0xff]
      %v503 = vld [vmem:[%s4 + $0x58] sm:$0xff]
      %v504 = vld [vmem:[%s4 + $0x60] sm:$0xff]
      %v505 = vld [vmem:[%s4 + $0x68] sm:$0xff]
      %v506 = vld [vmem:[%s4 + $0x70] sm:$0xff]
      %v507 = vld [vmem:[%s4 + $0x78] sm:$0xff]
      %v508 = vld [vmem:[%s5] sm:$0xff]
      %v509 = vld [vmem:[%s5 + $0x8] sm:$0xff]
      %v510 = vld [vmem:[%s5 + $0x10] sm:$0xff]
      %v511 = vld [vmem:[%s5 + $0x18] sm:$0xff]
      %v512 = vld [vmem:[%s5 + $0x20] sm:$0xff]
      %v513 = vld [vmem:[%s5 + $0x28] sm:$0xff]
      %v514 = vld [vmem:[%s5 + $0x30] sm:$0xff]
      %v515 = vld [vmem:[%s5 + $0x38] sm:$0xff]
      %v516 = vld [vmem:[%s5 + $0x40] sm:$0xff]
      %v517 = vld [vmem:[%s5 + $0x48] sm:$0xff]
      %v518 = vld [vmem:[%s5 + $0x50] sm:$0xff]
      %v519 = vld [vmem:[%s5 + $0x58] sm:$0xff]
      %v520 = vld [vmem:[%s5 + $0x60] sm:$0xff]
      %v521 = vld [vmem:[%s5 + $0x68] sm:$0xff]
      %v522 = vld [vmem:[%s5 + $0x70] sm:$0xff]
      %v523 = vld [vmem:[%s5 + $0x78] sm:$0xff]
      %525 = vset.pattern.permute.xlu0 0
      %526 = vperm.xlu0 %525, %v508
      %v527 = vpop.permute.xlu0 %526
      %530 = vset.pattern.permute.xlu0 0
      %531 = vperm.xlu0 %530, %v509
      %v532 = vpop.permute.xlu0 %531
      %535 = vset.pattern.permute.xlu0 0
      %536 = vperm.xlu0 %535, %v510
      %v537 = vpop.permute.xlu0 %536
      %540 = vset.pattern.permute.xlu0 0
      %541 = vperm.xlu0 %540, %v511
      %v542 = vpop.permute.xlu0 %541
      %545 = vset.pattern.permute.xlu0 0
      %546 = vperm.xlu0 %545, %v512
      %v547 = vpop.permute.xlu0 %546
      %550 = vset.pattern.permute.xlu0 0
      %551 = vperm.xlu0 %550, %v513
      %v552 = vpop.permute.xlu0 %551
      %555 = vset.pattern.permute.xlu0 0
      %556 = vperm.xlu0 %555, %v514
      %v557 = vpop.permute.xlu0 %556
      %560 = vset.pattern.permute.xlu0 0
      %561 = vperm.xlu0 %560, %v515
      %v562 = vpop.permute.xlu0 %561
      %565 = vset.pattern.permute.xlu0 0
      %566 = vperm.xlu0 %565, %v516
      %v567 = vpop.permute.xlu0 %566
      %570 = vset.pattern.permute.xlu0 0
      %571 = vperm.xlu0 %570, %v517
      %v572 = vpop.permute.xlu0 %571
      %575 = vset.pattern.permute.xlu0 0
      %576 = vperm.xlu0 %575, %v518
      %v577 = vpop.permute.xlu0 %576
      %580 = vset.pattern.permute.xlu0 0
      %581 = vperm.xlu0 %580, %v519
      %v582 = vpop.permute.xlu0 %581
      %585 = vset.pattern.permute.xlu0 0
      %586 = vperm.xlu0 %585, %v520
      %v587 = vpop.permute.xlu0 %586
      %590 = vset.pattern.permute.xlu0 0
      %591 = vperm.xlu0 %590, %v521
      %v592 = vpop.permute.xlu0 %591
      %595 = vset.pattern.permute.xlu0 0
      %596 = vperm.xlu0 %595, %v522
      %v597 = vpop.permute.xlu0 %596
      %600 = vset.pattern.permute.xlu0 0
      %601 = vperm.xlu0 %600, %v523
      %v602 = vpop.permute.xlu0 %601
      %v605 = vsel %vm411, %v492, 0
      %v608 = vsel %vm411, %v493, 0
      %v611 = vsel %vm411, %v494, 0
      %v614 = vsel %vm411, %v495, 0
      %v617 = vsel %vm411, %v496, 0
      %v620 = vsel %vm411, %v497, 0
      %v623 = vsel %vm411, %v498, 0
      %v626 = vsel %vm411, %v499, 0
      %v629 = vsel %vm411, %v500, 0
      %v632 = vsel %vm411, %v501, 0
      %v635 = vsel %vm411, %v502, 0
      %v638 = vsel %vm411, %v503, 0
      %v641 = vsel %vm411, %v504, 0
      %v644 = vsel %vm411, %v505, 0
      %v647 = vsel %vm411, %v506, 0
      %v650 = vsel %vm411, %v507, 0
      %v653 = vsel %vm421, %v490, 0
      %v656 = vsel %vm421, %v491, 0
      %658 = vmatpush.msra.mxu0 0.0
      %659 = vmatpush.msra.mxu0 0.0
      %660 = vmatpush.msra.mxu0 0.0
      %661 = vmatpush.msra.mxu0 0.0
      %662 = vmatpush.msra.mxu0 0.0
      %663 = vmatpush.msra.mxu0 0.0
      %664 = vmatpush.msra.mxu0 0.0
      %665 = vmatpush.msra.mxu0 0.0
      %666 = vmatpush.msra.mxu0 0.0
      %667 = vmatpush.msra.mxu0 0.0
      %668 = vmatpush.msra.mxu0 0.0
      %669 = vmatpush.msra.mxu0 0.0
      %670 = vmatpush.msra.mxu0 0.0
      %671 = vmatpush.msra.mxu0 %v653
      %672 = vmatpush.msra.mxu0 %v488
      %673 = vmatpush.msra.mxu0 %v486
      %674 = vmatmul.f32.gmra.mxu0 %v605
      %v675 = vpop.f32.mrf.mxu0
      %v676 = vadd.f32 %v527, %v675
      %677 = vmatmul.f32.gmra.mxu0 %v608
      %v678 = vpop.f32.mrf.mxu0
      %v679 = vadd.f32 %v532, %v678
      %680 = vmatmul.f32.gmra.mxu0 %v611
      %v681 = vpop.f32.mrf.mxu0
      %v682 = vadd.f32 %v537, %v681
      %683 = vmatmul.f32.gmra.mxu0 %v614
      %v684 = vpop.f32.mrf.mxu0
      %v685 = vadd.f32 %v542, %v684
      %686 = vmatmul.f32.gmra.mxu0 %v617
      %v687 = vpop.f32.mrf.mxu0
      %v688 = vadd.f32 %v547, %v687
      %689 = vmatmul.f32.gmra.mxu0 %v620
      %v690 = vpop.f32.mrf.mxu0
      %v691 = vadd.f32 %v552, %v690
      %692 = vmatmul.f32.gmra.mxu0 %v623
      %v693 = vpop.f32.mrf.mxu0
      %v694 = vadd.f32 %v557, %v693
      %695 = vmatmul.f32.gmra.mxu0 %v626
      %v696 = vpop.f32.mrf.mxu0
      %v697 = vadd.f32 %v562, %v696
      %698 = vmatmul.f32.gmra.mxu0 %v629
      %v699 = vpop.f32.mrf.mxu0
      %v700 = vadd.f32 %v567, %v699
      %701 = vmatmul.f32.gmra.mxu0 %v632
      %v702 = vpop.f32.mrf.mxu0
      %v703 = vadd.f32 %v572, %v702
      %704 = vmatmul.f32.gmra.mxu0 %v635
      %v705 = vpop.f32.mrf.mxu0
      %v706 = vadd.f32 %v577, %v705
      %707 = vmatmul.f32.gmra.mxu0 %v638
      %v708 = vpop.f32.mrf.mxu0
      %v709 = vadd.f32 %v582, %v708
      %710 = vmatmul.f32.gmra.mxu0 %v641
      %v711 = vpop.f32.mrf.mxu0
      %v712 = vadd.f32 %v587, %v711
      %713 = vmatmul.f32.gmra.mxu0 %v644
      %v714 = vpop.f32.mrf.mxu0
      %v715 = vadd.f32 %v592, %v714
      %716 = vmatmul.f32.gmra.mxu0 %v647
      %v717 = vpop.f32.mrf.mxu0
      %v718 = vadd.f32 %v597, %v717
      %719 = vmatmul.f32.gmra.mxu0 %v650
      %v720 = vpop.f32.mrf.mxu0
      %v721 = vadd.f32 %v602, %v720
      %722 = vdwg.mxu0
      %723 = vmatpush.msra.mxu0 0.0
      %724 = vmatpush.msra.mxu0 0.0
      %725 = vmatpush.msra.mxu0 0.0
      %726 = vmatpush.msra.mxu0 0.0
      %727 = vmatpush.msra.mxu0 0.0
      %728 = vmatpush.msra.mxu0 0.0
      %729 = vmatpush.msra.mxu0 0.0
      %730 = vmatpush.msra.mxu0 0.0
      %731 = vmatpush.msra.mxu0 0.0
      %732 = vmatpush.msra.mxu0 0.0
      %733 = vmatpush.msra.mxu0 0.0
      %734 = vmatpush.msra.mxu0 0.0
      %735 = vmatpush.msra.mxu0 0.0
      %736 = vmatpush.msra.mxu0 %v656
      %737 = vmatpush.msra.mxu0 %v489
      %738 = vmatpush.msra.mxu0 %v487
      %739 = vmatmul.f32.gmra.mxu0 %v605
      %v740 = vpop.f32.mrf.mxu0
      %v741 = vadd.f32 %v527, %v740
      %742 = vmatmul.f32.gmra.mxu0 %v608
      %v743 = vpop.f32.mrf.mxu0
      %v744 = vadd.f32 %v532, %v743
      %745 = vmatmul.f32.gmra.mxu0 %v611
      %v746 = vpop.f32.mrf.mxu0
      %v747 = vadd.f32 %v537, %v746
      %748 = vmatmul.f32.gmra.mxu0 %v614
      %v749 = vpop.f32.mrf.mxu0
      %v750 = vadd.f32 %v542, %v749
      %751 = vmatmul.f32.gmra.mxu0 %v617
      %v752 = vpop.f32.mrf.mxu0
      %v753 = vadd.f32 %v547, %v752
      %754 = vmatmul.f32.gmra.mxu0 %v620
      %v755 = vpop.f32.mrf.mxu0
      %v756 = vadd.f32 %v552, %v755
      %757 = vmatmul.f32.gmra.mxu0 %v623
      %v758 = vpop.f32.mrf.mxu0
      %v759 = vadd.f32 %v557, %v758
      %760 = vmatmul.f32.gmra.mxu0 %v626
      %v761 = vpop.f32.mrf.mxu0
      %v762 = vadd.f32 %v562, %v761
      %763 = vmatmul.f32.gmra.mxu0 %v629
      %v764 = vpop.f32.mrf.mxu0
      %v765 = vadd.f32 %v567, %v764
      %766 = vmatmul.f32.gmra.mxu0 %v632
      %v767 = vpop.f32.mrf.mxu0
      %v768 = vadd.f32 %v572, %v767
      %769 = vmatmul.f32.gmra.mxu0 %v635
      %v770 = vpop.f32.mrf.mxu0
      %v771 = vadd.f32 %v577, %v770
      %772 = vmatmul.f32.gmra.mxu0 %v638
      %v773 = vpop.f32.mrf.mxu0
      %v774 = vadd.f32 %v582, %v773
      %775 = vmatmul.f32.gmra.mxu0 %v641
      %v776 = vpop.f32.mrf.mxu0
      %v777 = vadd.f32 %v587, %v776
      %778 = vmatmul.f32.gmra.mxu0 %v644
      %v779 = vpop.f32.mrf.mxu0
      %v780 = vadd.f32 %v592, %v779
      %781 = vmatmul.f32.gmra.mxu0 %v647
      %v782 = vpop.f32.mrf.mxu0
      %v783 = vadd.f32 %v597, %v782
      %784 = vmatmul.f32.gmra.mxu0 %v650
      %v785 = vpop.f32.mrf.mxu0
      %v786 = vadd.f32 %v602, %v785
      %787 = vdwg.mxu0
      %v788 = vmul.f32 %v676, 0.5
      %v789 = vmul.f32 %v741, 0.5
      %v790 = vmul.f32 %v679, 0.5
      %v791 = vmul.f32 %v744, 0.5
      %v792 = vmul.f32 %v682, 0.5
      %v793 = vmul.f32 %v747, 0.5
      %v794 = vmul.f32 %v685, 0.5
      %v795 = vmul.f32 %v750, 0.5
      %v796 = vmul.f32 %v688, 0.5
      %v797 = vmul.f32 %v753, 0.5
      %v798 = vmul.f32 %v691, 0.5
      %v799 = vmul.f32 %v756, 0.5
      %v800 = vmul.f32 %v694, 0.5
      %v801 = vmul.f32 %v759, 0.5
      %v802 = vmul.f32 %v697, 0.5
      %v803 = vmul.f32 %v762, 0.5
      %v804 = vmul.f32 %v700, 0.5
      %v805 = vmul.f32 %v765, 0.5
      %v806 = vmul.f32 %v703, 0.5
      %v807 = vmul.f32 %v768, 0.5
      %v808 = vmul.f32 %v706, 0.5
      %v809 = vmul.f32 %v771, 0.5
      %v810 = vmul.f32 %v709, 0.5
      %v811 = vmul.f32 %v774, 0.5
      %v812 = vmul.f32 %v712, 0.5
      %v813 = vmul.f32 %v777, 0.5
      %v814 = vmul.f32 %v715, 0.5
      %v815 = vmul.f32 %v780, 0.5
      %v816 = vmul.f32 %v718, 0.5
      %v817 = vmul.f32 %v783, 0.5
      %v818 = vmul.f32 %v721, 0.5
      %v819 = vmul.f32 %v786, 0.5
      %v820 = vmul.f32 %v676, 0.044715
      %v821 = vmul.f32 %v741, 0.044715
      %v822 = vmul.f32 %v679, 0.044715
      %v823 = vmul.f32 %v744, 0.044715
      %v824 = vmul.f32 %v682, 0.044715
      %v825 = vmul.f32 %v747, 0.044715
      %v826 = vmul.f32 %v685, 0.044715
      %v827 = vmul.f32 %v750, 0.044715
      %v828 = vmul.f32 %v688, 0.044715
      %v829 = vmul.f32 %v753, 0.044715
      %v830 = vmul.f32 %v691, 0.044715
      %v831 = vmul.f32 %v756, 0.044715
      %v832 = vmul.f32 %v694, 0.044715
      %v833 = vmul.f32 %v759, 0.044715
      %v834 = vmul.f32 %v697, 0.044715
      %v835 = vmul.f32 %v762, 0.044715
      %v836 = vmul.f32 %v700, 0.044715
      %v837 = vmul.f32 %v765, 0.044715
      %v838 = vmul.f32 %v703, 0.044715
      %v839 = vmul.f32 %v768, 0.044715
      %v840 = vmul.f32 %v706, 0.044715
      %v841 = vmul.f32 %v771, 0.044715
      %v842 = vmul.f32 %v709, 0.044715
      %v843 = vmul.f32 %v774, 0.044715
      %v844 = vmul.f32 %v712, 0.044715
      %v845 = vmul.f32 %v777, 0.044715
      %v846 = vmul.f32 %v715, 0.044715
      %v847 = vmul.f32 %v780, 0.044715
      %v848 = vmul.f32 %v718, 0.044715
      %v849 = vmul.f32 %v783, 0.044715
      %v850 = vmul.f32 %v721, 0.044715
      %v851 = vmul.f32 %v786, 0.044715
      %v852 = vmul.f32 %v820, %v676
      %v853 = vmul.f32 %v821, %v741
      %v854 = vmul.f32 %v822, %v679
      %v855 = vmul.f32 %v823, %v744
      %v856 = vmul.f32 %v824, %v682
      %v857 = vmul.f32 %v825, %v747
      %v858 = vmul.f32 %v826, %v685
      %v859 = vmul.f32 %v827, %v750
      %v860 = vmul.f32 %v828, %v688
      %v861 = vmul.f32 %v829, %v753
      %v862 = vmul.f32 %v830, %v691
      %v863 = vmul.f32 %v831, %v756
      %v864 = vmul.f32 %v832, %v694
      %v865 = vmul.f32 %v833, %v759
      %v866 = vmul.f32 %v834, %v697
      %v867 = vmul.f32 %v835, %v762
      %v868 = vmul.f32 %v836, %v700
      %v869 = vmul.f32 %v837, %v765
      %v870 = vmul.f32 %v838, %v703
      %v871 = vmul.f32 %v839, %v768
      %v872 = vmul.f32 %v840, %v706
      %v873 = vmul.f32 %v841, %v771
      %v874 = vmul.f32 %v842, %v709
      %v875 = vmul.f32 %v843, %v774
      %v876 = vmul.f32 %v844, %v712
      %v877 = vmul.f32 %v845, %v777
      %v878 = vmul.f32 %v846, %v715
      %v879 = vmul.f32 %v847, %v780
      %v880 = vmul.f32 %v848, %v718
      %v881 = vmul.f32 %v849, %v783
      %v882 = vmul.f32 %v850, %v721
      %v883 = vmul.f32 %v851, %v786
      %v884 = vmul.f32 %v852, %v676
      %v885 = vmul.f32 %v853, %v741
      %v886 = vmul.f32 %v854, %v679
      %v887 = vmul.f32 %v855, %v744
      %v888 = vmul.f32 %v856, %v682
      %v889 = vmul.f32 %v857, %v747
      %v890 = vmul.f32 %v858, %v685
      %v891 = vmul.f32 %v859, %v750
      %v892 = vmul.f32 %v860, %v688
      %v893 = vmul.f32 %v861, %v753
      %v894 = vmul.f32 %v862, %v691
      %v895 = vmul.f32 %v863, %v756
      %v896 = vmul.f32 %v864, %v694
      %v897 = vmul.f32 %v865, %v759
      %v898 = vmul.f32 %v866, %v697
      %v899 = vmul.f32 %v867, %v762
      %v900 = vmul.f32 %v868, %v700
      %v901 = vmul.f32 %v869, %v765
      %v902 = vmul.f32 %v870, %v703
      %v903 = vmul.f32 %v871, %v768
      %v904 = vmul.f32 %v872, %v706
      %v905 = vmul.f32 %v873, %v771
      %v906 = vmul.f32 %v874, %v709
      %v907 = vmul.f32 %v875, %v774
      %v908 = vmul.f32 %v876, %v712
      %v909 = vmul.f32 %v877, %v777
      %v910 = vmul.f32 %v878, %v715
      %v911 = vmul.f32 %v879, %v780
      %v912 = vmul.f32 %v880, %v718
      %v913 = vmul.f32 %v881, %v783
      %v914 = vmul.f32 %v882, %v721
      %v915 = vmul.f32 %v883, %v786
      %v916 = vadd.f32 %v676, %v884
      %v917 = vadd.f32 %v741, %v885
      %v918 = vadd.f32 %v679, %v886
      %v919 = vadd.f32 %v744, %v887
      %v920 = vadd.f32 %v682, %v888
      %v921 = vadd.f32 %v747, %v889
      %v922 = vadd.f32 %v685, %v890
      %v923 = vadd.f32 %v750, %v891
      %v924 = vadd.f32 %v688, %v892
      %v925 = vadd.f32 %v753, %v893
      %v926 = vadd.f32 %v691, %v894
      %v927 = vadd.f32 %v756, %v895
      %v928 = vadd.f32 %v694, %v896
      %v929 = vadd.f32 %v759, %v897
      %v930 = vadd.f32 %v697, %v898
      %v931 = vadd.f32 %v762, %v899
      %v932 = vadd.f32 %v700, %v900
      %v933 = vadd.f32 %v765, %v901
      %v934 = vadd.f32 %v703, %v902
      %v935 = vadd.f32 %v768, %v903
      %v936 = vadd.f32 %v706, %v904
      %v937 = vadd.f32 %v771, %v905
      %v938 = vadd.f32 %v709, %v906
      %v939 = vadd.f32 %v774, %v907
      %v940 = vadd.f32 %v712, %v908
      %v941 = vadd.f32 %v777, %v909
      %v942 = vadd.f32 %v715, %v910
      %v943 = vadd.f32 %v780, %v911
      %v944 = vadd.f32 %v718, %v912
      %v945 = vadd.f32 %v783, %v913
      %v946 = vadd.f32 %v721, %v914
      %v947 = vadd.f32 %v786, %v915
      %v948 = vmul.f32 %v916, 0.7978846
      %v949 = vmul.f32 %v917, 0.7978846
      %v950 = vmul.f32 %v918, 0.7978846
      %v951 = vmul.f32 %v919, 0.7978846
      %v952 = vmul.f32 %v920, 0.7978846
      %v953 = vmul.f32 %v921, 0.7978846
      %v954 = vmul.f32 %v922, 0.7978846
      %v955 = vmul.f32 %v923, 0.7978846
      %v956 = vmul.f32 %v924, 0.7978846
      %v957 = vmul.f32 %v925, 0.7978846
      %v958 = vmul.f32 %v926, 0.7978846
      %v959 = vmul.f32 %v927, 0.7978846
      %v960 = vmul.f32 %v928, 0.7978846
      %v961 = vmul.f32 %v929, 0.7978846
      %v962 = vmul.f32 %v930, 0.7978846
      %v963 = vmul.f32 %v931, 0.7978846
      %v964 = vmul.f32 %v932, 0.7978846
      %v965 = vmul.f32 %v933, 0.7978846
      %v966 = vmul.f32 %v934, 0.7978846
      %v967 = vmul.f32 %v935, 0.7978846
      %v968 = vmul.f32 %v936, 0.7978846
      %v969 = vmul.f32 %v937, 0.7978846
      %v970 = vmul.f32 %v938, 0.7978846
      %v971 = vmul.f32 %v939, 0.7978846
      %v972 = vmul.f32 %v940, 0.7978846
      %v973 = vmul.f32 %v941, 0.7978846
      %v974 = vmul.f32 %v942, 0.7978846
      %v975 = vmul.f32 %v943, 0.7978846
      %v976 = vmul.f32 %v944, 0.7978846
      %v977 = vmul.f32 %v945, 0.7978846
      %v978 = vmul.f32 %v946, 0.7978846
      %v979 = vmul.f32 %v947, 0.7978846
      %v980 = vtanh.pop %v948
      %v981 = vtanh.pop %v949
      %v982 = vtanh.pop %v950
      %v983 = vtanh.pop %v951
      %v984 = vtanh.pop %v952
      %v985 = vtanh.pop %v953
      %v986 = vtanh.pop %v954
      %v987 = vtanh.pop %v955
      %v988 = vtanh.pop %v956
      %v989 = vtanh.pop %v957
      %v990 = vtanh.pop %v958
      %v991 = vtanh.pop %v959
      %v992 = vtanh.pop %v960
      %v993 = vtanh.pop %v961
      %v994 = vtanh.pop %v962
      %v995 = vtanh.pop %v963
      %v996 = vtanh.pop %v964
      %v997 = vtanh.pop %v965
      %v998 = vtanh.pop %v966
      %v999 = vtanh.pop %v967
      %v1000 = vtanh.pop %v968
      %v1001 = vtanh.pop %v969
      %v1002 = vtanh.pop %v970
      %v1003 = vtanh.pop %v971
      %v1004 = vtanh.pop %v972
      %v1005 = vtanh.pop %v973
      %v1006 = vtanh.pop %v974
      %v1007 = vtanh.pop %v975
      %v1008 = vtanh.pop %v976
      %v1009 = vtanh.pop %v977
      %v1010 = vtanh.pop %v978
      %v1011 = vtanh.pop %v979
      %v1012 = vadd.f32 %v980, 1.0
      %v1013 = vadd.f32 %v981, 1.0
      %v1014 = vadd.f32 %v982, 1.0
      %v1015 = vadd.f32 %v983, 1.0
      %v1016 = vadd.f32 %v984, 1.0
      %v1017 = vadd.f32 %v985, 1.0
      %v1018 = vadd.f32 %v986, 1.0
      %v1019 = vadd.f32 %v987, 1.0
      %v1020 = vadd.f32 %v988, 1.0
      %v1021 = vadd.f32 %v989, 1.0
      %v1022 = vadd.f32 %v990, 1.0
      %v1023 = vadd.f32 %v991, 1.0
      %v1024 = vadd.f32 %v992, 1.0
      %v1025 = vadd.f32 %v993, 1.0
      %v1026 = vadd.f32 %v994, 1.0
      %v1027 = vadd.f32 %v995, 1.0
      %v1028 = vadd.f32 %v996, 1.0
      %v1029 = vadd.f32 %v997, 1.0
      %v1030 = vadd.f32 %v998, 1.0
      %v1031 = vadd.f32 %v999, 1.0
      %v1032 = vadd.f32 %v1000, 1.0
      %v1033 = vadd.f32 %v1001, 1.0
      %v1034 = vadd.f32 %v1002, 1.0
      %v1035 = vadd.f32 %v1003, 1.0
      %v1036 = vadd.f32 %v1004, 1.0
      %v1037 = vadd.f32 %v1005, 1.0
      %v1038 = vadd.f32 %v1006, 1.0
      %v1039 = vadd.f32 %v1007, 1.0
      %v1040 = vadd.f32 %v1008, 1.0
      %v1041 = vadd.f32 %v1009, 1.0
      %v1042 = vadd.f32 %v1010, 1.0
      %v1043 = vadd.f32 %v1011, 1.0
      %v1044 = vmul.f32 %v788, %v1012
      %v1045 = vmul.f32 %v789, %v1013
      %v1046 = vmul.f32 %v790, %v1014
      %v1047 = vmul.f32 %v791, %v1015
      %v1048 = vmul.f32 %v792, %v1016
      %v1049 = vmul.f32 %v793, %v1017
      %v1050 = vmul.f32 %v794, %v1018
      %v1051 = vmul.f32 %v795, %v1019
      %v1052 = vmul.f32 %v796, %v1020
      %v1053 = vmul.f32 %v797, %v1021
      %v1054 = vmul.f32 %v798, %v1022
      %v1055 = vmul.f32 %v799, %v1023
      %v1056 = vmul.f32 %v800, %v1024
      %v1057 = vmul.f32 %v801, %v1025
      %v1058 = vmul.f32 %v802, %v1026
      %v1059 = vmul.f32 %v803, %v1027
      %v1060 = vmul.f32 %v804, %v1028
      %v1061 = vmul.f32 %v805, %v1029
      %v1062 = vmul.f32 %v806, %v1030
      %v1063 = vmul.f32 %v807, %v1031
      %v1064 = vmul.f32 %v808, %v1032
      %v1065 = vmul.f32 %v809, %v1033
      %v1066 = vmul.f32 %v810, %v1034
      %v1067 = vmul.f32 %v811, %v1035
      %v1068 = vmul.f32 %v812, %v1036
      %v1069 = vmul.f32 %v813, %v1037
      %v1070 = vmul.f32 %v814, %v1038
      %v1071 = vmul.f32 %v815, %v1039
      %v1072 = vmul.f32 %v816, %v1040
      %v1073 = vmul.f32 %v817, %v1041
      %v1074 = vmul.f32 %v818, %v1042
      %v1075 = vmul.f32 %v819, %v1043
      %v1076 = vld [vmem:[%s6] sm:$0x1]
      %v1077 = vld [vmem:[#allocation2] sm:$0x1]
      %1079 = vset.pattern.permute.xlu0 0
      %1080 = vperm.xlu0 %1079, %v1077
      %v1081 = vpop.permute.xlu0 %1080
      %v1083 = vperm.slane %v1081, 0
      %1084 = vmatpush.msra.mxu0 %v1074
      %1085 = vmatpush.msra.mxu0 %v1072
      %1086 = vmatpush.msra.mxu0 %v1070
      %1087 = vmatpush.msra.mxu0 %v1068
      %1088 = vmatpush.msra.mxu0 %v1066
      %1089 = vmatpush.msra.mxu0 %v1064
      %1090 = vmatpush.msra.mxu0 %v1062
      %1091 = vmatpush.msra.mxu0 %v1060
      %1092 = vmatpush.msra.mxu0 %v1058
      %1093 = vmatpush.msra.mxu0 %v1056
      %1094 = vmatpush.msra.mxu0 %v1054
      %1095 = vmatpush.msra.mxu0 %v1052
      %1096 = vmatpush.msra.mxu0 %v1050
      %1097 = vmatpush.msra.mxu0 %v1048
      %1098 = vmatpush.msra.mxu0 %v1046
      %1099 = vmatpush.msra.mxu0 %v1044
      %1100 = vmatmul.f32.gmra.mxu0 %v1076
      %v1101 = vpop.f32.mrf.mxu0
      %v1102 = vadd.f32 %v1083, %v1101
      %1103 = vdwg.mxu0
      %1104 = vmatpush.msra.mxu0 %v1075
      %1105 = vmatpush.msra.mxu0 %v1073
      %1106 = vmatpush.msra.mxu0 %v1071
      %1107 = vmatpush.msra.mxu0 %v1069
      %1108 = vmatpush.msra.mxu0 %v1067
      %1109 = vmatpush.msra.mxu0 %v1065
      %1110 = vmatpush.msra.mxu0 %v1063
      %1111 = vmatpush.msra.mxu0 %v1061
      %1112 = vmatpush.msra.mxu0 %v1059
      %1113 = vmatpush.msra.mxu0 %v1057
      %1114 = vmatpush.msra.mxu0 %v1055
      %1115 = vmatpush.msra.mxu0 %v1053
      %1116 = vmatpush.msra.mxu0 %v1051
      %1117 = vmatpush.msra.mxu0 %v1049
      %1118 = vmatpush.msra.mxu0 %v1047
      %1119 = vmatpush.msra.mxu0 %v1045
      %1120 = vmatmul.f32.gmra.mxu0 %v1076
      %v1121 = vpop.f32.mrf.mxu0
      %v1122 = vadd.f32 %v1083, %v1121
      %1123 = vdwg.mxu0
      %v1126 = vrot.slane %v1122, 7
      %vm1127 = vcmask 1040384
      %v1128 = vsel %vm1127, %v1102, %v1126
      %v1130 = vlaneseq
      %vm1131 = vcmp.ge.s32.totalorder %v1130, 0
      %vm1132 = vcmp.lt.s32.totalorder %v1130, 256
      %vm1133 = vmand %vm1131, %vm1132
      %1134 = vst.msk [vmem:[%s379] sm:$0x3] %vm1133, %v1128
      %s1135 = smul.u32 2, %s26
      %p1136 = scmp.lt.s32.totalorder %s25, 1
      %s1137 = scalar_select %p1136, %s25, 1
      %p1138 = scmp.lt.s32.totalorder %s1135, 1
      %s1139 = scalar_select %p1138, %s1135, 1
      %s1140 = smul.addr %s1137, 2
      %s1141 = sadd.s32 %s1139, %s1140
      %s1142 = scalar_lea.vmem %s8, %s1141
      // Predicated region
      $region53: #{fno2d_forward.17} parent=51 // pred_check
        %p1143 = pneg %p235
      $region54: #{fno2d_forward.17} parent=51 // pred_check_branch
        %1145 = sbr.rel (%p1143) target = $region56
      $region55: #{fno2d_forward.17} parent=51 // pred_region
        %s1146 = smul.u32 2, %s26
      $region56: #{fno2d_forward.17} parent=51 // pred_fallthru
        _
    $region52: #{fno2d_forward.17} parent=5 // pred_fallthru
      _
    %p1147 = scmp.le.s32.totalorder 2, %s16
    // Predicated region
    $region57: #{fno2d_forward.17} parent=5 // pred_check
      %p1148 = pneg %p1147
    $region58: #{fno2d_forward.17} parent=5 // pred_check_branch
      %1150 = sbr.rel (%p1148) target = $region60
    $region59: #{fno2d_forward.17} parent=5 // pred_region
      %s1151 = ssub.s32 %s16, 2
      // Predicated region
      $region61: #{fno2d_forward.17} parent=59 // pred_check
        %p1152 = pneg %p241
      $region62: #{fno2d_forward.17} parent=59 // pred_check_branch
        %1154 = sbr.rel (%p1152) target = $region64
      $region63: #{fno2d_forward.17} parent=59 // pred_region
        %s1155 = smul.u32 2, %s28
        %p1156 = scmp.lt.s32.totalorder %s27, 1
        %s1157 = scalar_select %p1156, %s27, 1
        %p1158 = scmp.lt.s32.totalorder %s1155, 1
        %s1159 = scalar_select %p1158, %s1155, 1
        %s1160 = smul.addr %s1157, 2
        %s1161 = sadd.s32 %s1159, %s1160
        %s1162 = scalar_lea.vmem %s8, %s1161
      $region64: #{fno2d_forward.17} parent=59 // pred_fallthru
        _
    $region60: #{fno2d_forward.17} parent=5 // pred_fallthru
      _
  $region6: #{fno2d_forward.17} parent=0 // loop_footer
    %s20 = sadd.s32 1, %s16
  $region7: #{fno2d_forward.17} parent=0 // loop_footer_branch
    %15 = sbr.rel target = $region3
  $region8: #{fno2d_forward.17} parent=0 // loop_exit
    _

</llo_original>
